<compile_context>
chip_gen: v7x
topology: tpu7x:2x2x1
jax: 0.10.0
libtpu: 0.0.40
codegen_flags: <defaults>
</compile_context>

<pallas_src>
import functools

import numpy as np
import jax
import jax.numpy as jnp
from jax.experimental import pallas as pl
from jax.experimental.pallas import tpu as pltpu

_SQRT2_INV = 0.7071067811865476


# ----------------------------------------------------------------------------- kernel
def _rcbv6_kernel(x_ref, w1_ref, b1_ref, w2_ref, b2_ref,
                  dw5_ref, dw5b_ref, dw7_ref, dw7b_ref, pw_ref, pwb_ref,
                  o_ref,
                  xp1_ref, xp2_ref, yp_ref, d1p_ref,
                  *, H, W, C):
    """Fused RCBv6 forward for one batch element, width-folded (H, W*C) layout."""
    WC = W * C
    x = x_ref[0]                                             # (H, W*C)

    def pad_into(buf_ref, val, pad):
        # Zero the padded VMEM scratch, then write the interior (static slices).
        buf_ref[...] = jnp.zeros_like(buf_ref)
        buf_ref[pad:pad + H, pad * C:pad * C + WC] = val

    def banded_conv(buf_ref, bands_ref, taps_h, dil, bias_ref):
        # out = sum_dh  buf[dh*dil : dh*dil+H, :] @ Band[dh]   (+ tiled bias)
        acc = jnp.zeros((H, WC), jnp.float32)
        for dh in range(taps_h):
            strip = buf_ref[dh * dil:dh * dil + H, :]        # (H, Wp*C), sublane shift only
            acc = acc + jnp.dot(strip, bands_ref[dh],
                                preferred_element_type=jnp.float32)
        return acc + bias_ref[...]

    # ---- LFE: conv3x3 -> exact erf GELU -> conv3x3
    pad_into(xp1_ref, x, 1)
    h1 = banded_conv(xp1_ref, w1_ref, 3, 1, b1_ref)
    h1 = h1 * 0.5 * (1.0 + jax.lax.erf(h1 * _SQRT2_INV))     # == torch.nn.GELU()

    pad_into(xp2_ref, h1, 1)
    y = banded_conv(xp2_ref, w2_ref, 3, 1, b2_ref)

    # ---- LKA: dw5x5 -> dw7x7(dil=3, pad=9) -> 1x1 -> sigmoid
    pad_into(yp_ref, y, 2)
    d1 = banded_conv(yp_ref, dw5_ref, 5, 1, dw5b_ref)

    pad_into(d1p_ref, d1, 9)
    d2 = banded_conv(d1p_ref, dw7_ref, 7, 3, dw7b_ref)

    z = jnp.dot(d2, pw_ref[...], preferred_element_type=jnp.float32) + pwb_ref[...]
    attn = jax.nn.sigmoid(z)

    # ---- attn * y + shortcut
    o_ref[0] = attn * y + x


# ----------------------------------------------------------------------------- host-side weight prep
def _prepare_weights(params, W, C):
    """Fold conv weights into banded matrices over the (W*C) folded axis."""
    def np_(a):
        return np.asarray(a, np.float32)

    def dense_bands(w, pad, dil=1):
        # w: (KH, KW, Cin, Cout) -> (KH, (W+2p)*Cin, W*Cout)
        KH, KW, Cin, Cout = w.shape
        Wp = W + 2 * pad
        bands = np.zeros((KH, Wp * Cin, W * Cout), np.float32)
        for dh in range(KH):
            for dw in range(KW):
                for wc in range(W):
                    r0 = (wc + dw * dil) * Cin
                    c0 = wc * Cout
                    bands[dh, r0:r0 + Cin, c0:c0 + Cout] = w[dh, dw]
        return jnp.asarray(bands)

    def dw_bands(w, pad, dil):
        # w: (KH, KW, C) depthwise -> (KH, (W+2p)*C, W*C) with diagonal C-blocks
        KH, KW, Cc = w.shape
        Wp = W + 2 * pad
        bands = np.zeros((KH, Wp * Cc, W * Cc), np.float32)
        for dh in range(KH):
            for dw in range(KW):
                blk = np.diag(w[dh, dw])
                for wc in range(W):
                    r0 = (wc + dw * dil) * Cc
                    c0 = wc * Cc
                    bands[dh, r0:r0 + Cc, c0:c0 + Cc] = blk
        return jnp.asarray(bands)

    def pw_band(w):
        # (Cin, Cout) -> block-diagonal (W*Cin, W*Cout)
        Cin, Cout = w.shape
        band = np.zeros((W * Cin, W * Cout), np.float32)
        for wc in range(W):
            band[wc * Cin:(wc + 1) * Cin, wc * Cout:(wc + 1) * Cout] = w
        return jnp.asarray(band)

    def tile_bias(b):
        return jnp.asarray(np.tile(np_(b).reshape(-1), W).reshape(1, W * C))

    return {
        "w1": dense_bands(np_(params["lfe1_w"]), 1),
        "b1": tile_bias(params["lfe1_b"]),
        "w2": dense_bands(np_(params["lfe2_w"]), 1),
        "b2": tile_bias(params["lfe2_b"]),
        "dw5": dw_bands(np_(params["dw5_w"]), 2, 1),
        "dw5b": tile_bias(params["dw5_b"]),
        "dw7": dw_bands(np_(params["dw7_w"]), 9, 3),
        "dw7b": tile_bias(params["dw7_b"]),
        "pw": pw_band(np_(params["pw_w"])),
        "pwb": tile_bias(params["pw_b"]),
    }


# ----------------------------------------------------------------------------- wrapper
def rcbv6_forward(x_nhwc, params):
    """x_nhwc: (N, H, W, C) float32 -> (N, H, W, C) float32."""
    N, H, W, C = x_nhwc.shape
    WC = W * C
    pw = _prepare_weights(params, W, C)

    # Width-fold to (N, H, W*C): contiguity-preserving (free) host-side reshape.
    x2d = x_nhwc.reshape(N, H, WC)

    kern = functools.partial(_rcbv6_kernel, H=H, W=W, C=C)

    def full_spec(arr):
        nd = arr.ndim
        return pl.BlockSpec(arr.shape, lambda n, _nd=nd: (0,) * _nd)

    out2d = pl.pallas_call(
        kern,
        out_shape=jax.ShapeDtypeStruct((N, H, WC), jnp.float32),
        grid=(N,),
        in_specs=[
            pl.BlockSpec((1, H, WC), lambda n: (n, 0, 0)),
            full_spec(pw["w1"]), full_spec(pw["b1"]),
            full_spec(pw["w2"]), full_spec(pw["b2"]),
            full_spec(pw["dw5"]), full_spec(pw["dw5b"]),
            full_spec(pw["dw7"]), full_spec(pw["dw7b"]),
            full_spec(pw["pw"]), full_spec(pw["pwb"]),
        ],
        out_specs=pl.BlockSpec((1, H, WC), lambda n: (n, 0, 0)),
        scratch_shapes=[
            pltpu.VMEM((H + 2, (W + 2) * C), jnp.float32),    # pad=1 (LFE conv1)
            pltpu.VMEM((H + 2, (W + 2) * C), jnp.float32),    # pad=1 (LFE conv2)
            pltpu.VMEM((H + 4, (W + 4) * C), jnp.float32),    # pad=2 (dw5)
            pltpu.VMEM((H + 18, (W + 18) * C), jnp.float32),  # pad=9 (dw7, dil=3)
        ],
        compiler_params=pltpu.CompilerParams(
            dimension_semantics=("parallel",),
            vmem_limit_bytes=64 * 1024 * 1024),
    )(x2d, pw["w1"], pw["b1"], pw["w2"], pw["b2"],
      pw["dw5"], pw["dw5b"], pw["dw7"], pw["dw7b"], pw["pw"], pw["pwb"])

    return out2d.reshape(N, H, W, C)


# ----------------------------------------------------------------------------- params
def init_params(key, C):
    """Deterministic params matching PyTorch default init ranges (U[-1/sqrt(fan_in), ..])."""
    ks = jax.random.split(key, 10)

    def u(k, shape, fan_in):
        bound = 1.0 / (fan_in ** 0.5)
        return jax.random.uniform(k, shape, jnp.float32, -bound, bound)

    return {
        "lfe1_w": u(ks[0], (3, 3, C, C), C * 9),   # Conv2d(C, C, 3, 1, 1)
        "lfe1_b": u(ks[1], (1, C), C * 9),
        "lfe2_w": u(ks[2], (3, 3, C, C), C * 9),   # Conv2d(C, C, 3, 1, 1)
        "lfe2_b": u(ks[3], (1, C), C * 9),
        "dw5_w":  u(ks[4], (5, 5, C), 25),         # Conv2d(C, C, 5, groups=C)
        "dw5_b":  u(ks[5], (1, C), 25),
        "dw7_w":  u(ks[6], (7, 7, C), 49),         # Conv2d(C, C, 7, dilation=3, groups=C)
        "dw7_b":  u(ks[7], (1, C), 49),
        "pw_w":   u(ks[8], (C, C), C),             # Conv2d(C, C, 1)
        "pw_b":   u(ks[9], (1, C), C),
    }


if __name__ == "__main__":
    N, C, H, W = 2, 4, 16, 16
    key = jax.random.PRNGKey(0)
    kx, kp = jax.random.split(key)

    # PyTorch-style NCHW input, transposed once to NHWC for the kernel.
    x_nchw = jax.random.normal(kx, (N, C, H, W), jnp.float32)
    x = jnp.transpose(x_nchw, (0, 2, 3, 1))

    params = init_params(kp, C)
    out = rcbv6_forward(x, params)
    out = jax.block_until_ready(out)
    assert out.shape == (N, H, W, C) and out.dtype == jnp.float32
    assert bool(jnp.all(jnp.isfinite(out)))
    print("KERNEL_OK")
</pallas_src>

<mosaic_0001>
module attributes {stable_mosaic.version = 11 : i64} {
  func.func @_rcbv6_kernel(%arg0: i32, %arg1: memref<1x16x64xf32, #tpu.memory_space<vmem>>, %arg2: memref<3x72x64xf32, #tpu.memory_space<vmem>>, %arg3: memref<1x64xf32, #tpu.memory_space<vmem>>, %arg4: memref<3x72x64xf32, #tpu.memory_space<vmem>>, %arg5: memref<1x64xf32, #tpu.memory_space<vmem>>, %arg6: memref<5x80x64xf32, #tpu.memory_space<vmem>>, %arg7: memref<1x64xf32, #tpu.memory_space<vmem>>, %arg8: memref<7x136x64xf32, #tpu.memory_space<vmem>>, %arg9: memref<1x64xf32, #tpu.memory_space<vmem>>, %arg10: memref<64x64xf32, #tpu.memory_space<vmem>>, %arg11: memref<1x64xf32, #tpu.memory_space<vmem>>, %arg12: memref<1x16x64xf32, #tpu.memory_space<vmem>>, %arg13: memref<18x72xf32, #tpu.memory_space<vmem>>, %arg14: memref<18x72xf32, #tpu.memory_space<vmem>>, %arg15: memref<20x80xf32, #tpu.memory_space<vmem>>, %arg16: memref<34x136xf32, #tpu.memory_space<vmem>>) attributes {dimension_semantics = [#tpu.dimension_semantics<parallel>], iteration_bounds = array<i64: 2>, scalar_prefetch = 0 : i64, scratch_operands = 4 : i64, tpu.core_type = #tpu.core_type<tc>, window_params = [{transform_indices = @transform_0, window_bounds = array<i64: 1, 16, 64>}, {pipeline_mode = #tpu.pipeline_mode<synchronous>, transform_indices = @transform_1, window_bounds = array<i64: 3, 72, 64>}, {pipeline_mode = #tpu.pipeline_mode<synchronous>, transform_indices = @transform_2, window_bounds = array<i64: 1, 64>}, {pipeline_mode = #tpu.pipeline_mode<synchronous>, transform_indices = @transform_3, window_bounds = array<i64: 3, 72, 64>}, {pipeline_mode = #tpu.pipeline_mode<synchronous>, transform_indices = @transform_4, window_bounds = array<i64: 1, 64>}, {pipeline_mode = #tpu.pipeline_mode<synchronous>, transform_indices = @transform_5, window_bounds = array<i64: 5, 80, 64>}, {pipeline_mode = #tpu.pipeline_mode<synchronous>, transform_indices = @transform_6, window_bounds = array<i64: 1, 64>}, {pipeline_mode = #tpu.pipeline_mode<synchronous>, transform_indices = @transform_7, window_bounds = array<i64: 7, 136, 64>}, {pipeline_mode = #tpu.pipeline_mode<synchronous>, transform_indices = @transform_8, window_bounds = array<i64: 1, 64>}, {pipeline_mode = #tpu.pipeline_mode<synchronous>, transform_indices = @transform_9, window_bounds = array<i64: 64, 64>}, {pipeline_mode = #tpu.pipeline_mode<synchronous>, transform_indices = @transform_10, window_bounds = array<i64: 1, 64>}, {transform_indices = @transform_11, window_bounds = array<i64: 1, 16, 64>}]} {
    %c0 = arith.constant 0 : index
    %c0_0 = arith.constant 0 : index
    %c0_1 = arith.constant 0 : index
    %0 = vector.load %arg1[%c0, %c0_0, %c0_1] : memref<1x16x64xf32, #tpu.memory_space<vmem>>, vector<1x16x64xf32>
    %1 = vector.shape_cast %0 : vector<1x16x64xf32> to vector<16x64xf32>
    %cst = arith.constant 0.000000e+00 : f32
    %2 = vector.broadcast %cst : f32 to vector<18x72xf32>
    %c0_2 = arith.constant 0 : index
    %c0_3 = arith.constant 0 : index
    %3 = vector.load %arg13[%c0_2, %c0_3] : memref<18x72xf32, #tpu.memory_space<vmem>>, vector<18x72xf32>
    tpu.vector_store %arg13[%c0_2, %c0_3], %2 {strides = array<i32>} : memref<18x72xf32, #tpu.memory_space<vmem>>, vector<18x72xf32>,
    %c1 = arith.constant 1 : index
    %c4 = arith.constant 4 : index
    %4 = vector.load %arg13[%c1, %c4] : memref<18x72xf32, #tpu.memory_space<vmem>>, vector<16x64xf32>
    tpu.vector_store %arg13[%c1, %c4], %1 {strides = array<i32>} : memref<18x72xf32, #tpu.memory_space<vmem>>, vector<16x64xf32>,
    %cst_4 = arith.constant 0.000000e+00 : f32
    %5 = vector.broadcast %cst_4 : f32 to vector<16x64xf32>
    %c0_5 = arith.constant 0 : index
    %c0_6 = arith.constant 0 : index
    %6 = vector.load %arg13[%c0_5, %c0_6] : memref<18x72xf32, #tpu.memory_space<vmem>>, vector<16x72xf32>
    %c0_7 = arith.constant 0 : index
    %c0_8 = arith.constant 0 : index
    %c0_9 = arith.constant 0 : index
    %7 = vector.load %arg2[%c0_7, %c0_8, %c0_9] : memref<3x72x64xf32, #tpu.memory_space<vmem>>, vector<1x72x64xf32>
    %8 = vector.shape_cast %7 : vector<1x72x64xf32> to vector<72x64xf32>
    %cst_10 = arith.constant dense<0.000000e+00> : vector<16x64xf32>
    %9 = tpu.matmul %6, %8, %cst_10 {dimension_numbers = #tpu.dot_dimension_numbers<[1], [0], [0], [1], [0, 0, 1, 1], [], []>} : vector<16x72xf32>, vector<72x64xf32>, vector<16x64xf32> -> vector<16x64xf32>
    %10 = arith.addf %5, %9 : vector<16x64xf32>
    %c1_11 = arith.constant 1 : index
    %c0_12 = arith.constant 0 : index
    %11 = vector.load %arg13[%c1_11, %c0_12] : memref<18x72xf32, #tpu.memory_space<vmem>>, vector<16x72xf32>
    %c1_13 = arith.constant 1 : index
    %c0_14 = arith.constant 0 : index
    %c0_15 = arith.constant 0 : index
    %12 = vector.load %arg2[%c1_13, %c0_14, %c0_15] : memref<3x72x64xf32, #tpu.memory_space<vmem>>, vector<1x72x64xf32>
    %13 = vector.shape_cast %12 : vector<1x72x64xf32> to vector<72x64xf32>
    %cst_16 = arith.constant dense<0.000000e+00> : vector<16x64xf32>
    %14 = tpu.matmul %11, %13, %cst_16 {dimension_numbers = #tpu.dot_dimension_numbers<[1], [0], [0], [1], [0, 0, 1, 1], [], []>} : vector<16x72xf32>, vector<72x64xf32>, vector<16x64xf32> -> vector<16x64xf32>
    %15 = arith.addf %10, %14 : vector<16x64xf32>
    %c2 = arith.constant 2 : index
    %c0_17 = arith.constant 0 : index
    %16 = vector.load %arg13[%c2, %c0_17] : memref<18x72xf32, #tpu.memory_space<vmem>>, vector<16x72xf32>
    %c2_18 = arith.constant 2 : index
    %c0_19 = arith.constant 0 : index
    %c0_20 = arith.constant 0 : index
    %17 = vector.load %arg2[%c2_18, %c0_19, %c0_20] : memref<3x72x64xf32, #tpu.memory_space<vmem>>, vector<1x72x64xf32>
    %18 = vector.shape_cast %17 : vector<1x72x64xf32> to vector<72x64xf32>
    %cst_21 = arith.constant dense<0.000000e+00> : vector<16x64xf32>
    %19 = tpu.matmul %16, %18, %cst_21 {dimension_numbers = #tpu.dot_dimension_numbers<[1], [0], [0], [1], [0, 0, 1, 1], [], []>} : vector<16x72xf32>, vector<72x64xf32>, vector<16x64xf32> -> vector<16x64xf32>
    %20 = arith.addf %15, %19 : vector<16x64xf32>
    %c0_22 = arith.constant 0 : index
    %c0_23 = arith.constant 0 : index
    %21 = vector.load %arg3[%c0_22, %c0_23] : memref<1x64xf32, #tpu.memory_space<vmem>>, vector<1x64xf32>
    %22 = vector.broadcast %21 : vector<1x64xf32> to vector<16x64xf32>
    %23 = arith.addf %20, %22 : vector<16x64xf32>
    %cst_24 = arith.constant 5.000000e-01 : f32
    %24 = vector.broadcast %cst_24 : f32 to vector<16x64xf32>
    %25 = arith.mulf %23, %24 : vector<16x64xf32>
    %cst_25 = arith.constant 0.707106769 : f32
    %26 = vector.broadcast %cst_25 : f32 to vector<16x64xf32>
    %27 = arith.mulf %23, %26 : vector<16x64xf32>
    %28 = math.erf %27 : vector<16x64xf32>
    %cst_26 = arith.constant 1.000000e+00 : f32
    %29 = vector.broadcast %cst_26 : f32 to vector<16x64xf32>
    %30 = arith.addf %29, %28 : vector<16x64xf32>
    %31 = arith.mulf %25, %30 : vector<16x64xf32>
    %cst_27 = arith.constant 0.000000e+00 : f32
    %32 = vector.broadcast %cst_27 : f32 to vector<18x72xf32>
    %c0_28 = arith.constant 0 : index
    %c0_29 = arith.constant 0 : index
    %33 = vector.load %arg14[%c0_28, %c0_29] : memref<18x72xf32, #tpu.memory_space<vmem>>, vector<18x72xf32>
    tpu.vector_store %arg14[%c0_28, %c0_29], %32 {strides = array<i32>} : memref<18x72xf32, #tpu.memory_space<vmem>>, vector<18x72xf32>,
    %c1_30 = arith.constant 1 : index
    %c4_31 = arith.constant 4 : index
    %34 = vector.load %arg14[%c1_30, %c4_31] : memref<18x72xf32, #tpu.memory_space<vmem>>, vector<16x64xf32>
    tpu.vector_store %arg14[%c1_30, %c4_31], %31 {strides = array<i32>} : memref<18x72xf32, #tpu.memory_space<vmem>>, vector<16x64xf32>,
    %cst_32 = arith.constant 0.000000e+00 : f32
    %35 = vector.broadcast %cst_32 : f32 to vector<16x64xf32>
    %c0_33 = arith.constant 0 : index
    %c0_34 = arith.constant 0 : index
    %36 = vector.load %arg14[%c0_33, %c0_34] : memref<18x72xf32, #tpu.memory_space<vmem>>, vector<16x72xf32>
    %c0_35 = arith.constant 0 : index
    %c0_36 = arith.constant 0 : index
    %c0_37 = arith.constant 0 : index
    %37 = vector.load %arg4[%c0_35, %c0_36, %c0_37] : memref<3x72x64xf32, #tpu.memory_space<vmem>>, vector<1x72x64xf32>
    %38 = vector.shape_cast %37 : vector<1x72x64xf32> to vector<72x64xf32>
    %cst_38 = arith.constant dense<0.000000e+00> : vector<16x64xf32>
    %39 = tpu.matmul %36, %38, %cst_38 {dimension_numbers = #tpu.dot_dimension_numbers<[1], [0], [0], [1], [0, 0, 1, 1], [], []>} : vector<16x72xf32>, vector<72x64xf32>, vector<16x64xf32> -> vector<16x64xf32>
    %40 = arith.addf %35, %39 : vector<16x64xf32>
    %c1_39 = arith.constant 1 : index
    %c0_40 = arith.constant 0 : index
    %41 = vector.load %arg14[%c1_39, %c0_40] : memref<18x72xf32, #tpu.memory_space<vmem>>, vector<16x72xf32>
    %c1_41 = arith.constant 1 : index
    %c0_42 = arith.constant 0 : index
    %c0_43 = arith.constant 0 : index
    %42 = vector.load %arg4[%c1_41, %c0_42, %c0_43] : memref<3x72x64xf32, #tpu.memory_space<vmem>>, vector<1x72x64xf32>
    %43 = vector.shape_cast %42 : vector<1x72x64xf32> to vector<72x64xf32>
    %cst_44 = arith.constant dense<0.000000e+00> : vector<16x64xf32>
    %44 = tpu.matmul %41, %43, %cst_44 {dimension_numbers = #tpu.dot_dimension_numbers<[1], [0], [0], [1], [0, 0, 1, 1], [], []>} : vector<16x72xf32>, vector<72x64xf32>, vector<16x64xf32> -> vector<16x64xf32>
    %45 = arith.addf %40, %44 : vector<16x64xf32>
    %c2_45 = arith.constant 2 : index
    %c0_46 = arith.constant 0 : index
    %46 = vector.load %arg14[%c2_45, %c0_46] : memref<18x72xf32, #tpu.memory_space<vmem>>, vector<16x72xf32>
    %c2_47 = arith.constant 2 : index
    %c0_48 = arith.constant 0 : index
    %c0_49 = arith.constant 0 : index
    %47 = vector.load %arg4[%c2_47, %c0_48, %c0_49] : memref<3x72x64xf32, #tpu.memory_space<vmem>>, vector<1x72x64xf32>
    %48 = vector.shape_cast %47 : vector<1x72x64xf32> to vector<72x64xf32>
    %cst_50 = arith.constant dense<0.000000e+00> : vector<16x64xf32>
    %49 = tpu.matmul %46, %48, %cst_50 {dimension_numbers = #tpu.dot_dimension_numbers<[1], [0], [0], [1], [0, 0, 1, 1], [], []>} : vector<16x72xf32>, vector<72x64xf32>, vector<16x64xf32> -> vector<16x64xf32>
    %50 = arith.addf %45, %49 : vector<16x64xf32>
    %c0_51 = arith.constant 0 : index
    %c0_52 = arith.constant 0 : index
    %51 = vector.load %arg5[%c0_51, %c0_52] : memref<1x64xf32, #tpu.memory_space<vmem>>, vector<1x64xf32>
    %52 = vector.broadcast %51 : vector<1x64xf32> to vector<16x64xf32>
    %53 = arith.addf %50, %52 : vector<16x64xf32>
    %cst_53 = arith.constant 0.000000e+00 : f32
    %54 = vector.broadcast %cst_53 : f32 to vector<20x80xf32>
    %c0_54 = arith.constant 0 : index
    %c0_55 = arith.constant 0 : index
    %55 = vector.load %arg15[%c0_54, %c0_55] : memref<20x80xf32, #tpu.memory_space<vmem>>, vector<20x80xf32>
    tpu.vector_store %arg15[%c0_54, %c0_55], %54 {strides = array<i32>} : memref<20x80xf32, #tpu.memory_space<vmem>>, vector<20x80xf32>,
    %c2_56 = arith.constant 2 : index
    %c8 = arith.constant 8 : index
    %56 = vector.load %arg15[%c2_56, %c8] : memref<20x80xf32, #tpu.memory_space<vmem>>, vector<16x64xf32>
    tpu.vector_store %arg15[%c2_56, %c8], %53 {strides = array<i32>} : memref<20x80xf32, #tpu.memory_space<vmem>>, vector<16x64xf32>,
    %cst_57 = arith.constant 0.000000e+00 : f32
    %57 = vector.broadcast %cst_57 : f32 to vector<16x64xf32>
    %c0_58 = arith.constant 0 : index
    %c0_59 = arith.constant 0 : index
    %58 = vector.load %arg15[%c0_58, %c0_59] : memref<20x80xf32, #tpu.memory_space<vmem>>, vector<16x80xf32>
    %c0_60 = arith.constant 0 : index
    %c0_61 = arith.constant 0 : index
    %c0_62 = arith.constant 0 : index
    %59 = vector.load %arg6[%c0_60, %c0_61, %c0_62] : memref<5x80x64xf32, #tpu.memory_space<vmem>>, vector<1x80x64xf32>
    %60 = vector.shape_cast %59 : vector<1x80x64xf32> to vector<80x64xf32>
    %cst_63 = arith.constant dense<0.000000e+00> : vector<16x64xf32>
    %61 = tpu.matmul %58, %60, %cst_63 {dimension_numbers = #tpu.dot_dimension_numbers<[1], [0], [0], [1], [0, 0, 1, 1], [], []>} : vector<16x80xf32>, vector<80x64xf32>, vector<16x64xf32> -> vector<16x64xf32>
    %62 = arith.addf %57, %61 : vector<16x64xf32>
    %c1_64 = arith.constant 1 : index
    %c0_65 = arith.constant 0 : index
    %63 = vector.load %arg15[%c1_64, %c0_65] : memref<20x80xf32, #tpu.memory_space<vmem>>, vector<16x80xf32>
    %c1_66 = arith.constant 1 : index
    %c0_67 = arith.constant 0 : index
    %c0_68 = arith.constant 0 : index
    %64 = vector.load %arg6[%c1_66, %c0_67, %c0_68] : memref<5x80x64xf32, #tpu.memory_space<vmem>>, vector<1x80x64xf32>
    %65 = vector.shape_cast %64 : vector<1x80x64xf32> to vector<80x64xf32>
    %cst_69 = arith.constant dense<0.000000e+00> : vector<16x64xf32>
    %66 = tpu.matmul %63, %65, %cst_69 {dimension_numbers = #tpu.dot_dimension_numbers<[1], [0], [0], [1], [0, 0, 1, 1], [], []>} : vector<16x80xf32>, vector<80x64xf32>, vector<16x64xf32> -> vector<16x64xf32>
    %67 = arith.addf %62, %66 : vector<16x64xf32>
    %c2_70 = arith.constant 2 : index
    %c0_71 = arith.constant 0 : index
    %68 = vector.load %arg15[%c2_70, %c0_71] : memref<20x80xf32, #tpu.memory_space<vmem>>, vector<16x80xf32>
    %c2_72 = arith.constant 2 : index
    %c0_73 = arith.constant 0 : index
    %c0_74 = arith.constant 0 : index
    %69 = vector.load %arg6[%c2_72, %c0_73, %c0_74] : memref<5x80x64xf32, #tpu.memory_space<vmem>>, vector<1x80x64xf32>
    %70 = vector.shape_cast %69 : vector<1x80x64xf32> to vector<80x64xf32>
    %cst_75 = arith.constant dense<0.000000e+00> : vector<16x64xf32>
    %71 = tpu.matmul %68, %70, %cst_75 {dimension_numbers = #tpu.dot_dimension_numbers<[1], [0], [0], [1], [0, 0, 1, 1], [], []>} : vector<16x80xf32>, vector<80x64xf32>, vector<16x64xf32> -> vector<16x64xf32>
    %72 = arith.addf %67, %71 : vector<16x64xf32>
    %c3 = arith.constant 3 : index
    %c0_76 = arith.constant 0 : index
    %73 = vector.load %arg15[%c3, %c0_76] : memref<20x80xf32, #tpu.memory_space<vmem>>, vector<16x80xf32>
    %c3_77 = arith.constant 3 : index
    %c0_78 = arith.constant 0 : index
    %c0_79 = arith.constant 0 : index
    %74 = vector.load %arg6[%c3_77, %c0_78, %c0_79] : memref<5x80x64xf32, #tpu.memory_space<vmem>>, vector<1x80x64xf32>
    %75 = vector.shape_cast %74 : vector<1x80x64xf32> to vector<80x64xf32>
    %cst_80 = arith.constant dense<0.000000e+00> : vector<16x64xf32>
    %76 = tpu.matmul %73, %75, %cst_80 {dimension_numbers = #tpu.dot_dimension_numbers<[1], [0], [0], [1], [0, 0, 1, 1], [], []>} : vector<16x80xf32>, vector<80x64xf32>, vector<16x64xf32> -> vector<16x64xf32>
    %77 = arith.addf %72, %76 : vector<16x64xf32>
    %c4_81 = arith.constant 4 : index
    %c0_82 = arith.constant 0 : index
    %78 = vector.load %arg15[%c4_81, %c0_82] : memref<20x80xf32, #tpu.memory_space<vmem>>, vector<16x80xf32>
    %c4_83 = arith.constant 4 : index
    %c0_84 = arith.constant 0 : index
    %c0_85 = arith.constant 0 : index
    %79 = vector.load %arg6[%c4_83, %c0_84, %c0_85] : memref<5x80x64xf32, #tpu.memory_space<vmem>>, vector<1x80x64xf32>
    %80 = vector.shape_cast %79 : vector<1x80x64xf32> to vector<80x64xf32>
    %cst_86 = arith.constant dense<0.000000e+00> : vector<16x64xf32>
    %81 = tpu.matmul %78, %80, %cst_86 {dimension_numbers = #tpu.dot_dimension_numbers<[1], [0], [0], [1], [0, 0, 1, 1], [], []>} : vector<16x80xf32>, vector<80x64xf32>, vector<16x64xf32> -> vector<16x64xf32>
    %82 = arith.addf %77, %81 : vector<16x64xf32>
    %c0_87 = arith.constant 0 : index
    %c0_88 = arith.constant 0 : index
    %83 = vector.load %arg7[%c0_87, %c0_88] : memref<1x64xf32, #tpu.memory_space<vmem>>, vector<1x64xf32>
    %84 = vector.broadcast %83 : vector<1x64xf32> to vector<16x64xf32>
    %85 = arith.addf %82, %84 : vector<16x64xf32>
    %cst_89 = arith.constant 0.000000e+00 : f32
    %86 = vector.broadcast %cst_89 : f32 to vector<34x136xf32>
    %c0_90 = arith.constant 0 : index
    %c0_91 = arith.constant 0 : index
    %87 = vector.load %arg16[%c0_90, %c0_91] : memref<34x136xf32, #tpu.memory_space<vmem>>, vector<34x136xf32>
    tpu.vector_store %arg16[%c0_90, %c0_91], %86 {strides = array<i32>} : memref<34x136xf32, #tpu.memory_space<vmem>>, vector<34x136xf32>,
    %c9 = arith.constant 9 : index
    %c36 = arith.constant 36 : index
    %88 = vector.load %arg16[%c9, %c36] : memref<34x136xf32, #tpu.memory_space<vmem>>, vector<16x64xf32>
    tpu.vector_store %arg16[%c9, %c36], %85 {strides = array<i32>} : memref<34x136xf32, #tpu.memory_space<vmem>>, vector<16x64xf32>,
    %cst_92 = arith.constant 0.000000e+00 : f32
    %89 = vector.broadcast %cst_92 : f32 to vector<16x64xf32>
    %c0_93 = arith.constant 0 : index
    %c0_94 = arith.constant 0 : index
    %90 = vector.load %arg16[%c0_93, %c0_94] : memref<34x136xf32, #tpu.memory_space<vmem>>, vector<16x136xf32>
    %c0_95 = arith.constant 0 : index
    %c0_96 = arith.constant 0 : index
    %c0_97 = arith.constant 0 : index
    %91 = vector.load %arg8[%c0_95, %c0_96, %c0_97] : memref<7x136x64xf32, #tpu.memory_space<vmem>>, vector<1x136x64xf32>
    %92 = vector.shape_cast %91 : vector<1x136x64xf32> to vector<136x64xf32>
    %cst_98 = arith.constant dense<0.000000e+00> : vector<16x64xf32>
    %93 = tpu.matmul %90, %92, %cst_98 {dimension_numbers = #tpu.dot_dimension_numbers<[1], [0], [0], [1], [0, 0, 1, 1], [], []>} : vector<16x136xf32>, vector<136x64xf32>, vector<16x64xf32> -> vector<16x64xf32>
    %94 = arith.addf %89, %93 : vector<16x64xf32>
    %c3_99 = arith.constant 3 : index
    %c0_100 = arith.constant 0 : index
    %95 = vector.load %arg16[%c3_99, %c0_100] : memref<34x136xf32, #tpu.memory_space<vmem>>, vector<16x136xf32>
    %c1_101 = arith.constant 1 : index
    %c0_102 = arith.constant 0 : index
    %c0_103 = arith.constant 0 : index
    %96 = vector.load %arg8[%c1_101, %c0_102, %c0_103] : memref<7x136x64xf32, #tpu.memory_space<vmem>>, vector<1x136x64xf32>
    %97 = vector.shape_cast %96 : vector<1x136x64xf32> to vector<136x64xf32>
    %cst_104 = arith.constant dense<0.000000e+00> : vector<16x64xf32>
    %98 = tpu.matmul %95, %97, %cst_104 {dimension_numbers = #tpu.dot_dimension_numbers<[1], [0], [0], [1], [0, 0, 1, 1], [], []>} : vector<16x136xf32>, vector<136x64xf32>, vector<16x64xf32> -> vector<16x64xf32>
    %99 = arith.addf %94, %98 : vector<16x64xf32>
    %c6 = arith.constant 6 : index
    %c0_105 = arith.constant 0 : index
    %100 = vector.load %arg16[%c6, %c0_105] : memref<34x136xf32, #tpu.memory_space<vmem>>, vector<16x136xf32>
    %c2_106 = arith.constant 2 : index
    %c0_107 = arith.constant 0 : index
    %c0_108 = arith.constant 0 : index
    %101 = vector.load %arg8[%c2_106, %c0_107, %c0_108] : memref<7x136x64xf32, #tpu.memory_space<vmem>>, vector<1x136x64xf32>
    %102 = vector.shape_cast %101 : vector<1x136x64xf32> to vector<136x64xf32>
    %cst_109 = arith.constant dense<0.000000e+00> : vector<16x64xf32>
    %103 = tpu.matmul %100, %102, %cst_109 {dimension_numbers = #tpu.dot_dimension_numbers<[1], [0], [0], [1], [0, 0, 1, 1], [], []>} : vector<16x136xf32>, vector<136x64xf32>, vector<16x64xf32> -> vector<16x64xf32>
    %104 = arith.addf %99, %103 : vector<16x64xf32>
    %c9_110 = arith.constant 9 : index
    %c0_111 = arith.constant 0 : index
    %105 = vector.load %arg16[%c9_110, %c0_111] : memref<34x136xf32, #tpu.memory_space<vmem>>, vector<16x136xf32>
    %c3_112 = arith.constant 3 : index
    %c0_113 = arith.constant 0 : index
    %c0_114 = arith.constant 0 : index
    %106 = vector.load %arg8[%c3_112, %c0_113, %c0_114] : memref<7x136x64xf32, #tpu.memory_space<vmem>>, vector<1x136x64xf32>
    %107 = vector.shape_cast %106 : vector<1x136x64xf32> to vector<136x64xf32>
    %cst_115 = arith.constant dense<0.000000e+00> : vector<16x64xf32>
    %108 = tpu.matmul %105, %107, %cst_115 {dimension_numbers = #tpu.dot_dimension_numbers<[1], [0], [0], [1], [0, 0, 1, 1], [], []>} : vector<16x136xf32>, vector<136x64xf32>, vector<16x64xf32> -> vector<16x64xf32>
    %109 = arith.addf %104, %108 : vector<16x64xf32>
    %c12 = arith.constant 12 : index
    %c0_116 = arith.constant 0 : index
    %110 = vector.load %arg16[%c12, %c0_116] : memref<34x136xf32, #tpu.memory_space<vmem>>, vector<16x136xf32>
    %c4_117 = arith.constant 4 : index
    %c0_118 = arith.constant 0 : index
    %c0_119 = arith.constant 0 : index
    %111 = vector.load %arg8[%c4_117, %c0_118, %c0_119] : memref<7x136x64xf32, #tpu.memory_space<vmem>>, vector<1x136x64xf32>
    %112 = vector.shape_cast %111 : vector<1x136x64xf32> to vector<136x64xf32>
    %cst_120 = arith.constant dense<0.000000e+00> : vector<16x64xf32>
    %113 = tpu.matmul %110, %112, %cst_120 {dimension_numbers = #tpu.dot_dimension_numbers<[1], [0], [0], [1], [0, 0, 1, 1], [], []>} : vector<16x136xf32>, vector<136x64xf32>, vector<16x64xf32> -> vector<16x64xf32>
    %114 = arith.addf %109, %113 : vector<16x64xf32>
    %c15 = arith.constant 15 : index
    %c0_121 = arith.constant 0 : index
    %115 = vector.load %arg16[%c15, %c0_121] : memref<34x136xf32, #tpu.memory_space<vmem>>, vector<16x136xf32>
    %c5 = arith.constant 5 : index
    %c0_122 = arith.constant 0 : index
    %c0_123 = arith.constant 0 : index
    %116 = vector.load %arg8[%c5, %c0_122, %c0_123] : memref<7x136x64xf32, #tpu.memory_space<vmem>>, vector<1x136x64xf32>
    %117 = vector.shape_cast %116 : vector<1x136x64xf32> to vector<136x64xf32>
    %cst_124 = arith.constant dense<0.000000e+00> : vector<16x64xf32>
    %118 = tpu.matmul %115, %117, %cst_124 {dimension_numbers = #tpu.dot_dimension_numbers<[1], [0], [0], [1], [0, 0, 1, 1], [], []>} : vector<16x136xf32>, vector<136x64xf32>, vector<16x64xf32> -> vector<16x64xf32>
    %119 = arith.addf %114, %118 : vector<16x64xf32>
    %c18 = arith.constant 18 : index
    %c0_125 = arith.constant 0 : index
    %120 = vector.load %arg16[%c18, %c0_125] : memref<34x136xf32, #tpu.memory_space<vmem>>, vector<16x136xf32>
    %c6_126 = arith.constant 6 : index
    %c0_127 = arith.constant 0 : index
    %c0_128 = arith.constant 0 : index
    %121 = vector.load %arg8[%c6_126, %c0_127, %c0_128] : memref<7x136x64xf32, #tpu.memory_space<vmem>>, vector<1x136x64xf32>
    %122 = vector.shape_cast %121 : vector<1x136x64xf32> to vector<136x64xf32>
    %cst_129 = arith.constant dense<0.000000e+00> : vector<16x64xf32>
    %123 = tpu.matmul %120, %122, %cst_129 {dimension_numbers = #tpu.dot_dimension_numbers<[1], [0], [0], [1], [0, 0, 1, 1], [], []>} : vector<16x136xf32>, vector<136x64xf32>, vector<16x64xf32> -> vector<16x64xf32>
    %124 = arith.addf %119, %123 : vector<16x64xf32>
    %c0_130 = arith.constant 0 : index
    %c0_131 = arith.constant 0 : index
    %125 = vector.load %arg9[%c0_130, %c0_131] : memref<1x64xf32, #tpu.memory_space<vmem>>, vector<1x64xf32>
    %126 = vector.broadcast %125 : vector<1x64xf32> to vector<16x64xf32>
    %127 = arith.addf %124, %126 : vector<16x64xf32>
    %c0_132 = arith.constant 0 : index
    %c0_133 = arith.constant 0 : index
    %128 = vector.load %arg10[%c0_132, %c0_133] : memref<64x64xf32, #tpu.memory_space<vmem>>, vector<64x64xf32>
    %cst_134 = arith.constant dense<0.000000e+00> : vector<16x64xf32>
    %129 = tpu.matmul %127, %128, %cst_134 {dimension_numbers = #tpu.dot_dimension_numbers<[1], [0], [0], [1], [0, 0, 1, 1], [], []>} : vector<16x64xf32>, vector<64x64xf32>, vector<16x64xf32> -> vector<16x64xf32>
    %c0_135 = arith.constant 0 : index
    %c0_136 = arith.constant 0 : index
    %130 = vector.load %arg11[%c0_135, %c0_136] : memref<1x64xf32, #tpu.memory_space<vmem>>, vector<1x64xf32>
    %131 = vector.broadcast %130 : vector<1x64xf32> to vector<16x64xf32>
    %132 = arith.addf %129, %131 : vector<16x64xf32>
    %133 = arith.negf %132 : vector<16x64xf32>
    %134 = math.exp %133 : vector<16x64xf32>
    %cst_137 = arith.constant 1.000000e+00 : f32
    %135 = vector.broadcast %cst_137 : f32 to vector<16x64xf32>
    %136 = arith.addf %135, %134 : vector<16x64xf32>
    %137 = arith.divf %135, %136 : vector<16x64xf32>
    %138 = arith.mulf %137, %53 : vector<16x64xf32>
    %139 = arith.addf %138, %1 : vector<16x64xf32>
    %c0_138 = arith.constant 0 : index
    %c0_139 = arith.constant 0 : index
    %c0_140 = arith.constant 0 : index
    %140 = vector.load %arg12[%c0_138, %c0_139, %c0_140] : memref<1x16x64xf32, #tpu.memory_space<vmem>>, vector<1x16x64xf32>
    %141 = vector.shape_cast %140 : vector<1x16x64xf32> to vector<16x64xf32>
    %142 = vector.shape_cast %139 : vector<16x64xf32> to vector<1x16x64xf32>
    tpu.vector_store %arg12[%c0_138, %c0_139, %c0_140], %142 {strides = array<i32>} : memref<1x16x64xf32, #tpu.memory_space<vmem>>, vector<1x16x64xf32>,
    return
  }
  func.func @transform_0(%arg0: i32) -> (i32, i32, i32) {
    %c0_i32 = arith.constant 0 : i32
    %c0_i32_0 = arith.constant 0 : i32
    %c0_i32_1 = arith.constant 0 : i32
    return %arg0, %c0_i32, %c0_i32_0 : i32, i32, i32
  }
  func.func @transform_1(%arg0: i32) -> (i32, i32, i32) {
    %c0_i32 = arith.constant 0 : i32
    %c0_i32_0 = arith.constant 0 : i32
    %c0_i32_1 = arith.constant 0 : i32
    %c0_i32_2 = arith.constant 0 : i32
    return %c0_i32, %c0_i32_0, %c0_i32_1 : i32, i32, i32
  }
  func.func @transform_2(%arg0: i32) -> (i32, i32) {
    %c0_i32 = arith.constant 0 : i32
    %c0_i32_0 = arith.constant 0 : i32
    %c0_i32_1 = arith.constant 0 : i32
    return %c0_i32, %c0_i32_0 : i32, i32
  }
  func.func @transform_3(%arg0: i32) -> (i32, i32, i32) {
    %c0_i32 = arith.constant 0 : i32
    %c0_i32_0 = arith.constant 0 : i32
    %c0_i32_1 = arith.constant 0 : i32
    %c0_i32_2 = arith.constant 0 : i32
    return %c0_i32, %c0_i32_0, %c0_i32_1 : i32, i32, i32
  }
  func.func @transform_4(%arg0: i32) -> (i32, i32) {
    %c0_i32 = arith.constant 0 : i32
    %c0_i32_0 = arith.constant 0 : i32
    %c0_i32_1 = arith.constant 0 : i32
    return %c0_i32, %c0_i32_0 : i32, i32
  }
  func.func @transform_5(%arg0: i32) -> (i32, i32, i32) {
    %c0_i32 = arith.constant 0 : i32
    %c0_i32_0 = arith.constant 0 : i32
    %c0_i32_1 = arith.constant 0 : i32
    %c0_i32_2 = arith.constant 0 : i32
    return %c0_i32, %c0_i32_0, %c0_i32_1 : i32, i32, i32
  }
  func.func @transform_6(%arg0: i32) -> (i32, i32) {
    %c0_i32 = arith.constant 0 : i32
    %c0_i32_0 = arith.constant 0 : i32
    %c0_i32_1 = arith.constant 0 : i32
    return %c0_i32, %c0_i32_0 : i32, i32
  }
  func.func @transform_7(%arg0: i32) -> (i32, i32, i32) {
    %c0_i32 = arith.constant 0 : i32
    %c0_i32_0 = arith.constant 0 : i32
    %c0_i32_1 = arith.constant 0 : i32
    %c0_i32_2 = arith.constant 0 : i32
    return %c0_i32, %c0_i32_0, %c0_i32_1 : i32, i32, i32
  }
  func.func @transform_8(%arg0: i32) -> (i32, i32) {
    %c0_i32 = arith.constant 0 : i32
    %c0_i32_0 = arith.constant 0 : i32
    %c0_i32_1 = arith.constant 0 : i32
    return %c0_i32, %c0_i32_0 : i32, i32
  }
  func.func @transform_9(%arg0: i32) -> (i32, i32) {
    %c0_i32 = arith.constant 0 : i32
    %c0_i32_0 = arith.constant 0 : i32
    %c0_i32_1 = arith.constant 0 : i32
    return %c0_i32, %c0_i32_0 : i32, i32
  }
  func.func @transform_10(%arg0: i32) -> (i32, i32) {
    %c0_i32 = arith.constant 0 : i32
    %c0_i32_0 = arith.constant 0 : i32
    %c0_i32_1 = arith.constant 0 : i32
    return %c0_i32, %c0_i32_0 : i32, i32
  }
  func.func @transform_11(%arg0: i32) -> (i32, i32, i32) {
    %c0_i32 = arith.constant 0 : i32
    %c0_i32_0 = arith.constant 0 : i32
    %c0_i32_1 = arith.constant 0 : i32
    return %arg0, %c0_i32, %c0_i32_0 : i32, i32, i32
  }
}

</mosaic_0001>

<llo_original>
// kernel: tpu_custom_call.1
$region0: #{tpu_custom_call.1}
  #allocation0 [shape = 'u32[]', space=smem, size = 0x4, offset = 0x4, fixed_abs, tag = 'smem constant byte address 0x4 - core index']
  #allocation1 [shape = 'u32[144,128]{1,0:T(1,128)}', space=vmem, size = 0x12000, scoped, tag = 'internal scratch']
  #allocation2 [shape = 'f32[18,72]{1,0:T(8,128)}', space=vmem, size = 0x3000, scoped, tag = 'scratch operand']
  #allocation3 [shape = 'f32[18,72]{1,0:T(8,128)}', space=vmem, size = 0x3000, scoped, tag = 'scratch operand']
  #allocation4 [shape = 'f32[20,80]{1,0:T(8,128)}', space=vmem, size = 0x3000, scoped, tag = 'scratch operand']
  #allocation5 [shape = 'f32[34,136]{1,0:T(8,128)}', space=vmem, size = 0xa000, scoped, tag = 'scratch operand']
  %s0 = inlined_call_operand.hbm [shape: f32[2,16,64], index: 0, kind: input, shape index: {}]
  %s1 = inlined_call_operand.hbm [shape: f32[3,72,64], index: 1, kind: input, shape index: {}]
  %s2 = inlined_call_operand.hbm [shape: f32[1,64], index: 2, kind: input, shape index: {}]
  %s3 = inlined_call_operand.hbm [shape: f32[3,72,64], index: 3, kind: input, shape index: {}]
  %s4 = inlined_call_operand.hbm [shape: f32[1,64], index: 4, kind: input, shape index: {}]
  %s5 = inlined_call_operand.hbm [shape: f32[5,80,64], index: 5, kind: input, shape index: {}]
  %s6 = inlined_call_operand.hbm [shape: f32[1,64], index: 6, kind: input, shape index: {}]
  %s7 = inlined_call_operand.hbm [shape: f32[7,136,64], index: 7, kind: input, shape index: {}]
  %s8 = inlined_call_operand.hbm [shape: f32[1,64], index: 8, kind: input, shape index: {}]
  %s9 = inlined_call_operand.hbm [shape: f32[64,64], index: 9, kind: input, shape index: {}]
  %s10 = inlined_call_operand.hbm [shape: f32[1,64], index: 10, kind: input, shape index: {}]
  %s11 = inlined_call_operand.hbm [shape: f32[2,16,64], index: 11, kind: output, shape index: {}]
  %s12 = sld [smem:[#allocation0]]
  $region121: #{tpu_custom_call.1} parent=0
    _
  %s14 = ssub.s32 1, %s12
  %s15 = scalar_select 0, %s14, %s12
  $region1: #{tpu_custom_call.1} parent=0
    #allocation6 [shape = 'u8[16384]{0}', space=vmem, size = 0x4000, scoped, tag = 'input window, operand 0']
    #allocation7 [shape = 's32[2]{0}', space=sflag, size = 0x8, scoped, tag = 'scoped memory for tpu_custom_call.1']
    #allocation8 [shape = 's32[2]{0}', space=sflag, size = 0x8, scoped, tag = 'scoped memory for tpu_custom_call.1']
    #allocation9 [shape = 'u8[110592]{0}', space=vmem, size = 0x1b000, scoped, tag = 'input window, operand 1, single buffered']
    #allocation10 [shape = 's32[1]{0}', space=sflag, size = 0x4, scoped, tag = 'scoped memory for tpu_custom_call.1']
    #allocation11 [shape = 'u8[512]{0}', space=vmem, size = 0x400, scoped, tag = 'input window, operand 2, single buffered']
    #allocation12 [shape = 'u8[110592]{0}', space=vmem, size = 0x1b000, scoped, tag = 'input window, operand 3, single buffered']
    #allocation13 [shape = 's32[1]{0}', space=sflag, size = 0x4, scoped, tag = 'scoped memory for tpu_custom_call.1']
    #allocation14 [shape = 'u8[512]{0}', space=vmem, size = 0x400, scoped, tag = 'input window, operand 4, single buffered']
    #allocation15 [shape = 'u8[204800]{0}', space=vmem, size = 0x32000, scoped, tag = 'input window, operand 5, single buffered']
    #allocation16 [shape = 's32[1]{0}', space=sflag, size = 0x4, scoped, tag = 'scoped memory for tpu_custom_call.1']
    #allocation17 [shape = 'u8[512]{0}', space=vmem, size = 0x400, scoped, tag = 'input window, operand 6, single buffered']
    #allocation18 [shape = 'u8[487424]{0}', space=vmem, size = 0x77000, scoped, tag = 'input window, operand 7, single buffered']
    #allocation19 [shape = 's32[1]{0}', space=sflag, size = 0x4, scoped, tag = 'scoped memory for tpu_custom_call.1']
    #allocation20 [shape = 'u8[512]{0}', space=vmem, size = 0x400, scoped, tag = 'input window, operand 8, single buffered']
    #allocation21 [shape = 'u8[32768]{0}', space=vmem, size = 0x8000, scoped, tag = 'input window, operand 9, single buffered']
    #allocation22 [shape = 's32[1]{0}', space=sflag, size = 0x4, scoped, tag = 'scoped memory for tpu_custom_call.1']
    #allocation23 [shape = 'u8[512]{0}', space=vmem, size = 0x400, scoped, tag = 'input window, operand 10, single buffered']
    #allocation24 [shape = 'u8[16384]{0}', space=vmem, size = 0x4000, scoped, tag = 'output window, operand 0']
    %16 = vsyncpa [#allocation7], 0
    %s17 = scalar_lea.sflag [#allocation7], 1
    %18 = vsyncpa %s17, 0
    %19 = vsyncpa [#allocation10], 0
    %20 = vsyncpa [#allocation13], 0
    %21 = vsyncpa [#allocation16], 0
    %22 = vsyncpa [#allocation19], 0
    %23 = vsyncpa [#allocation22], 0
    %24 = vsyncpa [#allocation8], 0
    %s25 = scalar_lea.sflag [#allocation8], 1
    %26 = vsyncpa %s25, 0
    loop: start=0, step=1, limit=4
    $region2: #{tpu_custom_call.1} parent=1 // loop_pre_header
      _
    $region3: #{tpu_custom_call.1} parent=1 // loop_header
      %s28 = sphi 0, %s32
      %p29 = scmp.ge.s32.totalorder %s28, 4
      %s38 = sphi 0, %s40
      %s41 = sphi 0, %s38
      %s42 = sphi 0, %s41
      %s58 = sphi 0, %s42
      %s62 = sphi 0, %s62
      %s64 = sphi 0, %s62
      %s65 = sphi 0, %s64
      %s79 = sphi 0, %s65
      %s83 = sphi 0, %s83
      %s85 = sphi 0, %s83
      %s86 = sphi 0, %s85
      %s100 = sphi 0, %s86
      %s104 = sphi 0, %s104
      %s106 = sphi 0, %s104
      %s107 = sphi 0, %s106
      %s121 = sphi 0, %s107
      %s125 = sphi 0, %s125
      %s127 = sphi 0, %s125
      %s128 = sphi 0, %s127
      %s142 = sphi 0, %s128
      %s146 = sphi 0, %s146
      %s148 = sphi 0, %s146
      %s149 = sphi 0, %s148
      %s163 = sphi 0, %s149
      %s167 = sphi 0, %s167
      %s169 = sphi 0, %s167
      %s170 = sphi 0, %s169
      %s184 = sphi 0, %s170
      %s188 = sphi 0, %s188
      %s190 = sphi 0, %s188
      %s191 = sphi 0, %s190
      %s205 = sphi 0, %s191
      %s209 = sphi 0, %s209
      %s211 = sphi 0, %s209
      %s212 = sphi 0, %s211
      %s226 = sphi 0, %s212
      %s230 = sphi 0, %s230
      %s232 = sphi 0, %s230
      %s233 = sphi 0, %s232
      %s247 = sphi 0, %s233
      %s251 = sphi 0, %s251
      %s253 = sphi 0, %s251
      %s254 = sphi 0, %s253
      %s268 = sphi 0, %s254
      %s274 = sphi 0, %s276
      %s277 = sphi 0, %s274
      %s278 = sphi 0, %s277
      %s294 = sphi 0, %s278
    $region4: #{tpu_custom_call.1} parent=1 // loop_header_branch
      %31 = sbr.rel (%p29) target = $region8
    $region5: #{tpu_custom_call.1} parent=1 // loop_body
      %s33 = ssub.s32 %s28, 1
      %s34 = ssub.s32 %s28, 2
      %s35 = sadd.s32 %s28, 1
      %s36 = ssub.s32 %s28, %s35
      %p37 = scmp.eq.s32.totalorder %s36, 0
      %s39 = sadd.s32 %s38, 1
      %s40 = scalar_select %p37, %s38, %s39
      %p43 = pneg %p37
      %p44 = scmp.eq.s32.totalorder %s28, 1
      %p45 = por %p43, %p44
      %p46 = scmp.ne.s32.totalorder %s38, %s41
      %p47 = scmp.eq.s32.totalorder %s28, 0
      %p48 = por %p46, %p47
      %p49 = scmp.ne.s32.totalorder %s38, %s41
      %p50 = scmp.eq.s32.totalorder %s33, 1
      %p51 = por %p49, %p50
      %p52 = scmp.ne.s32.totalorder %s41, %s42
      %p53 = scmp.eq.s32.totalorder %s33, 0
      %p54 = por %p52, %p53
      %p55 = scmp.ne.s32.totalorder %s41, %s42
      %p56 = scmp.eq.s32.totalorder %s34, 1
      %p57 = por %p55, %p56
      %p59 = scmp.ne.s32.totalorder %s42, %s58
      %p60 = scmp.eq.s32.totalorder %s34, 0
      %p61 = por %p59, %p60
      %s63 = sadd.s32 %s62, 1
      %p66 = scmp.eq.s32.totalorder %s28, 1
      %p67 = scmp.ne.s32.totalorder %s62, %s64
      %p68 = scmp.eq.s32.totalorder %s28, 0
      %p69 = por %p67, %p68
      %p70 = scmp.ne.s32.totalorder %s62, %s64
      %p71 = scmp.eq.s32.totalorder %s33, 1
      %p72 = por %p70, %p71
      %p73 = scmp.ne.s32.totalorder %s64, %s65
      %p74 = scmp.eq.s32.totalorder %s33, 0
      %p75 = por %p73, %p74
      %p76 = scmp.ne.s32.totalorder %s64, %s65
      %p77 = scmp.eq.s32.totalorder %s34, 1
      %p78 = por %p76, %p77
      %p80 = scmp.ne.s32.totalorder %s65, %s79
      %p81 = scmp.eq.s32.totalorder %s34, 0
      %p82 = por %p80, %p81
      %s84 = sadd.s32 %s83, 1
      %p87 = scmp.eq.s32.totalorder %s28, 1
      %p88 = scmp.ne.s32.totalorder %s83, %s85
      %p89 = scmp.eq.s32.totalorder %s28, 0
      %p90 = por %p88, %p89
      %p91 = scmp.ne.s32.totalorder %s83, %s85
      %p92 = scmp.eq.s32.totalorder %s33, 1
      %p93 = por %p91, %p92
      %p94 = scmp.ne.s32.totalorder %s85, %s86
      %p95 = scmp.eq.s32.totalorder %s33, 0
      %p96 = por %p94, %p95
      %p97 = scmp.ne.s32.totalorder %s85, %s86
      %p98 = scmp.eq.s32.totalorder %s34, 1
      %p99 = por %p97, %p98
      %p101 = scmp.ne.s32.totalorder %s86, %s100
      %p102 = scmp.eq.s32.totalorder %s34, 0
      %p103 = por %p101, %p102
      %s105 = sadd.s32 %s104, 1
      %p108 = scmp.eq.s32.totalorder %s28, 1
      %p109 = scmp.ne.s32.totalorder %s104, %s106
      %p110 = scmp.eq.s32.totalorder %s28, 0
      %p111 = por %p109, %p110
      %p112 = scmp.ne.s32.totalorder %s104, %s106
      %p113 = scmp.eq.s32.totalorder %s33, 1
      %p114 = por %p112, %p113
      %p115 = scmp.ne.s32.totalorder %s106, %s107
      %p116 = scmp.eq.s32.totalorder %s33, 0
      %p117 = por %p115, %p116
      %p118 = scmp.ne.s32.totalorder %s106, %s107
      %p119 = scmp.eq.s32.totalorder %s34, 1
      %p120 = por %p118, %p119
      %p122 = scmp.ne.s32.totalorder %s107, %s121
      %p123 = scmp.eq.s32.totalorder %s34, 0
      %p124 = por %p122, %p123
      %s126 = sadd.s32 %s125, 1
      %p129 = scmp.eq.s32.totalorder %s28, 1
      %p130 = scmp.ne.s32.totalorder %s125, %s127
      %p131 = scmp.eq.s32.totalorder %s28, 0
      %p132 = por %p130, %p131
      %p133 = scmp.ne.s32.totalorder %s125, %s127
      %p134 = scmp.eq.s32.totalorder %s33, 1
      %p135 = por %p133, %p134
      %p136 = scmp.ne.s32.totalorder %s127, %s128
      %p137 = scmp.eq.s32.totalorder %s33, 0
      %p138 = por %p136, %p137
      %p139 = scmp.ne.s32.totalorder %s127, %s128
      %p140 = scmp.eq.s32.totalorder %s34, 1
      %p141 = por %p139, %p140
      %p143 = scmp.ne.s32.totalorder %s128, %s142
      %p144 = scmp.eq.s32.totalorder %s34, 0
      %p145 = por %p143, %p144
      %s147 = sadd.s32 %s146, 1
      %p150 = scmp.eq.s32.totalorder %s28, 1
      %p151 = scmp.ne.s32.totalorder %s146, %s148
      %p152 = scmp.eq.s32.totalorder %s28, 0
      %p153 = por %p151, %p152
      %p154 = scmp.ne.s32.totalorder %s146, %s148
      %p155 = scmp.eq.s32.totalorder %s33, 1
      %p156 = por %p154, %p155
      %p157 = scmp.ne.s32.totalorder %s148, %s149
      %p158 = scmp.eq.s32.totalorder %s33, 0
      %p159 = por %p157, %p158
      %p160 = scmp.ne.s32.totalorder %s148, %s149
      %p161 = scmp.eq.s32.totalorder %s34, 1
      %p162 = por %p160, %p161
      %p164 = scmp.ne.s32.totalorder %s149, %s163
      %p165 = scmp.eq.s32.totalorder %s34, 0
      %p166 = por %p164, %p165
      %s168 = sadd.s32 %s167, 1
      %p171 = scmp.eq.s32.totalorder %s28, 1
      %p172 = scmp.ne.s32.totalorder %s167, %s169
      %p173 = scmp.eq.s32.totalorder %s28, 0
      %p174 = por %p172, %p173
      %p175 = scmp.ne.s32.totalorder %s167, %s169
      %p176 = scmp.eq.s32.totalorder %s33, 1
      %p177 = por %p175, %p176
      %p178 = scmp.ne.s32.totalorder %s169, %s170
      %p179 = scmp.eq.s32.totalorder %s33, 0
      %p180 = por %p178, %p179
      %p181 = scmp.ne.s32.totalorder %s169, %s170
      %p182 = scmp.eq.s32.totalorder %s34, 1
      %p183 = por %p181, %p182
      %p185 = scmp.ne.s32.totalorder %s170, %s184
      %p186 = scmp.eq.s32.totalorder %s34, 0
      %p187 = por %p185, %p186
      %s189 = sadd.s32 %s188, 1
      %p192 = scmp.eq.s32.totalorder %s28, 1
      %p193 = scmp.ne.s32.totalorder %s188, %s190
      %p194 = scmp.eq.s32.totalorder %s28, 0
      %p195 = por %p193, %p194
      %p196 = scmp.ne.s32.totalorder %s188, %s190
      %p197 = scmp.eq.s32.totalorder %s33, 1
      %p198 = por %p196, %p197
      %p199 = scmp.ne.s32.totalorder %s190, %s191
      %p200 = scmp.eq.s32.totalorder %s33, 0
      %p201 = por %p199, %p200
      %p202 = scmp.ne.s32.totalorder %s190, %s191
      %p203 = scmp.eq.s32.totalorder %s34, 1
      %p204 = por %p202, %p203
      %p206 = scmp.ne.s32.totalorder %s191, %s205
      %p207 = scmp.eq.s32.totalorder %s34, 0
      %p208 = por %p206, %p207
      %s210 = sadd.s32 %s209, 1
      %p213 = scmp.eq.s32.totalorder %s28, 1
      %p214 = scmp.ne.s32.totalorder %s209, %s211
      %p215 = scmp.eq.s32.totalorder %s28, 0
      %p216 = por %p214, %p215
      %p217 = scmp.ne.s32.totalorder %s209, %s211
      %p218 = scmp.eq.s32.totalorder %s33, 1
      %p219 = por %p217, %p218
      %p220 = scmp.ne.s32.totalorder %s211, %s212
      %p221 = scmp.eq.s32.totalorder %s33, 0
      %p222 = por %p220, %p221
      %p223 = scmp.ne.s32.totalorder %s211, %s212
      %p224 = scmp.eq.s32.totalorder %s34, 1
      %p225 = por %p223, %p224
      %p227 = scmp.ne.s32.totalorder %s212, %s226
      %p228 = scmp.eq.s32.totalorder %s34, 0
      %p229 = por %p227, %p228
      %s231 = sadd.s32 %s230, 1
      %p234 = scmp.eq.s32.totalorder %s28, 1
      %p235 = scmp.ne.s32.totalorder %s230, %s232
      %p236 = scmp.eq.s32.totalorder %s28, 0
      %p237 = por %p235, %p236
      %p238 = scmp.ne.s32.totalorder %s230, %s232
      %p239 = scmp.eq.s32.totalorder %s33, 1
      %p240 = por %p238, %p239
      %p241 = scmp.ne.s32.totalorder %s232, %s233
      %p242 = scmp.eq.s32.totalorder %s33, 0
      %p243 = por %p241, %p242
      %p244 = scmp.ne.s32.totalorder %s232, %s233
      %p245 = scmp.eq.s32.totalorder %s34, 1
      %p246 = por %p244, %p245
      %p248 = scmp.ne.s32.totalorder %s233, %s247
      %p249 = scmp.eq.s32.totalorder %s34, 0
      %p250 = por %p248, %p249
      %s252 = sadd.s32 %s251, 1
      %p255 = scmp.eq.s32.totalorder %s28, 1
      %p256 = scmp.ne.s32.totalorder %s251, %s253
      %p257 = scmp.eq.s32.totalorder %s28, 0
      %p258 = por %p256, %p257
      %p259 = scmp.ne.s32.totalorder %s251, %s253
      %p260 = scmp.eq.s32.totalorder %s33, 1
      %p261 = por %p259, %p260
      %p262 = scmp.ne.s32.totalorder %s253, %s254
      %p263 = scmp.eq.s32.totalorder %s33, 0
      %p264 = por %p262, %p263
      %p265 = scmp.ne.s32.totalorder %s253, %s254
      %p266 = scmp.eq.s32.totalorder %s34, 1
      %p267 = por %p265, %p266
      %p269 = scmp.ne.s32.totalorder %s254, %s268
      %p270 = scmp.eq.s32.totalorder %s34, 0
      %p271 = por %p269, %p270
      %s272 = ssub.s32 %s28, %s35
      %p273 = scmp.eq.s32.totalorder %s272, 0
      %s275 = sadd.s32 %s274, 1
      %s276 = scalar_select %p273, %s274, %s275
      %p279 = pneg %p273
      %p280 = scmp.eq.s32.totalorder %s28, 1
      %p281 = por %p279, %p280
      %p282 = scmp.ne.s32.totalorder %s274, %s277
      %p283 = scmp.eq.s32.totalorder %s28, 0
      %p284 = por %p282, %p283
      %p285 = scmp.ne.s32.totalorder %s274, %s277
      %p286 = scmp.eq.s32.totalorder %s33, 1
      %p287 = por %p285, %p286
      %p288 = scmp.ne.s32.totalorder %s277, %s278
      %p289 = scmp.eq.s32.totalorder %s33, 0
      %p290 = por %p288, %p289
      %p291 = scmp.ne.s32.totalorder %s277, %s278
      %p292 = scmp.eq.s32.totalorder %s34, 1
      %p293 = por %p291, %p292
      %p295 = scmp.ne.s32.totalorder %s278, %s294
      %p296 = scmp.eq.s32.totalorder %s34, 0
      %p297 = por %p295, %p296
      %p298 = scmp.le.s32.totalorder 1, %s28
      %p299 = scmp.lt.s32.totalorder %s28, 3
      %p300 = pnand %p298, %p299
      %p301 = pneg %p300
      // Predicated region
      $region9: #{tpu_custom_call.1} parent=5 // pred_check
        _
      $region10: #{tpu_custom_call.1} parent=5 // pred_check_branch
        %303 = sbr.rel (%p300) target = $region12
      $region11: #{tpu_custom_call.1} parent=5 // pred_region
        %s304 = ssub.s32 %s28, 1
        // Predicated region
        $region13: #{tpu_custom_call.1} parent=11 // pred_check
          %p305 = pneg %p75
        $region14: #{tpu_custom_call.1} parent=11 // pred_check_branch
          %307 = sbr.rel (%p305) target = $region16
        $region15: #{tpu_custom_call.1} parent=11 // pred_region
          %s309 = ssub.s32 3456, 3456
          %310 = vsyncadd [#allocation10], %s309
          %s311 = sshll.u32 [#allocation9], 4
          %s312 = int_to_ptr.vmem [resolvable:$true] %s311
          %317 = dma.hbm_to_vmem [thread:$0]  %s1, 3456, %s312, [#allocation10], 128, 128, 8
        $region16: #{tpu_custom_call.1} parent=11 // pred_fallthru
          _
        // Predicated region
        $region17: #{tpu_custom_call.1} parent=11 // pred_check
          %p318 = pneg %p96
        $region18: #{tpu_custom_call.1} parent=11 // pred_check_branch
          %320 = sbr.rel (%p318) target = $region20
        $region19: #{tpu_custom_call.1} parent=11 // pred_region
          %s322 = ssub.s32 16, 16
          %323 = vsyncadd [#allocation10], %s322
          %s325 = sshll.u32 [#allocation11], 4
          %s326 = int_to_ptr.vmem [resolvable:$true] %s325
          %328 = dma.hbm_to_vmem [thread:$0]  %s2, 16, %s326, [#allocation10]
        $region20: #{tpu_custom_call.1} parent=11 // pred_fallthru
          _
        // Predicated region
        $region21: #{tpu_custom_call.1} parent=11 // pred_check
          %p329 = pneg %p117
        $region22: #{tpu_custom_call.1} parent=11 // pred_check_branch
          %331 = sbr.rel (%p329) target = $region24
        $region23: #{tpu_custom_call.1} parent=11 // pred_region
          %s333 = ssub.s32 3456, 3456
          %334 = vsyncadd [#allocation13], %s333
          %s335 = sshll.u32 [#allocation12], 4
          %s336 = int_to_ptr.vmem [resolvable:$true] %s335
          %341 = dma.hbm_to_vmem [thread:$0]  %s3, 3456, %s336, [#allocation13], 128, 128, 8
        $region24: #{tpu_custom_call.1} parent=11 // pred_fallthru
          _
        // Predicated region
        $region25: #{tpu_custom_call.1} parent=11 // pred_check
          %p342 = pneg %p138
        $region26: #{tpu_custom_call.1} parent=11 // pred_check_branch
          %344 = sbr.rel (%p342) target = $region28
        $region27: #{tpu_custom_call.1} parent=11 // pred_region
          %s346 = ssub.s32 16, 16
          %347 = vsyncadd [#allocation13], %s346
          %s349 = sshll.u32 [#allocation14], 4
          %s350 = int_to_ptr.vmem [resolvable:$true] %s349
          %352 = dma.hbm_to_vmem [thread:$0]  %s4, 16, %s350, [#allocation13]
        $region28: #{tpu_custom_call.1} parent=11 // pred_fallthru
          _
        // Predicated region
        $region29: #{tpu_custom_call.1} parent=11 // pred_check
          %p353 = pneg %p159
        $region30: #{tpu_custom_call.1} parent=11 // pred_check_branch
          %355 = sbr.rel (%p353) target = $region32
        $region31: #{tpu_custom_call.1} parent=11 // pred_region
          %s357 = ssub.s32 6400, 6400
          %358 = vsyncadd [#allocation16], %s357
          %s359 = sshll.u32 [#allocation15], 4
          %s360 = int_to_ptr.vmem [resolvable:$true] %s359
          %365 = dma.hbm_to_vmem [thread:$0]  %s5, 6400, %s360, [#allocation16], 128, 128, 8
        $region32: #{tpu_custom_call.1} parent=11 // pred_fallthru
          _
        // Predicated region
        $region33: #{tpu_custom_call.1} parent=11 // pred_check
          %p366 = pneg %p180
        $region34: #{tpu_custom_call.1} parent=11 // pred_check_branch
          %368 = sbr.rel (%p366) target = $region36
        $region35: #{tpu_custom_call.1} parent=11 // pred_region
          %s370 = ssub.s32 16, 16
          %371 = vsyncadd [#allocation16], %s370
          %s373 = sshll.u32 [#allocation17], 4
          %s374 = int_to_ptr.vmem [resolvable:$true] %s373
          %376 = dma.hbm_to_vmem [thread:$0]  %s6, 16, %s374, [#allocation16]
        $region36: #{tpu_custom_call.1} parent=11 // pred_fallthru
          _
        // Predicated region
        $region37: #{tpu_custom_call.1} parent=11 // pred_check
          %p377 = pneg %p201
        $region38: #{tpu_custom_call.1} parent=11 // pred_check_branch
          %379 = sbr.rel (%p377) target = $region40
        $region39: #{tpu_custom_call.1} parent=11 // pred_region
          %s381 = ssub.s32 15232, 15232
          %382 = vsyncadd [#allocation19], %s381
          %s383 = sshll.u32 [#allocation18], 4
          %s384 = int_to_ptr.vmem [resolvable:$true] %s383
          %389 = dma.hbm_to_vmem [thread:$0]  %s7, 15232, %s384, [#allocation19], 128, 128, 8
        $region40: #{tpu_custom_call.1} parent=11 // pred_fallthru
          _
        // Predicated region
        $region41: #{tpu_custom_call.1} parent=11 // pred_check
          %p390 = pneg %p222
        $region42: #{tpu_custom_call.1} parent=11 // pred_check_branch
          %392 = sbr.rel (%p390) target = $region44
        $region43: #{tpu_custom_call.1} parent=11 // pred_region
          %s394 = ssub.s32 16, 16
          %395 = vsyncadd [#allocation19], %s394
          %s397 = sshll.u32 [#allocation20], 4
          %s398 = int_to_ptr.vmem [resolvable:$true] %s397
          %400 = dma.hbm_to_vmem [thread:$0]  %s8, 16, %s398, [#allocation19]
        $region44: #{tpu_custom_call.1} parent=11 // pred_fallthru
          _
        // Predicated region
        $region45: #{tpu_custom_call.1} parent=11 // pred_check
          %p401 = pneg %p243
        $region46: #{tpu_custom_call.1} parent=11 // pred_check_branch
          %403 = sbr.rel (%p401) target = $region48
        $region47: #{tpu_custom_call.1} parent=11 // pred_region
          %s405 = ssub.s32 1024, 1024
          %406 = vsyncadd [#allocation22], %s405
          %s407 = sshll.u32 [#allocation21], 4
          %s408 = int_to_ptr.vmem [resolvable:$true] %s407
          %413 = dma.hbm_to_vmem [thread:$0]  %s9, 1024, %s408, [#allocation22], 128, 128, 8
        $region48: #{tpu_custom_call.1} parent=11 // pred_fallthru
          _
        // Predicated region
        $region49: #{tpu_custom_call.1} parent=11 // pred_check
          %p414 = pneg %p264
        $region50: #{tpu_custom_call.1} parent=11 // pred_check_branch
          %416 = sbr.rel (%p414) target = $region52
        $region51: #{tpu_custom_call.1} parent=11 // pred_region
          %s418 = ssub.s32 16, 16
          %419 = vsyncadd [#allocation22], %s418
          %s421 = sshll.u32 [#allocation23], 4
          %s422 = int_to_ptr.vmem [resolvable:$true] %s421
          %424 = dma.hbm_to_vmem [thread:$0]  %s10, 16, %s422, [#allocation22]
        $region52: #{tpu_custom_call.1} parent=11 // pred_fallthru
          _
      $region12: #{tpu_custom_call.1} parent=5 // pred_fallthru
        _
      %p425 = scmp.lt.s32.totalorder %s28, 2
      // Predicated region
      $region53: #{tpu_custom_call.1} parent=5 // pred_check
        %p426 = pneg %p425
      $region54: #{tpu_custom_call.1} parent=5 // pred_check_branch
        %428 = sbr.rel (%p426) target = $region56
      $region55: #{tpu_custom_call.1} parent=5 // pred_region
        // Predicated region
        $region57: #{tpu_custom_call.1} parent=55 // pred_check
          %p429 = pneg %p48
        $region58: #{tpu_custom_call.1} parent=55 // pred_check_branch
          %431 = sbr.rel (%p429) target = $region60
        $region59: #{tpu_custom_call.1} parent=55 // pred_region
          %s432 = sand.u32 %s38, 1
          %s433 = scalar_lea.sflag [#allocation7], %s432
          %s434 = sand.u32 %s38, 1
          %s435 = smul.addr %s434, 16
          %s436 = scalar_lea.vmem [#allocation6], %s435
          %s438 = ssub.s32 256, 256
          %439 = vsyncadd %s433, %s438
          %s440 = smul.addr %s28, 2
          %s441 = smul.addr %s440, 128
          %s442 = scalar_lea.hbm %s0, %s441
          %s443 = sshll.u32 %s436, 4
          %s444 = int_to_ptr.vmem [resolvable:$true] %s443
          %449 = dma.hbm_to_vmem [thread:$0]  %s442, 256, %s444, %s433, 128, 128, 8
        $region60: #{tpu_custom_call.1} parent=55 // pred_fallthru
          _
      $region56: #{tpu_custom_call.1} parent=5 // pred_fallthru
        _
      %p450 = scmp.le.s32.totalorder 1, %s28
      %p451 = scmp.lt.s32.totalorder %s28, 3
      %p452 = pnand %p450, %p451
      %p453 = pneg %p452
      // Predicated region
      $region61: #{tpu_custom_call.1} parent=5 // pred_check
        _
      $region62: #{tpu_custom_call.1} parent=5 // pred_check_branch
        %455 = sbr.rel (%p452) target = $region64
      $region63: #{tpu_custom_call.1} parent=5 // pred_region
        %s456 = ssub.s32 %s28, 1
        %s457 = sand.u32 %s41, 1
        %s458 = scalar_lea.sflag [#allocation7], %s457
        %s459 = sand.u32 %s41, 1
        %s460 = smul.addr %s459, 16
        %s461 = scalar_lea.vmem [#allocation6], %s460
        // Predicated region
        $region65: #{tpu_custom_call.1} parent=63 // pred_check
          %p462 = pneg %p54
        $region66: #{tpu_custom_call.1} parent=63 // pred_check_branch
          %464 = sbr.rel (%p462) target = $region68
        $region67: #{tpu_custom_call.1} parent=63 // pred_region
          %465 = dma.done %s458, 256
        $region68: #{tpu_custom_call.1} parent=63 // pred_fallthru
          _
        // Predicated region
        $region69: #{tpu_custom_call.1} parent=63 // pred_check
          %p466 = pneg %p75
        $region70: #{tpu_custom_call.1} parent=63 // pred_check_branch
          %468 = sbr.rel (%p466) target = $region72
        $region71: #{tpu_custom_call.1} parent=63 // pred_region
          %469 = dma.done [#allocation10], 3456
        $region72: #{tpu_custom_call.1} parent=63 // pred_fallthru
          _
        // Predicated region
        $region73: #{tpu_custom_call.1} parent=63 // pred_check
          %p470 = pneg %p96
        $region74: #{tpu_custom_call.1} parent=63 // pred_check_branch
          %472 = sbr.rel (%p470) target = $region76
        $region75: #{tpu_custom_call.1} parent=63 // pred_region
          %473 = dma.done [#allocation10], 16
        $region76: #{tpu_custom_call.1} parent=63 // pred_fallthru
          _
        // Predicated region
        $region77: #{tpu_custom_call.1} parent=63 // pred_check
          %p474 = pneg %p117
        $region78: #{tpu_custom_call.1} parent=63 // pred_check_branch
          %476 = sbr.rel (%p474) target = $region80
        $region79: #{tpu_custom_call.1} parent=63 // pred_region
          %477 = dma.done [#allocation13], 3456
        $region80: #{tpu_custom_call.1} parent=63 // pred_fallthru
          _
        // Predicated region
        $region81: #{tpu_custom_call.1} parent=63 // pred_check
          %p478 = pneg %p138
        $region82: #{tpu_custom_call.1} parent=63 // pred_check_branch
          %480 = sbr.rel (%p478) target = $region84
        $region83: #{tpu_custom_call.1} parent=63 // pred_region
          %481 = dma.done [#allocation13], 16
        $region84: #{tpu_custom_call.1} parent=63 // pred_fallthru
          _
        // Predicated region
        $region85: #{tpu_custom_call.1} parent=63 // pred_check
          %p482 = pneg %p159
        $region86: #{tpu_custom_call.1} parent=63 // pred_check_branch
          %484 = sbr.rel (%p482) target = $region88
        $region87: #{tpu_custom_call.1} parent=63 // pred_region
          %485 = dma.done [#allocation16], 6400
        $region88: #{tpu_custom_call.1} parent=63 // pred_fallthru
          _
        // Predicated region
        $region89: #{tpu_custom_call.1} parent=63 // pred_check
          %p486 = pneg %p180
        $region90: #{tpu_custom_call.1} parent=63 // pred_check_branch
          %488 = sbr.rel (%p486) target = $region92
        $region91: #{tpu_custom_call.1} parent=63 // pred_region
          %489 = dma.done [#allocation16], 16
        $region92: #{tpu_custom_call.1} parent=63 // pred_fallthru
          _
        // Predicated region
        $region93: #{tpu_custom_call.1} parent=63 // pred_check
          %p490 = pneg %p201
        $region94: #{tpu_custom_call.1} parent=63 // pred_check_branch
          %492 = sbr.rel (%p490) target = $region96
        $region95: #{tpu_custom_call.1} parent=63 // pred_region
          %493 = dma.done [#allocation19], 15232
        $region96: #{tpu_custom_call.1} parent=63 // pred_fallthru
          _
        // Predicated region
        $region97: #{tpu_custom_call.1} parent=63 // pred_check
          %p494 = pneg %p222
        $region98: #{tpu_custom_call.1} parent=63 // pred_check_branch
          %496 = sbr.rel (%p494) target = $region100
        $region99: #{tpu_custom_call.1} parent=63 // pred_region
          %497 = dma.done [#allocation19], 16
        $region100: #{tpu_custom_call.1} parent=63 // pred_fallthru
          _
        // Predicated region
        $region101: #{tpu_custom_call.1} parent=63 // pred_check
          %p498 = pneg %p243
        $region102: #{tpu_custom_call.1} parent=63 // pred_check_branch
          %500 = sbr.rel (%p498) target = $region104
        $region103: #{tpu_custom_call.1} parent=63 // pred_region
          %501 = dma.done [#allocation22], 1024
        $region104: #{tpu_custom_call.1} parent=63 // pred_fallthru
          _
        // Predicated region
        $region105: #{tpu_custom_call.1} parent=63 // pred_check
          %p502 = pneg %p264
        $region106: #{tpu_custom_call.1} parent=63 // pred_check_branch
          %504 = sbr.rel (%p502) target = $region108
        $region107: #{tpu_custom_call.1} parent=63 // pred_region
          %505 = dma.done [#allocation22], 16
        $region108: #{tpu_custom_call.1} parent=63 // pred_fallthru
          _
        %s506 = sand.u32 %s41, 1
        %s507 = scalar_lea.sflag [#allocation7], %s506
        %s508 = sand.u32 %s41, 1
        %s509 = smul.addr %s508, 16
        %s510 = scalar_lea.vmem [#allocation6], %s509
        %p511 = pneg %p54
        %p512 = pneg %p51
        %p513 = pneg %p75
        %p514 = pneg %p72
        %p515 = pneg %p96
        %p516 = pneg %p93
        %p517 = pneg %p117
        %p518 = pneg %p114
        %p519 = pneg %p138
        %p520 = pneg %p135
        %p521 = pneg %p159
        %p522 = pneg %p156
        %p523 = pneg %p180
        %p524 = pneg %p177
        %p525 = pneg %p201
        %p526 = pneg %p198
        %p527 = pneg %p222
        %p528 = pneg %p219
        %p529 = pneg %p243
        %p530 = pneg %p240
        %p531 = pneg %p264
        %p532 = pneg %p261
        %p533 = pneg %p290
        %p534 = pneg %p287
        %s535 = sand.u32 %s277, 1
        %s536 = scalar_lea.sflag [#allocation8], %s535
        %s537 = sand.u32 %s277, 1
        %s538 = smul.addr %s537, 16
        %s539 = scalar_lea.vmem [#allocation24], %s538
        %v540 = vld [vmem:[%s461] sm:$0xff]
        %v541 = vld [vmem:[%s461 + $0x8] sm:$0xff]
        %vm542 = vcmask 588800
        %543 = vst.msk [vmem:[#allocation2] sm:$0xff] %vm542, 0.0
        %544 = vst.msk [vmem:[#allocation2 + $0x8] sm:$0xff] %vm542, 0.0
        %vm545 = vcmask 582656
        %546 = vst.msk [vmem:[#allocation2 + $0x10] sm:$0x3] %vm545, 0.0
        %549 = vrot.lane.b32.xlu0 %v540, 4
        %v550 = vpop.permute.xlu0 %549
        %551 = vrot.lane.b32.xlu0 %v541, 4
        %v552 = vpop.permute.xlu0 %551
        %vm555 = vcmask 556064
        %556 = vst.msk [vmem:[#allocation2 + $0x1] sm:$0xff] %vm555, %v550
        %557 = vst.msk [vmem:[#allocation2 + $0x9] sm:$0xff] %vm555, %v552
        %v558 = vld [vmem:[#allocation2] sm:$0xff]
        %v559 = vld [vmem:[#allocation2 + $0x8] sm:$0xff]
        %v560 = vld [vmem:[#allocation9] sm:$0xff]
        %v561 = vld [vmem:[#allocation9 + $0x8] sm:$0xff]
        %v562 = vld [vmem:[#allocation9 + $0x10] sm:$0xff]
        %v563 = vld [vmem:[#allocation9 + $0x18] sm:$0xff]
        %v564 = vld [vmem:[#allocation9 + $0x20] sm:$0xff]
        %v565 = vld [vmem:[#allocation9 + $0x28] sm:$0xff]
        %v566 = vld [vmem:[#allocation9 + $0x30] sm:$0xff]
        %v567 = vld [vmem:[#allocation9 + $0x38] sm:$0xff]
        %v568 = vld [vmem:[#allocation9 + $0x40] sm:$0xff]
        %v569 = vld [vmem:[#allocation2 + $0x1] sm:$0xff]
        %v570 = vld [vmem:[#allocation2 + $0x9] sm:$0xff]
        %s571 = scalar_lea.vmem [#allocation9], 72
        %v572 = vld [vmem:[%s571] sm:$0xff]
        %v573 = vld [vmem:[%s571 + $0x8] sm:$0xff]
        %v574 = vld [vmem:[%s571 + $0x10] sm:$0xff]
        %v575 = vld [vmem:[%s571 + $0x18] sm:$0xff]
        %v576 = vld [vmem:[%s571 + $0x20] sm:$0xff]
        %v577 = vld [vmem:[%s571 + $0x28] sm:$0xff]
        %v578 = vld [vmem:[%s571 + $0x30] sm:$0xff]
        %v579 = vld [vmem:[%s571 + $0x38] sm:$0xff]
        %v580 = vld [vmem:[%s571 + $0x40] sm:$0xff]
        %v582 = vsel %vm542, %v569, 0
        %v585 = vsel %vm542, %v570, 0
        %587 = vmatprep.subr.mxu0 0.0
        %588 = vmatpush1.msra.mxu0 %v572
        %589 = vmatprep.subr.mxu0 0.0
        %590 = vmatpush1.msra.mxu0 %v573
        %591 = vmatprep.subr.mxu0 0.0
        %592 = vmatpush1.msra.mxu0 %v574
        %593 = vmatprep.subr.mxu0 0.0
        %594 = vmatpush1.msra.mxu0 %v575
        %595 = vmatprep.subr.mxu0 0.0
        %596 = vmatpush1.msra.mxu0 %v576
        %597 = vmatprep.subr.mxu0 0.0
        %598 = vmatpush1.msra.mxu0 %v577
        %599 = vmatprep.subr.mxu0 0.0
        %600 = vmatpush1.msra.mxu0 %v578
        %601 = vmatprep.subr.mxu0 0.0
        %602 = vmatpush1.msra.mxu0 %v579
        %603 = vmatprep.subr.mxu0 0.0
        %604 = vmatpush1.msra.mxu0 %v580
        %605 = vmatprep.subr.mxu0 0.0
        %606 = vmatpush1.msra.mxu0 0.0
        %607 = vmatprep.subr.mxu0 0.0
        %608 = vmatpush1.msra.mxu0 0.0
        %609 = vmatprep.subr.mxu0 0.0
        %610 = vmatpush1.msra.mxu0 0.0
        %611 = vmatprep.subr.mxu0 0.0
        %612 = vmatpush1.msra.mxu0 0.0
        %613 = vmatprep.subr.mxu0 0.0
        %614 = vmatpush1.msra.mxu0 0.0
        %615 = vmatprep.subr.mxu0 0.0
        %616 = vmatpush1.msra.mxu0 0.0
        %617 = vmatprep.subr.mxu0 0.0
        %618 = vmatpush1.msra.mxu0 0.0
        %619 = vmatprep.subr.mxu0 0.0
        %620 = vmatpush1.msra.mxu0 0.0
        %621 = vmatprep.subr.mxu0 0.0
        %622 = vmatpush1.msra.mxu0 0.0
        %623 = vmatprep.subr.mxu0 0.0
        %624 = vmatpush1.msra.mxu0 0.0
        %625 = vmatprep.subr.mxu0 0.0
        %626 = vmatpush1.msra.mxu0 0.0
        %627 = vmatprep.subr.mxu0 0.0
        %628 = vmatpush1.msra.mxu0 0.0
        %629 = vmatprep.subr.mxu0 0.0
        %630 = vmatpush1.msra.mxu0 0.0
        %631 = vmatprep.subr.mxu0 0.0
        %632 = vmatpush1.msra.mxu0 0.0
        %633 = vmatprep.subr.mxu0 0.0
        %634 = vmatpush1.msra.mxu0 0.0
        %635 = vmatprep.subr.mxu0 0.0
        %636 = vmatpush1.msra.mxu0 0.0
        %637 = vmatprep.subr.mxu0 0.0
        %638 = vmatpush1.msra.mxu0 0.0
        %639 = vmatprep.subr.mxu0 0.0
        %640 = vmatpush1.msra.mxu0 0.0
        %641 = vmatprep.subr.mxu0 0.0
        %642 = vmatpush1.msra.mxu0 0.0
        %643 = vmatprep.subr.mxu0 0.0
        %644 = vmatpush1.msra.mxu0 0.0
        %645 = vmatprep.subr.mxu0 0.0
        %646 = vmatpush1.msra.mxu0 0.0
        %647 = vmatprep.subr.mxu0 0.0
        %648 = vmatpush1.msra.mxu0 0.0
        %649 = vmatprep.subr.mxu0 0.0
        %650 = vmatpush1.msra.mxu0 0.0
        %651 = vmatprep.mubr.f32.mxu0 0.0
        %652 = vmatmul.mubr.f32.gmra.mrb[0].mxu0 %v582
        %v653 = vpop.f32.mrb[0].mxu0
        %v654 = vadd.f32 0.0, %v653
        %v655 = vpop.f32.mrb[0].mxu0
        %656 = vmatprep.mubr.f32.mxu0 0.0
        %657 = vmatmul.mubr.f32.gmra.mrb[0].mxu0 %v585
        %v658 = vpop.f32.mrb[0].mxu0
        %v659 = vadd.f32 0.0, %v658
        %v660 = vpop.f32.mrb[0].mxu0
        %661 = vdwg.mxu0
        %v663 = vsel %vm542, %v558, 0
        %v666 = vsel %vm542, %v559, 0
        %668 = vmatprep.subr.mxu0 0.0
        %669 = vmatpush1.msra.mxu0 %v560
        %670 = vmatprep.subr.mxu0 0.0
        %671 = vmatpush1.msra.mxu0 %v561
        %672 = vmatprep.subr.mxu0 0.0
        %673 = vmatpush1.msra.mxu0 %v562
        %674 = vmatprep.subr.mxu0 0.0
        %675 = vmatpush1.msra.mxu0 %v563
        %676 = vmatprep.subr.mxu0 0.0
        %677 = vmatpush1.msra.mxu0 %v564
        %678 = vmatprep.subr.mxu0 0.0
        %679 = vmatpush1.msra.mxu0 %v565
        %680 = vmatprep.subr.mxu0 0.0
        %681 = vmatpush1.msra.mxu0 %v566
        %682 = vmatprep.subr.mxu0 0.0
        %683 = vmatpush1.msra.mxu0 %v567
        %684 = vmatprep.subr.mxu0 0.0
        %685 = vmatpush1.msra.mxu0 %v568
        %686 = vmatprep.subr.mxu0 0.0
        %687 = vmatpush1.msra.mxu0 0.0
        %688 = vmatprep.subr.mxu0 0.0
        %689 = vmatpush1.msra.mxu0 0.0
        %690 = vmatprep.subr.mxu0 0.0
        %691 = vmatpush1.msra.mxu0 0.0
        %692 = vmatprep.subr.mxu0 0.0
        %693 = vmatpush1.msra.mxu0 0.0
        %694 = vmatprep.subr.mxu0 0.0
        %695 = vmatpush1.msra.mxu0 0.0
        %696 = vmatprep.subr.mxu0 0.0
        %697 = vmatpush1.msra.mxu0 0.0
        %698 = vmatprep.subr.mxu0 0.0
        %699 = vmatpush1.msra.mxu0 0.0
        %700 = vmatprep.subr.mxu0 0.0
        %701 = vmatpush1.msra.mxu0 0.0
        %702 = vmatprep.subr.mxu0 0.0
        %703 = vmatpush1.msra.mxu0 0.0
        %704 = vmatprep.subr.mxu0 0.0
        %705 = vmatpush1.msra.mxu0 0.0
        %706 = vmatprep.subr.mxu0 0.0
        %707 = vmatpush1.msra.mxu0 0.0
        %708 = vmatprep.subr.mxu0 0.0
        %709 = vmatpush1.msra.mxu0 0.0
        %710 = vmatprep.subr.mxu0 0.0
        %711 = vmatpush1.msra.mxu0 0.0
        %712 = vmatprep.subr.mxu0 0.0
        %713 = vmatpush1.msra.mxu0 0.0
        %714 = vmatprep.subr.mxu0 0.0
        %715 = vmatpush1.msra.mxu0 0.0
        %716 = vmatprep.subr.mxu0 0.0
        %717 = vmatpush1.msra.mxu0 0.0
        %718 = vmatprep.subr.mxu0 0.0
        %719 = vmatpush1.msra.mxu0 0.0
        %720 = vmatprep.subr.mxu0 0.0
        %721 = vmatpush1.msra.mxu0 0.0
        %722 = vmatprep.subr.mxu0 0.0
        %723 = vmatpush1.msra.mxu0 0.0
        %724 = vmatprep.subr.mxu0 0.0
        %725 = vmatpush1.msra.mxu0 0.0
        %726 = vmatprep.subr.mxu0 0.0
        %727 = vmatpush1.msra.mxu0 0.0
        %728 = vmatprep.subr.mxu0 0.0
        %729 = vmatpush1.msra.mxu0 0.0
        %730 = vmatprep.subr.mxu0 0.0
        %731 = vmatpush1.msra.mxu0 0.0
        %732 = vmatprep.mubr.f32.mxu0 0.0
        %733 = vmatmul.mubr.f32.gmra.mrb[0].mxu0 %v663
        %v734 = vpop.f32.mrb[0].mxu0
        %v735 = vadd.f32 %v654, %v734
        %v736 = vpop.f32.mrb[0].mxu0
        %737 = vmatprep.mubr.f32.mxu0 0.0
        %738 = vmatmul.mubr.f32.gmra.mrb[0].mxu0 %v666
        %v739 = vpop.f32.mrb[0].mxu0
        %v740 = vadd.f32 %v659, %v739
        %v741 = vpop.f32.mrb[0].mxu0
        %742 = vdwg.mxu0
        %v743 = vld [vmem:[#allocation2 + $0x2] sm:$0xff]
        %v744 = vld [vmem:[#allocation2 + $0xa] sm:$0xff]
        %s745 = scalar_lea.vmem [#allocation9], 144
        %v746 = vld [vmem:[%s745] sm:$0xff]
        %v747 = vld [vmem:[%s745 + $0x8] sm:$0xff]
        %v748 = vld [vmem:[%s745 + $0x10] sm:$0xff]
        %v749 = vld [vmem:[%s745 + $0x18] sm:$0xff]
        %v750 = vld [vmem:[%s745 + $0x20] sm:$0xff]
        %v751 = vld [vmem:[%s745 + $0x28] sm:$0xff]
        %v752 = vld [vmem:[%s745 + $0x30] sm:$0xff]
        %v753 = vld [vmem:[%s745 + $0x38] sm:$0xff]
        %v754 = vld [vmem:[%s745 + $0x40] sm:$0xff]
        %v756 = vsel %vm542, %v743, 0
        %v759 = vsel %vm542, %v744, 0
        %761 = vmatprep.subr.mxu0 0.0
        %762 = vmatpush1.msra.mxu0 %v746
        %763 = vmatprep.subr.mxu0 0.0
        %764 = vmatpush1.msra.mxu0 %v747
        %765 = vmatprep.subr.mxu0 0.0
        %766 = vmatpush1.msra.mxu0 %v748
        %767 = vmatprep.subr.mxu0 0.0
        %768 = vmatpush1.msra.mxu0 %v749
        %769 = vmatprep.subr.mxu0 0.0
        %770 = vmatpush1.msra.mxu0 %v750
        %771 = vmatprep.subr.mxu0 0.0
        %772 = vmatpush1.msra.mxu0 %v751
        %773 = vmatprep.subr.mxu0 0.0
        %774 = vmatpush1.msra.mxu0 %v752
        %775 = vmatprep.subr.mxu0 0.0
        %776 = vmatpush1.msra.mxu0 %v753
        %777 = vmatprep.subr.mxu0 0.0
        %778 = vmatpush1.msra.mxu0 %v754
        %779 = vmatprep.subr.mxu0 0.0
        %780 = vmatpush1.msra.mxu0 0.0
        %781 = vmatprep.subr.mxu0 0.0
        %782 = vmatpush1.msra.mxu0 0.0
        %783 = vmatprep.subr.mxu0 0.0
        %784 = vmatpush1.msra.mxu0 0.0
        %785 = vmatprep.subr.mxu0 0.0
        %786 = vmatpush1.msra.mxu0 0.0
        %787 = vmatprep.subr.mxu0 0.0
        %788 = vmatpush1.msra.mxu0 0.0
        %789 = vmatprep.subr.mxu0 0.0
        %790 = vmatpush1.msra.mxu0 0.0
        %791 = vmatprep.subr.mxu0 0.0
        %792 = vmatpush1.msra.mxu0 0.0
        %793 = vmatprep.subr.mxu0 0.0
        %794 = vmatpush1.msra.mxu0 0.0
        %795 = vmatprep.subr.mxu0 0.0
        %796 = vmatpush1.msra.mxu0 0.0
        %797 = vmatprep.subr.mxu0 0.0
        %798 = vmatpush1.msra.mxu0 0.0
        %799 = vmatprep.subr.mxu0 0.0
        %800 = vmatpush1.msra.mxu0 0.0
        %801 = vmatprep.subr.mxu0 0.0
        %802 = vmatpush1.msra.mxu0 0.0
        %803 = vmatprep.subr.mxu0 0.0
        %804 = vmatpush1.msra.mxu0 0.0
        %805 = vmatprep.subr.mxu0 0.0
        %806 = vmatpush1.msra.mxu0 0.0
        %807 = vmatprep.subr.mxu0 0.0
        %808 = vmatpush1.msra.mxu0 0.0
        %809 = vmatprep.subr.mxu0 0.0
        %810 = vmatpush1.msra.mxu0 0.0
        %811 = vmatprep.subr.mxu0 0.0
        %812 = vmatpush1.msra.mxu0 0.0
        %813 = vmatprep.subr.mxu0 0.0
        %814 = vmatpush1.msra.mxu0 0.0
        %815 = vmatprep.subr.mxu0 0.0
        %816 = vmatpush1.msra.mxu0 0.0
        %817 = vmatprep.subr.mxu0 0.0
        %818 = vmatpush1.msra.mxu0 0.0
        %819 = vmatprep.subr.mxu0 0.0
        %820 = vmatpush1.msra.mxu0 0.0
        %821 = vmatprep.subr.mxu0 0.0
        %822 = vmatpush1.msra.mxu0 0.0
        %823 = vmatprep.subr.mxu0 0.0
        %824 = vmatpush1.msra.mxu0 0.0
        %825 = vmatprep.mubr.f32.mxu0 0.0
        %826 = vmatmul.mubr.f32.gmra.mrb[0].mxu0 %v756
        %v827 = vpop.f32.mrb[0].mxu0
        %v828 = vadd.f32 0.0, %v827
        %v829 = vpop.f32.mrb[0].mxu0
        %830 = vmatprep.mubr.f32.mxu0 0.0
        %831 = vmatmul.mubr.f32.gmra.mrb[0].mxu0 %v759
        %v832 = vpop.f32.mrb[0].mxu0
        %v833 = vadd.f32 0.0, %v832
        %v834 = vpop.f32.mrb[0].mxu0
        %835 = vdwg.mxu0
        %v836 = vadd.f32 %v735, %v828
        %v837 = vadd.f32 %v740, %v833
        %v838 = vld [vmem:[#allocation11] sm:$0x1]
        %v840 = vlaneseq
        %v841 = vshrl.u32 %v840, 7
        %v842 = vsub.s32 0, %v841
        %v843 = vrot.slane %v838, %v842
        %v845 = vadd.f32 %v836, %v843
        %v846 = vadd.f32 %v837, %v843
        %v847 = vmul.f32 %v845, 0.5
        %v848 = vmul.f32 %v846, 0.5
        %v849 = vmul.f32 %v845, 0.70710677
        %v850 = vmul.f32 %v846, 0.70710677
        %v851 = verf.f32.pop %v849
        %v852 = verf.f32.pop %v850
        %v853 = vadd.f32 %v851, 1.0
        %v854 = vadd.f32 %v852, 1.0
        %v855 = vmul.f32 %v847, %v853
        %v856 = vmul.f32 %v848, %v854
        %857 = vst.msk [vmem:[#allocation3] sm:$0xff] %vm542, 0.0
        %858 = vst.msk [vmem:[#allocation3 + $0x8] sm:$0xff] %vm542, 0.0
        %859 = vst.msk [vmem:[#allocation3 + $0x10] sm:$0x3] %vm545, 0.0
        %862 = vrot.lane.b32.xlu0 %v855, 4
        %v863 = vpop.permute.xlu0 %862
        %864 = vrot.lane.b32.xlu0 %v856, 4
        %v865 = vpop.permute.xlu0 %864
        %868 = vst.msk [vmem:[#allocation3 + $0x1] sm:$0xff] %vm555, %v863
        %869 = vst.msk [vmem:[#allocation3 + $0x9] sm:$0xff] %vm555, %v865
        %v870 = vld [vmem:[#allocation3] sm:$0xff]
        %v871 = vld [vmem:[#allocation3 + $0x8] sm:$0xff]
        %v872 = vld [vmem:[#allocation12] sm:$0xff]
        %v873 = vld [vmem:[#allocation12 + $0x8] sm:$0xff]
        %v874 = vld [vmem:[#allocation12 + $0x10] sm:$0xff]
        %v875 = vld [vmem:[#allocation12 + $0x18] sm:$0xff]
        %v876 = vld [vmem:[#allocation12 + $0x20] sm:$0xff]
        %v877 = vld [vmem:[#allocation12 + $0x28] sm:$0xff]
        %v878 = vld [vmem:[#allocation12 + $0x30] sm:$0xff]
        %v879 = vld [vmem:[#allocation12 + $0x38] sm:$0xff]
        %v880 = vld [vmem:[#allocation12 + $0x40] sm:$0xff]
        %v881 = vld [vmem:[#allocation3 + $0x1] sm:$0xff]
        %v882 = vld [vmem:[#allocation3 + $0x9] sm:$0xff]
        %s883 = scalar_lea.vmem [#allocation12], 72
        %v884 = vld [vmem:[%s883] sm:$0xff]
        %v885 = vld [vmem:[%s883 + $0x8] sm:$0xff]
        %v886 = vld [vmem:[%s883 + $0x10] sm:$0xff]
        %v887 = vld [vmem:[%s883 + $0x18] sm:$0xff]
        %v888 = vld [vmem:[%s883 + $0x20] sm:$0xff]
        %v889 = vld [vmem:[%s883 + $0x28] sm:$0xff]
        %v890 = vld [vmem:[%s883 + $0x30] sm:$0xff]
        %v891 = vld [vmem:[%s883 + $0x38] sm:$0xff]
        %v892 = vld [vmem:[%s883 + $0x40] sm:$0xff]
        %v894 = vsel %vm542, %v881, 0
        %v897 = vsel %vm542, %v882, 0
        %899 = vmatprep.subr.mxu0 0.0
        %900 = vmatpush1.msra.mxu0 %v884
        %901 = vmatprep.subr.mxu0 0.0
        %902 = vmatpush1.msra.mxu0 %v885
        %903 = vmatprep.subr.mxu0 0.0
        %904 = vmatpush1.msra.mxu0 %v886
        %905 = vmatprep.subr.mxu0 0.0
        %906 = vmatpush1.msra.mxu0 %v887
        %907 = vmatprep.subr.mxu0 0.0
        %908 = vmatpush1.msra.mxu0 %v888
        %909 = vmatprep.subr.mxu0 0.0
        %910 = vmatpush1.msra.mxu0 %v889
        %911 = vmatprep.subr.mxu0 0.0
        %912 = vmatpush1.msra.mxu0 %v890
        %913 = vmatprep.subr.mxu0 0.0
        %914 = vmatpush1.msra.mxu0 %v891
        %915 = vmatprep.subr.mxu0 0.0
        %916 = vmatpush1.msra.mxu0 %v892
        %917 = vmatprep.subr.mxu0 0.0
        %918 = vmatpush1.msra.mxu0 0.0
        %919 = vmatprep.subr.mxu0 0.0
        %920 = vmatpush1.msra.mxu0 0.0
        %921 = vmatprep.subr.mxu0 0.0
        %922 = vmatpush1.msra.mxu0 0.0
        %923 = vmatprep.subr.mxu0 0.0
        %924 = vmatpush1.msra.mxu0 0.0
        %925 = vmatprep.subr.mxu0 0.0
        %926 = vmatpush1.msra.mxu0 0.0
        %927 = vmatprep.subr.mxu0 0.0
        %928 = vmatpush1.msra.mxu0 0.0
        %929 = vmatprep.subr.mxu0 0.0
        %930 = vmatpush1.msra.mxu0 0.0
        %931 = vmatprep.subr.mxu0 0.0
        %932 = vmatpush1.msra.mxu0 0.0
        %933 = vmatprep.subr.mxu0 0.0
        %934 = vmatpush1.msra.mxu0 0.0
        %935 = vmatprep.subr.mxu0 0.0
        %936 = vmatpush1.msra.mxu0 0.0
        %937 = vmatprep.subr.mxu0 0.0
        %938 = vmatpush1.msra.mxu0 0.0
        %939 = vmatprep.subr.mxu0 0.0
        %940 = vmatpush1.msra.mxu0 0.0
        %941 = vmatprep.subr.mxu0 0.0
        %942 = vmatpush1.msra.mxu0 0.0
        %943 = vmatprep.subr.mxu0 0.0
        %944 = vmatpush1.msra.mxu0 0.0
        %945 = vmatprep.subr.mxu0 0.0
        %946 = vmatpush1.msra.mxu0 0.0
        %947 = vmatprep.subr.mxu0 0.0
        %948 = vmatpush1.msra.mxu0 0.0
        %949 = vmatprep.subr.mxu0 0.0
        %950 = vmatpush1.msra.mxu0 0.0
        %951 = vmatprep.subr.mxu0 0.0
        %952 = vmatpush1.msra.mxu0 0.0
        %953 = vmatprep.subr.mxu0 0.0
        %954 = vmatpush1.msra.mxu0 0.0
        %955 = vmatprep.subr.mxu0 0.0
        %956 = vmatpush1.msra.mxu0 0.0
        %957 = vmatprep.subr.mxu0 0.0
        %958 = vmatpush1.msra.mxu0 0.0
        %959 = vmatprep.subr.mxu0 0.0
        %960 = vmatpush1.msra.mxu0 0.0
        %961 = vmatprep.subr.mxu0 0.0
        %962 = vmatpush1.msra.mxu0 0.0
        %963 = vmatprep.mubr.f32.mxu0 0.0
        %964 = vmatmul.mubr.f32.gmra.mrb[0].mxu0 %v894
        %v965 = vpop.f32.mrb[0].mxu0
        %v966 = vadd.f32 0.0, %v965
        %v967 = vpop.f32.mrb[0].mxu0
        %968 = vmatprep.mubr.f32.mxu0 0.0
        %969 = vmatmul.mubr.f32.gmra.mrb[0].mxu0 %v897
        %v970 = vpop.f32.mrb[0].mxu0
        %v971 = vadd.f32 0.0, %v970
        %v972 = vpop.f32.mrb[0].mxu0
        %973 = vdwg.mxu0
        %v975 = vsel %vm542, %v870, 0
        %v978 = vsel %vm542, %v871, 0
        %980 = vmatprep.subr.mxu0 0.0
        %981 = vmatpush1.msra.mxu0 %v872
        %982 = vmatprep.subr.mxu0 0.0
        %983 = vmatpush1.msra.mxu0 %v873
        %984 = vmatprep.subr.mxu0 0.0
        %985 = vmatpush1.msra.mxu0 %v874
        %986 = vmatprep.subr.mxu0 0.0
        %987 = vmatpush1.msra.mxu0 %v875
        %988 = vmatprep.subr.mxu0 0.0
        %989 = vmatpush1.msra.mxu0 %v876
        %990 = vmatprep.subr.mxu0 0.0
        %991 = vmatpush1.msra.mxu0 %v877
        %992 = vmatprep.subr.mxu0 0.0
        %993 = vmatpush1.msra.mxu0 %v878
        %994 = vmatprep.subr.mxu0 0.0
        %995 = vmatpush1.msra.mxu0 %v879
        %996 = vmatprep.subr.mxu0 0.0
        %997 = vmatpush1.msra.mxu0 %v880
        %998 = vmatprep.subr.mxu0 0.0
        %999 = vmatpush1.msra.mxu0 0.0
        %1000 = vmatprep.subr.mxu0 0.0
        %1001 = vmatpush1.msra.mxu0 0.0
        %1002 = vmatprep.subr.mxu0 0.0
        %1003 = vmatpush1.msra.mxu0 0.0
        %1004 = vmatprep.subr.mxu0 0.0
        %1005 = vmatpush1.msra.mxu0 0.0
        %1006 = vmatprep.subr.mxu0 0.0
        %1007 = vmatpush1.msra.mxu0 0.0
        %1008 = vmatprep.subr.mxu0 0.0
        %1009 = vmatpush1.msra.mxu0 0.0
        %1010 = vmatprep.subr.mxu0 0.0
        %1011 = vmatpush1.msra.mxu0 0.0
        %1012 = vmatprep.subr.mxu0 0.0
        %1013 = vmatpush1.msra.mxu0 0.0
        %1014 = vmatprep.subr.mxu0 0.0
        %1015 = vmatpush1.msra.mxu0 0.0
        %1016 = vmatprep.subr.mxu0 0.0
        %1017 = vmatpush1.msra.mxu0 0.0
        %1018 = vmatprep.subr.mxu0 0.0
        %1019 = vmatpush1.msra.mxu0 0.0
        %1020 = vmatprep.subr.mxu0 0.0
        %1021 = vmatpush1.msra.mxu0 0.0
        %1022 = vmatprep.subr.mxu0 0.0
        %1023 = vmatpush1.msra.mxu0 0.0
        %1024 = vmatprep.subr.mxu0 0.0
        %1025 = vmatpush1.msra.mxu0 0.0
        %1026 = vmatprep.subr.mxu0 0.0
        %1027 = vmatpush1.msra.mxu0 0.0
        %1028 = vmatprep.subr.mxu0 0.0
        %1029 = vmatpush1.msra.mxu0 0.0
        %1030 = vmatprep.subr.mxu0 0.0
        %1031 = vmatpush1.msra.mxu0 0.0
        %1032 = vmatprep.subr.mxu0 0.0
        %1033 = vmatpush1.msra.mxu0 0.0
        %1034 = vmatprep.subr.mxu0 0.0
        %1035 = vmatpush1.msra.mxu0 0.0
        %1036 = vmatprep.subr.mxu0 0.0
        %1037 = vmatpush1.msra.mxu0 0.0
        %1038 = vmatprep.subr.mxu0 0.0
        %1039 = vmatpush1.msra.mxu0 0.0
        %1040 = vmatprep.subr.mxu0 0.0
        %1041 = vmatpush1.msra.mxu0 0.0
        %1042 = vmatprep.subr.mxu0 0.0
        %1043 = vmatpush1.msra.mxu0 0.0
        %1044 = vmatprep.mubr.f32.mxu0 0.0
        %1045 = vmatmul.mubr.f32.gmra.mrb[0].mxu0 %v975
        %v1046 = vpop.f32.mrb[0].mxu0
        %v1047 = vadd.f32 %v966, %v1046
        %v1048 = vpop.f32.mrb[0].mxu0
        %1049 = vmatprep.mubr.f32.mxu0 0.0
        %1050 = vmatmul.mubr.f32.gmra.mrb[0].mxu0 %v978
        %v1051 = vpop.f32.mrb[0].mxu0
        %v1052 = vadd.f32 %v971, %v1051
        %v1053 = vpop.f32.mrb[0].mxu0
        %1054 = vdwg.mxu0
        %v1055 = vld [vmem:[#allocation3 + $0x2] sm:$0xff]
        %v1056 = vld [vmem:[#allocation3 + $0xa] sm:$0xff]
        %s1057 = scalar_lea.vmem [#allocation12], 144
        %v1058 = vld [vmem:[%s1057] sm:$0xff]
        %v1059 = vld [vmem:[%s1057 + $0x8] sm:$0xff]
        %v1060 = vld [vmem:[%s1057 + $0x10] sm:$0xff]
        %v1061 = vld [vmem:[%s1057 + $0x18] sm:$0xff]
        %v1062 = vld [vmem:[%s1057 + $0x20] sm:$0xff]
        %v1063 = vld [vmem:[%s1057 + $0x28] sm:$0xff]
        %v1064 = vld [vmem:[%s1057 + $0x30] sm:$0xff]
        %v1065 = vld [vmem:[%s1057 + $0x38] sm:$0xff]
        %v1066 = vld [vmem:[%s1057 + $0x40] sm:$0xff]
        %v1068 = vsel %vm542, %v1055, 0
        %v1071 = vsel %vm542, %v1056, 0
        %1073 = vmatprep.subr.mxu0 0.0
        %1074 = vmatpush1.msra.mxu0 %v1058
        %1075 = vmatprep.subr.mxu0 0.0
        %1076 = vmatpush1.msra.mxu0 %v1059
        %1077 = vmatprep.subr.mxu0 0.0
        %1078 = vmatpush1.msra.mxu0 %v1060
        %1079 = vmatprep.subr.mxu0 0.0
        %1080 = vmatpush1.msra.mxu0 %v1061
        %1081 = vmatprep.subr.mxu0 0.0
        %1082 = vmatpush1.msra.mxu0 %v1062
        %1083 = vmatprep.subr.mxu0 0.0
        %1084 = vmatpush1.msra.mxu0 %v1063
        %1085 = vmatprep.subr.mxu0 0.0
        %1086 = vmatpush1.msra.mxu0 %v1064
        %1087 = vmatprep.subr.mxu0 0.0
        %1088 = vmatpush1.msra.mxu0 %v1065
        %1089 = vmatprep.subr.mxu0 0.0
        %1090 = vmatpush1.msra.mxu0 %v1066
        %1091 = vmatprep.subr.mxu0 0.0
        %1092 = vmatpush1.msra.mxu0 0.0
        %1093 = vmatprep.subr.mxu0 0.0
        %1094 = vmatpush1.msra.mxu0 0.0
        %1095 = vmatprep.subr.mxu0 0.0
        %1096 = vmatpush1.msra.mxu0 0.0
        %1097 = vmatprep.subr.mxu0 0.0
        %1098 = vmatpush1.msra.mxu0 0.0
        %1099 = vmatprep.subr.mxu0 0.0
        %1100 = vmatpush1.msra.mxu0 0.0
        %1101 = vmatprep.subr.mxu0 0.0
        %1102 = vmatpush1.msra.mxu0 0.0
        %1103 = vmatprep.subr.mxu0 0.0
        %1104 = vmatpush1.msra.mxu0 0.0
        %1105 = vmatprep.subr.mxu0 0.0
        %1106 = vmatpush1.msra.mxu0 0.0
        %1107 = vmatprep.subr.mxu0 0.0
        %1108 = vmatpush1.msra.mxu0 0.0
        %1109 = vmatprep.subr.mxu0 0.0
        %1110 = vmatpush1.msra.mxu0 0.0
        %1111 = vmatprep.subr.mxu0 0.0
        %1112 = vmatpush1.msra.mxu0 0.0
        %1113 = vmatprep.subr.mxu0 0.0
        %1114 = vmatpush1.msra.mxu0 0.0
        %1115 = vmatprep.subr.mxu0 0.0
        %1116 = vmatpush1.msra.mxu0 0.0
        %1117 = vmatprep.subr.mxu0 0.0
        %1118 = vmatpush1.msra.mxu0 0.0
        %1119 = vmatprep.subr.mxu0 0.0
        %1120 = vmatpush1.msra.mxu0 0.0
        %1121 = vmatprep.subr.mxu0 0.0
        %1122 = vmatpush1.msra.mxu0 0.0
        %1123 = vmatprep.subr.mxu0 0.0
        %1124 = vmatpush1.msra.mxu0 0.0
        %1125 = vmatprep.subr.mxu0 0.0
        %1126 = vmatpush1.msra.mxu0 0.0
        %1127 = vmatprep.subr.mxu0 0.0
        %1128 = vmatpush1.msra.mxu0 0.0
        %1129 = vmatprep.subr.mxu0 0.0
        %1130 = vmatpush1.msra.mxu0 0.0
        %1131 = vmatprep.subr.mxu0 0.0
        %1132 = vmatpush1.msra.mxu0 0.0
        %1133 = vmatprep.subr.mxu0 0.0
        %1134 = vmatpush1.msra.mxu0 0.0
        %1135 = vmatprep.subr.mxu0 0.0
        %1136 = vmatpush1.msra.mxu0 0.0
        %1137 = vmatprep.mubr.f32.mxu0 0.0
        %1138 = vmatmul.mubr.f32.gmra.mrb[0].mxu0 %v1068
        %v1139 = vpop.f32.mrb[0].mxu0
        %v1140 = vadd.f32 0.0, %v1139
        %v1141 = vpop.f32.mrb[0].mxu0
        %1142 = vmatprep.mubr.f32.mxu0 0.0
        %1143 = vmatmul.mubr.f32.gmra.mrb[0].mxu0 %v1071
        %v1144 = vpop.f32.mrb[0].mxu0
        %v1145 = vadd.f32 0.0, %v1144
        %v1146 = vpop.f32.mrb[0].mxu0
        %1147 = vdwg.mxu0
        %v1148 = vadd.f32 %v1047, %v1140
        %v1149 = vadd.f32 %v1052, %v1145
        %v1150 = vld [vmem:[#allocation14] sm:$0x1]
        %v1152 = vlaneseq
        %v1153 = vshrl.u32 %v1152, 7
        %v1154 = vsub.s32 0, %v1153
        %v1155 = vrot.slane %v1150, %v1154
        %v1157 = vadd.f32 %v1148, %v1155
        %v1158 = vadd.f32 %v1149, %v1155
        %vm1159 = vcmask 654336
        %1160 = vst.msk [vmem:[#allocation4] sm:$0xff] %vm1159, 0.0
        %1161 = vst.msk [vmem:[#allocation4 + $0x8] sm:$0xff] %vm1159, 0.0
        %vm1162 = vcmask 650240
        %1163 = vst.msk [vmem:[#allocation4 + $0x10] sm:$0xf] %vm1162, 0.0
        %1166 = vrot.lane.b32.xlu0 %v1157, 8
        %v1167 = vpop.permute.xlu0 %1166
        %1168 = vrot.lane.b32.xlu0 %v1158, 8
        %v1169 = vpop.permute.xlu0 %1168
        %vm1172 = vcmask 588864
        %1173 = vst.msk [vmem:[#allocation4 + $0x2] sm:$0xff] %vm1172, %v1167
        %1174 = vst.msk [vmem:[#allocation4 + $0xa] sm:$0xff] %vm1172, %v1169
        %v1175 = vld [vmem:[#allocation4] sm:$0xff]
        %v1176 = vld [vmem:[#allocation4 + $0x8] sm:$0xff]
        %v1177 = vld [vmem:[#allocation15] sm:$0xff]
        %v1178 = vld [vmem:[#allocation15 + $0x8] sm:$0xff]
        %v1179 = vld [vmem:[#allocation15 + $0x10] sm:$0xff]
        %v1180 = vld [vmem:[#allocation15 + $0x18] sm:$0xff]
        %v1181 = vld [vmem:[#allocation15 + $0x20] sm:$0xff]
        %v1182 = vld [vmem:[#allocation15 + $0x28] sm:$0xff]
        %v1183 = vld [vmem:[#allocation15 + $0x30] sm:$0xff]
        %v1184 = vld [vmem:[#allocation15 + $0x38] sm:$0xff]
        %v1185 = vld [vmem:[#allocation15 + $0x40] sm:$0xff]
        %v1186 = vld [vmem:[#allocation15 + $0x48] sm:$0xff]
        %v1187 = vld [vmem:[#allocation4 + $0x1] sm:$0xff]
        %v1188 = vld [vmem:[#allocation4 + $0x9] sm:$0xff]
        %s1189 = scalar_lea.vmem [#allocation15], 80
        %v1190 = vld [vmem:[%s1189] sm:$0xff]
        %v1191 = vld [vmem:[%s1189 + $0x8] sm:$0xff]
        %v1192 = vld [vmem:[%s1189 + $0x10] sm:$0xff]
        %v1193 = vld [vmem:[%s1189 + $0x18] sm:$0xff]
        %v1194 = vld [vmem:[%s1189 + $0x20] sm:$0xff]
        %v1195 = vld [vmem:[%s1189 + $0x28] sm:$0xff]
        %v1196 = vld [vmem:[%s1189 + $0x30] sm:$0xff]
        %v1197 = vld [vmem:[%s1189 + $0x38] sm:$0xff]
        %v1198 = vld [vmem:[%s1189 + $0x40] sm:$0xff]
        %v1199 = vld [vmem:[%s1189 + $0x48] sm:$0xff]
        %v1201 = vsel %vm1159, %v1187, 0
        %v1204 = vsel %vm1159, %v1188, 0
        %1206 = vmatprep.subr.mxu0 0.0
        %1207 = vmatpush1.msra.mxu0 %v1190
        %1208 = vmatprep.subr.mxu0 0.0
        %1209 = vmatpush1.msra.mxu0 %v1191
        %1210 = vmatprep.subr.mxu0 0.0
        %1211 = vmatpush1.msra.mxu0 %v1192
        %1212 = vmatprep.subr.mxu0 0.0
        %1213 = vmatpush1.msra.mxu0 %v1193
        %1214 = vmatprep.subr.mxu0 0.0
        %1215 = vmatpush1.msra.mxu0 %v1194
        %1216 = vmatprep.subr.mxu0 0.0
        %1217 = vmatpush1.msra.mxu0 %v1195
        %1218 = vmatprep.subr.mxu0 0.0
        %1219 = vmatpush1.msra.mxu0 %v1196
        %1220 = vmatprep.subr.mxu0 0.0
        %1221 = vmatpush1.msra.mxu0 %v1197
        %1222 = vmatprep.subr.mxu0 0.0
        %1223 = vmatpush1.msra.mxu0 %v1198
        %1224 = vmatprep.subr.mxu0 0.0
        %1225 = vmatpush1.msra.mxu0 %v1199
        %1226 = vmatprep.subr.mxu0 0.0
        %1227 = vmatpush1.msra.mxu0 0.0
        %1228 = vmatprep.subr.mxu0 0.0
        %1229 = vmatpush1.msra.mxu0 0.0
        %1230 = vmatprep.subr.mxu0 0.0
        %1231 = vmatpush1.msra.mxu0 0.0
        %1232 = vmatprep.subr.mxu0 0.0
        %1233 = vmatpush1.msra.mxu0 0.0
        %1234 = vmatprep.subr.mxu0 0.0
        %1235 = vmatpush1.msra.mxu0 0.0
        %1236 = vmatprep.subr.mxu0 0.0
        %1237 = vmatpush1.msra.mxu0 0.0
        %1238 = vmatprep.subr.mxu0 0.0
        %1239 = vmatpush1.msra.mxu0 0.0
        %1240 = vmatprep.subr.mxu0 0.0
        %1241 = vmatpush1.msra.mxu0 0.0
        %1242 = vmatprep.subr.mxu0 0.0
        %1243 = vmatpush1.msra.mxu0 0.0
        %1244 = vmatprep.subr.mxu0 0.0
        %1245 = vmatpush1.msra.mxu0 0.0
        %1246 = vmatprep.subr.mxu0 0.0
        %1247 = vmatpush1.msra.mxu0 0.0
        %1248 = vmatprep.subr.mxu0 0.0
        %1249 = vmatpush1.msra.mxu0 0.0
        %1250 = vmatprep.subr.mxu0 0.0
        %1251 = vmatpush1.msra.mxu0 0.0
        %1252 = vmatprep.subr.mxu0 0.0
        %1253 = vmatpush1.msra.mxu0 0.0
        %1254 = vmatprep.subr.mxu0 0.0
        %1255 = vmatpush1.msra.mxu0 0.0
        %1256 = vmatprep.subr.mxu0 0.0
        %1257 = vmatpush1.msra.mxu0 0.0
        %1258 = vmatprep.subr.mxu0 0.0
        %1259 = vmatpush1.msra.mxu0 0.0
        %1260 = vmatprep.subr.mxu0 0.0
        %1261 = vmatpush1.msra.mxu0 0.0
        %1262 = vmatprep.subr.mxu0 0.0
        %1263 = vmatpush1.msra.mxu0 0.0
        %1264 = vmatprep.subr.mxu0 0.0
        %1265 = vmatpush1.msra.mxu0 0.0
        %1266 = vmatprep.subr.mxu0 0.0
        %1267 = vmatpush1.msra.mxu0 0.0
        %1268 = vmatprep.subr.mxu0 0.0
        %1269 = vmatpush1.msra.mxu0 0.0
        %1270 = vmatprep.mubr.f32.mxu0 0.0
        %1271 = vmatmul.mubr.f32.gmra.mrb[0].mxu0 %v1201
        %v1272 = vpop.f32.mrb[0].mxu0
        %v1273 = vadd.f32 0.0, %v1272
        %v1274 = vpop.f32.mrb[0].mxu0
        %1275 = vmatprep.mubr.f32.mxu0 0.0
        %1276 = vmatmul.mubr.f32.gmra.mrb[0].mxu0 %v1204
        %v1277 = vpop.f32.mrb[0].mxu0
        %v1278 = vadd.f32 0.0, %v1277
        %v1279 = vpop.f32.mrb[0].mxu0
        %1280 = vdwg.mxu0
        %v1282 = vsel %vm1159, %v1175, 0
        %v1285 = vsel %vm1159, %v1176, 0
        %1287 = vmatprep.subr.mxu0 0.0
        %1288 = vmatpush1.msra.mxu0 %v1177
        %1289 = vmatprep.subr.mxu0 0.0
        %1290 = vmatpush1.msra.mxu0 %v1178
        %1291 = vmatprep.subr.mxu0 0.0
        %1292 = vmatpush1.msra.mxu0 %v1179
        %1293 = vmatprep.subr.mxu0 0.0
        %1294 = vmatpush1.msra.mxu0 %v1180
        %1295 = vmatprep.subr.mxu0 0.0
        %1296 = vmatpush1.msra.mxu0 %v1181
        %1297 = vmatprep.subr.mxu0 0.0
        %1298 = vmatpush1.msra.mxu0 %v1182
        %1299 = vmatprep.subr.mxu0 0.0
        %1300 = vmatpush1.msra.mxu0 %v1183
        %1301 = vmatprep.subr.mxu0 0.0
        %1302 = vmatpush1.msra.mxu0 %v1184
        %1303 = vmatprep.subr.mxu0 0.0
        %1304 = vmatpush1.msra.mxu0 %v1185
        %1305 = vmatprep.subr.mxu0 0.0
        %1306 = vmatpush1.msra.mxu0 %v1186
        %1307 = vmatprep.subr.mxu0 0.0
        %1308 = vmatpush1.msra.mxu0 0.0
        %1309 = vmatprep.subr.mxu0 0.0
        %1310 = vmatpush1.msra.mxu0 0.0
        %1311 = vmatprep.subr.mxu0 0.0
        %1312 = vmatpush1.msra.mxu0 0.0
        %1313 = vmatprep.subr.mxu0 0.0
        %1314 = vmatpush1.msra.mxu0 0.0
        %1315 = vmatprep.subr.mxu0 0.0
        %1316 = vmatpush1.msra.mxu0 0.0
        %1317 = vmatprep.subr.mxu0 0.0
        %1318 = vmatpush1.msra.mxu0 0.0
        %1319 = vmatprep.subr.mxu0 0.0
        %1320 = vmatpush1.msra.mxu0 0.0
        %1321 = vmatprep.subr.mxu0 0.0
        %1322 = vmatpush1.msra.mxu0 0.0
        %1323 = vmatprep.subr.mxu0 0.0
        %1324 = vmatpush1.msra.mxu0 0.0
        %1325 = vmatprep.subr.mxu0 0.0
        %1326 = vmatpush1.msra.mxu0 0.0
        %1327 = vmatprep.subr.mxu0 0.0
        %1328 = vmatpush1.msra.mxu0 0.0
        %1329 = vmatprep.subr.mxu0 0.0
        %1330 = vmatpush1.msra.mxu0 0.0
        %1331 = vmatprep.subr.mxu0 0.0
        %1332 = vmatpush1.msra.mxu0 0.0
        %1333 = vmatprep.subr.mxu0 0.0
        %1334 = vmatpush1.msra.mxu0 0.0
        %1335 = vmatprep.subr.mxu0 0.0
        %1336 = vmatpush1.msra.mxu0 0.0
        %1337 = vmatprep.subr.mxu0 0.0
        %1338 = vmatpush1.msra.mxu0 0.0
        %1339 = vmatprep.subr.mxu0 0.0
        %1340 = vmatpush1.msra.mxu0 0.0
        %1341 = vmatprep.subr.mxu0 0.0
        %1342 = vmatpush1.msra.mxu0 0.0
        %1343 = vmatprep.subr.mxu0 0.0
        %1344 = vmatpush1.msra.mxu0 0.0
        %1345 = vmatprep.subr.mxu0 0.0
        %1346 = vmatpush1.msra.mxu0 0.0
        %1347 = vmatprep.subr.mxu0 0.0
        %1348 = vmatpush1.msra.mxu0 0.0
        %1349 = vmatprep.subr.mxu0 0.0
        %1350 = vmatpush1.msra.mxu0 0.0
        %1351 = vmatprep.mubr.f32.mxu0 0.0
        %1352 = vmatmul.mubr.f32.gmra.mrb[0].mxu0 %v1282
        %v1353 = vpop.f32.mrb[0].mxu0
        %v1354 = vadd.f32 %v1273, %v1353
        %v1355 = vpop.f32.mrb[0].mxu0
        %1356 = vmatprep.mubr.f32.mxu0 0.0
        %1357 = vmatmul.mubr.f32.gmra.mrb[0].mxu0 %v1285
        %v1358 = vpop.f32.mrb[0].mxu0
        %v1359 = vadd.f32 %v1278, %v1358
        %v1360 = vpop.f32.mrb[0].mxu0
        %1361 = vdwg.mxu0
        %v1362 = vld [vmem:[#allocation4 + $0x2] sm:$0xff]
        %v1363 = vld [vmem:[#allocation4 + $0xa] sm:$0xff]
        %s1364 = scalar_lea.vmem [#allocation15], 160
        %v1365 = vld [vmem:[%s1364] sm:$0xff]
        %v1366 = vld [vmem:[%s1364 + $0x8] sm:$0xff]
        %v1367 = vld [vmem:[%s1364 + $0x10] sm:$0xff]
        %v1368 = vld [vmem:[%s1364 + $0x18] sm:$0xff]
        %v1369 = vld [vmem:[%s1364 + $0x20] sm:$0xff]
        %v1370 = vld [vmem:[%s1364 + $0x28] sm:$0xff]
        %v1371 = vld [vmem:[%s1364 + $0x30] sm:$0xff]
        %v1372 = vld [vmem:[%s1364 + $0x38] sm:$0xff]
        %v1373 = vld [vmem:[%s1364 + $0x40] sm:$0xff]
        %v1374 = vld [vmem:[%s1364 + $0x48] sm:$0xff]
        %v1376 = vsel %vm1159, %v1362, 0
        %v1379 = vsel %vm1159, %v1363, 0
        %1381 = vmatprep.subr.mxu0 0.0
        %1382 = vmatpush1.msra.mxu0 %v1365
        %1383 = vmatprep.subr.mxu0 0.0
        %1384 = vmatpush1.msra.mxu0 %v1366
        %1385 = vmatprep.subr.mxu0 0.0
        %1386 = vmatpush1.msra.mxu0 %v1367
        %1387 = vmatprep.subr.mxu0 0.0
        %1388 = vmatpush1.msra.mxu0 %v1368
        %1389 = vmatprep.subr.mxu0 0.0
        %1390 = vmatpush1.msra.mxu0 %v1369
        %1391 = vmatprep.subr.mxu0 0.0
        %1392 = vmatpush1.msra.mxu0 %v1370
        %1393 = vmatprep.subr.mxu0 0.0
        %1394 = vmatpush1.msra.mxu0 %v1371
        %1395 = vmatprep.subr.mxu0 0.0
        %1396 = vmatpush1.msra.mxu0 %v1372
        %1397 = vmatprep.subr.mxu0 0.0
        %1398 = vmatpush1.msra.mxu0 %v1373
        %1399 = vmatprep.subr.mxu0 0.0
        %1400 = vmatpush1.msra.mxu0 %v1374
        %1401 = vmatprep.subr.mxu0 0.0
        %1402 = vmatpush1.msra.mxu0 0.0
        %1403 = vmatprep.subr.mxu0 0.0
        %1404 = vmatpush1.msra.mxu0 0.0
        %1405 = vmatprep.subr.mxu0 0.0
        %1406 = vmatpush1.msra.mxu0 0.0
        %1407 = vmatprep.subr.mxu0 0.0
        %1408 = vmatpush1.msra.mxu0 0.0
        %1409 = vmatprep.subr.mxu0 0.0
        %1410 = vmatpush1.msra.mxu0 0.0
        %1411 = vmatprep.subr.mxu0 0.0
        %1412 = vmatpush1.msra.mxu0 0.0
        %1413 = vmatprep.subr.mxu0 0.0
        %1414 = vmatpush1.msra.mxu0 0.0
        %1415 = vmatprep.subr.mxu0 0.0
        %1416 = vmatpush1.msra.mxu0 0.0
        %1417 = vmatprep.subr.mxu0 0.0
        %1418 = vmatpush1.msra.mxu0 0.0
        %1419 = vmatprep.subr.mxu0 0.0
        %1420 = vmatpush1.msra.mxu0 0.0
        %1421 = vmatprep.subr.mxu0 0.0
        %1422 = vmatpush1.msra.mxu0 0.0
        %1423 = vmatprep.subr.mxu0 0.0
        %1424 = vmatpush1.msra.mxu0 0.0
        %1425 = vmatprep.subr.mxu0 0.0
        %1426 = vmatpush1.msra.mxu0 0.0
        %1427 = vmatprep.subr.mxu0 0.0
        %1428 = vmatpush1.msra.mxu0 0.0
        %1429 = vmatprep.subr.mxu0 0.0
        %1430 = vmatpush1.msra.mxu0 0.0
        %1431 = vmatprep.subr.mxu0 0.0
        %1432 = vmatpush1.msra.mxu0 0.0
        %1433 = vmatprep.subr.mxu0 0.0
        %1434 = vmatpush1.msra.mxu0 0.0
        %1435 = vmatprep.subr.mxu0 0.0
        %1436 = vmatpush1.msra.mxu0 0.0
        %1437 = vmatprep.subr.mxu0 0.0
        %1438 = vmatpush1.msra.mxu0 0.0
        %1439 = vmatprep.subr.mxu0 0.0
        %1440 = vmatpush1.msra.mxu0 0.0
        %1441 = vmatprep.subr.mxu0 0.0
        %1442 = vmatpush1.msra.mxu0 0.0
        %1443 = vmatprep.subr.mxu0 0.0
        %1444 = vmatpush1.msra.mxu0 0.0
        %1445 = vmatprep.mubr.f32.mxu0 0.0
        %1446 = vmatmul.mubr.f32.gmra.mrb[0].mxu0 %v1376
        %v1447 = vpop.f32.mrb[0].mxu0
        %v1448 = vadd.f32 0.0, %v1447
        %v1449 = vpop.f32.mrb[0].mxu0
        %1450 = vmatprep.mubr.f32.mxu0 0.0
        %1451 = vmatmul.mubr.f32.gmra.mrb[0].mxu0 %v1379
        %v1452 = vpop.f32.mrb[0].mxu0
        %v1453 = vadd.f32 0.0, %v1452
        %v1454 = vpop.f32.mrb[0].mxu0
        %1455 = vdwg.mxu0
        %v1456 = vadd.f32 %v1354, %v1448
        %v1457 = vadd.f32 %v1359, %v1453
        %v1458 = vld [vmem:[#allocation4 + $0x3] sm:$0xff]
        %v1459 = vld [vmem:[#allocation4 + $0xb] sm:$0xff]
        %s1460 = scalar_lea.vmem [#allocation15], 240
        %v1461 = vld [vmem:[%s1460] sm:$0xff]
        %v1462 = vld [vmem:[%s1460 + $0x8] sm:$0xff]
        %v1463 = vld [vmem:[%s1460 + $0x10] sm:$0xff]
        %v1464 = vld [vmem:[%s1460 + $0x18] sm:$0xff]
        %v1465 = vld [vmem:[%s1460 + $0x20] sm:$0xff]
        %v1466 = vld [vmem:[%s1460 + $0x28] sm:$0xff]
        %v1467 = vld [vmem:[%s1460 + $0x30] sm:$0xff]
        %v1468 = vld [vmem:[%s1460 + $0x38] sm:$0xff]
        %v1469 = vld [vmem:[%s1460 + $0x40] sm:$0xff]
        %v1470 = vld [vmem:[%s1460 + $0x48] sm:$0xff]
        %v1472 = vsel %vm1159, %v1458, 0
        %v1475 = vsel %vm1159, %v1459, 0
        %1477 = vmatprep.subr.mxu0 0.0
        %1478 = vmatpush1.msra.mxu0 %v1461
        %1479 = vmatprep.subr.mxu0 0.0
        %1480 = vmatpush1.msra.mxu0 %v1462
        %1481 = vmatprep.subr.mxu0 0.0
        %1482 = vmatpush1.msra.mxu0 %v1463
        %1483 = vmatprep.subr.mxu0 0.0
        %1484 = vmatpush1.msra.mxu0 %v1464
        %1485 = vmatprep.subr.mxu0 0.0
        %1486 = vmatpush1.msra.mxu0 %v1465
        %1487 = vmatprep.subr.mxu0 0.0
        %1488 = vmatpush1.msra.mxu0 %v1466
        %1489 = vmatprep.subr.mxu0 0.0
        %1490 = vmatpush1.msra.mxu0 %v1467
        %1491 = vmatprep.subr.mxu0 0.0
        %1492 = vmatpush1.msra.mxu0 %v1468
        %1493 = vmatprep.subr.mxu0 0.0
        %1494 = vmatpush1.msra.mxu0 %v1469
        %1495 = vmatprep.subr.mxu0 0.0
        %1496 = vmatpush1.msra.mxu0 %v1470
        %1497 = vmatprep.subr.mxu0 0.0
        %1498 = vmatpush1.msra.mxu0 0.0
        %1499 = vmatprep.subr.mxu0 0.0
        %1500 = vmatpush1.msra.mxu0 0.0
        %1501 = vmatprep.subr.mxu0 0.0
        %1502 = vmatpush1.msra.mxu0 0.0
        %1503 = vmatprep.subr.mxu0 0.0
        %1504 = vmatpush1.msra.mxu0 0.0
        %1505 = vmatprep.subr.mxu0 0.0
        %1506 = vmatpush1.msra.mxu0 0.0
        %1507 = vmatprep.subr.mxu0 0.0
        %1508 = vmatpush1.msra.mxu0 0.0
        %1509 = vmatprep.subr.mxu0 0.0
        %1510 = vmatpush1.msra.mxu0 0.0
        %1511 = vmatprep.subr.mxu0 0.0
        %1512 = vmatpush1.msra.mxu0 0.0
        %1513 = vmatprep.subr.mxu0 0.0
        %1514 = vmatpush1.msra.mxu0 0.0
        %1515 = vmatprep.subr.mxu0 0.0
        %1516 = vmatpush1.msra.mxu0 0.0
        %1517 = vmatprep.subr.mxu0 0.0
        %1518 = vmatpush1.msra.mxu0 0.0
        %1519 = vmatprep.subr.mxu0 0.0
        %1520 = vmatpush1.msra.mxu0 0.0
        %1521 = vmatprep.subr.mxu0 0.0
        %1522 = vmatpush1.msra.mxu0 0.0
        %1523 = vmatprep.subr.mxu0 0.0
        %1524 = vmatpush1.msra.mxu0 0.0
        %1525 = vmatprep.subr.mxu0 0.0
        %1526 = vmatpush1.msra.mxu0 0.0
        %1527 = vmatprep.subr.mxu0 0.0
        %1528 = vmatpush1.msra.mxu0 0.0
        %1529 = vmatprep.subr.mxu0 0.0
        %1530 = vmatpush1.msra.mxu0 0.0
        %1531 = vmatprep.subr.mxu0 0.0
        %1532 = vmatpush1.msra.mxu0 0.0
        %1533 = vmatprep.subr.mxu0 0.0
        %1534 = vmatpush1.msra.mxu0 0.0
        %1535 = vmatprep.subr.mxu0 0.0
        %1536 = vmatpush1.msra.mxu0 0.0
        %1537 = vmatprep.subr.mxu0 0.0
        %1538 = vmatpush1.msra.mxu0 0.0
        %1539 = vmatprep.subr.mxu0 0.0
        %1540 = vmatpush1.msra.mxu0 0.0
        %1541 = vmatprep.mubr.f32.mxu0 0.0
        %1542 = vmatmul.mubr.f32.gmra.mrb[0].mxu0 %v1472
        %v1543 = vpop.f32.mrb[0].mxu0
        %v1544 = vadd.f32 0.0, %v1543
        %v1545 = vpop.f32.mrb[0].mxu0
        %1546 = vmatprep.mubr.f32.mxu0 0.0
        %1547 = vmatmul.mubr.f32.gmra.mrb[0].mxu0 %v1475
        %v1548 = vpop.f32.mrb[0].mxu0
        %v1549 = vadd.f32 0.0, %v1548
        %v1550 = vpop.f32.mrb[0].mxu0
        %1551 = vdwg.mxu0
        %v1552 = vadd.f32 %v1456, %v1544
        %v1553 = vadd.f32 %v1457, %v1549
        %v1554 = vld [vmem:[#allocation4 + $0x4] sm:$0xff]
        %v1555 = vld [vmem:[#allocation4 + $0xc] sm:$0xff]
        %s1556 = scalar_lea.vmem [#allocation15], 320
        %v1557 = vld [vmem:[%s1556] sm:$0xff]
        %v1558 = vld [vmem:[%s1556 + $0x8] sm:$0xff]
        %v1559 = vld [vmem:[%s1556 + $0x10] sm:$0xff]
        %v1560 = vld [vmem:[%s1556 + $0x18] sm:$0xff]
        %v1561 = vld [vmem:[%s1556 + $0x20] sm:$0xff]
        %v1562 = vld [vmem:[%s1556 + $0x28] sm:$0xff]
        %v1563 = vld [vmem:[%s1556 + $0x30] sm:$0xff]
        %v1564 = vld [vmem:[%s1556 + $0x38] sm:$0xff]
        %v1565 = vld [vmem:[%s1556 + $0x40] sm:$0xff]
        %v1566 = vld [vmem:[%s1556 + $0x48] sm:$0xff]
        %v1568 = vsel %vm1159, %v1554, 0
        %v1571 = vsel %vm1159, %v1555, 0
        %1573 = vmatprep.subr.mxu0 0.0
        %1574 = vmatpush1.msra.mxu0 %v1557
        %1575 = vmatprep.subr.mxu0 0.0
        %1576 = vmatpush1.msra.mxu0 %v1558
        %1577 = vmatprep.subr.mxu0 0.0
        %1578 = vmatpush1.msra.mxu0 %v1559
        %1579 = vmatprep.subr.mxu0 0.0
        %1580 = vmatpush1.msra.mxu0 %v1560
        %1581 = vmatprep.subr.mxu0 0.0
        %1582 = vmatpush1.msra.mxu0 %v1561
        %1583 = vmatprep.subr.mxu0 0.0
        %1584 = vmatpush1.msra.mxu0 %v1562
        %1585 = vmatprep.subr.mxu0 0.0
        %1586 = vmatpush1.msra.mxu0 %v1563
        %1587 = vmatprep.subr.mxu0 0.0
        %1588 = vmatpush1.msra.mxu0 %v1564
        %1589 = vmatprep.subr.mxu0 0.0
        %1590 = vmatpush1.msra.mxu0 %v1565
        %1591 = vmatprep.subr.mxu0 0.0
        %1592 = vmatpush1.msra.mxu0 %v1566
        %1593 = vmatprep.subr.mxu0 0.0
        %1594 = vmatpush1.msra.mxu0 0.0
        %1595 = vmatprep.subr.mxu0 0.0
        %1596 = vmatpush1.msra.mxu0 0.0
        %1597 = vmatprep.subr.mxu0 0.0
        %1598 = vmatpush1.msra.mxu0 0.0
        %1599 = vmatprep.subr.mxu0 0.0
        %1600 = vmatpush1.msra.mxu0 0.0
        %1601 = vmatprep.subr.mxu0 0.0
        %1602 = vmatpush1.msra.mxu0 0.0
        %1603 = vmatprep.subr.mxu0 0.0
        %1604 = vmatpush1.msra.mxu0 0.0
        %1605 = vmatprep.subr.mxu0 0.0
        %1606 = vmatpush1.msra.mxu0 0.0
        %1607 = vmatprep.subr.mxu0 0.0
        %1608 = vmatpush1.msra.mxu0 0.0
        %1609 = vmatprep.subr.mxu0 0.0
        %1610 = vmatpush1.msra.mxu0 0.0
        %1611 = vmatprep.subr.mxu0 0.0
        %1612 = vmatpush1.msra.mxu0 0.0
        %1613 = vmatprep.subr.mxu0 0.0
        %1614 = vmatpush1.msra.mxu0 0.0
        %1615 = vmatprep.subr.mxu0 0.0
        %1616 = vmatpush1.msra.mxu0 0.0
        %1617 = vmatprep.subr.mxu0 0.0
        %1618 = vmatpush1.msra.mxu0 0.0
        %1619 = vmatprep.subr.mxu0 0.0
        %1620 = vmatpush1.msra.mxu0 0.0
        %1621 = vmatprep.subr.mxu0 0.0
        %1622 = vmatpush1.msra.mxu0 0.0
        %1623 = vmatprep.subr.mxu0 0.0
        %1624 = vmatpush1.msra.mxu0 0.0
        %1625 = vmatprep.subr.mxu0 0.0
        %1626 = vmatpush1.msra.mxu0 0.0
        %1627 = vmatprep.subr.mxu0 0.0
        %1628 = vmatpush1.msra.mxu0 0.0
        %1629 = vmatprep.subr.mxu0 0.0
        %1630 = vmatpush1.msra.mxu0 0.0
        %1631 = vmatprep.subr.mxu0 0.0
        %1632 = vmatpush1.msra.mxu0 0.0
        %1633 = vmatprep.subr.mxu0 0.0
        %1634 = vmatpush1.msra.mxu0 0.0
        %1635 = vmatprep.subr.mxu0 0.0
        %1636 = vmatpush1.msra.mxu0 0.0
        %1637 = vmatprep.mubr.f32.mxu0 0.0
        %1638 = vmatmul.mubr.f32.gmra.mrb[0].mxu0 %v1568
        %v1639 = vpop.f32.mrb[0].mxu0
        %v1640 = vadd.f32 0.0, %v1639
        %v1641 = vpop.f32.mrb[0].mxu0
        %1642 = vmatprep.mubr.f32.mxu0 0.0
        %1643 = vmatmul.mubr.f32.gmra.mrb[0].mxu0 %v1571
        %v1644 = vpop.f32.mrb[0].mxu0
        %v1645 = vadd.f32 0.0, %v1644
        %v1646 = vpop.f32.mrb[0].mxu0
        %1647 = vdwg.mxu0
        %v1648 = vadd.f32 %v1552, %v1640
        %v1649 = vadd.f32 %v1553, %v1645
        %v1650 = vld [vmem:[#allocation17] sm:$0x1]
        %v1652 = vlaneseq
        %v1653 = vshrl.u32 %v1652, 7
        %v1654 = vsub.s32 0, %v1653
        %v1655 = vrot.slane %v1650, %v1654
        %v1657 = vadd.f32 %v1648, %v1655
        %v1658 = vadd.f32 %v1649, %v1655
        %1659 = vst [vmem:[#allocation5] sm:$0xff] 0.0
        %vm1660 = vcmask 64512
        %1661 = vst.msk [vmem:[#allocation5 + $0x8] sm:$0xff] %vm1660, 0.0
        %1662 = vst [vmem:[#allocation5 + $0x10] sm:$0xff] 0.0
        %1663 = vst.msk [vmem:[#allocation5 + $0x18] sm:$0xff] %vm1660, 0.0
        %1664 = vst [vmem:[#allocation5 + $0x20] sm:$0xff] 0.0
        %1665 = vst.msk [vmem:[#allocation5 + $0x28] sm:$0xff] %vm1660, 0.0
        %1666 = vst [vmem:[#allocation5 + $0x30] sm:$0xff] 0.0
        %1667 = vst.msk [vmem:[#allocation5 + $0x38] sm:$0xff] %vm1660, 0.0
        %1668 = vst [vmem:[#allocation5 + $0x40] sm:$0x3] 0.0
        %vm1669 = vcmask 58368
        %1670 = vst.msk [vmem:[#allocation5 + $0x48] sm:$0x3] %vm1669, 0.0
        %vm1673 = vcmask 1040384
        %v1674 = vrot.slane %v1657, 7
        %v1675 = vrot.slane %v1658, 7
        %v1676 = vsel %vm1673, %v1674, %v1675
        %1677 = vrot.lane.b32.xlu0 %v1674, 36
        %v1678 = vpop.permute.xlu0 %1677
        %1679 = vrot.lane.b32.xlu0 %v1676, 36
        %v1680 = vpop.permute.xlu0 %1679
        %1681 = vrot.lane.b32.xlu0 %v1675, 36
        %v1682 = vpop.permute.xlu0 %1681
        %vm1686 = vcmask 818465
        %1687 = vst.msk [vmem:[#allocation5 + $0x10] sm:$0xfe] %vm1686, %v1678
        %vm1688 = vcmask 818464
        %1689 = vst.msk [vmem:[#allocation5 + $0x20] sm:$0xff] %vm1688, %v1680
        %vm1690 = vcmask 811296
        %1691 = vst.msk [vmem:[#allocation5 + $0x30] sm:$0x1] %vm1690, %v1682
        %v1692 = vld [vmem:[#allocation5] sm:$0xff]
        %v1693 = vld [vmem:[#allocation5 + $0x8] sm:$0xff]
        %v1694 = vld [vmem:[#allocation5 + $0x10] sm:$0xff]
        %v1695 = vld [vmem:[#allocation5 + $0x18] sm:$0xff]
        %v1696 = vld [vmem:[#allocation18] sm:$0xff]
        %v1697 = vld [vmem:[#allocation18 + $0x8] sm:$0xff]
        %v1698 = vld [vmem:[#allocation18 + $0x10] sm:$0xff]
        %v1699 = vld [vmem:[#allocation18 + $0x18] sm:$0xff]
        %v1700 = vld [vmem:[#allocation18 + $0x20] sm:$0xff]
        %v1701 = vld [vmem:[#allocation18 + $0x28] sm:$0xff]
        %v1702 = vld [vmem:[#allocation18 + $0x30] sm:$0xff]
        %v1703 = vld [vmem:[#allocation18 + $0x38] sm:$0xff]
        %v1704 = vld [vmem:[#allocation18 + $0x40] sm:$0xff]
        %v1705 = vld [vmem:[#allocation18 + $0x48] sm:$0xff]
        %v1706 = vld [vmem:[#allocation18 + $0x50] sm:$0xff]
        %v1707 = vld [vmem:[#allocation18 + $0x58] sm:$0xff]
        %v1708 = vld [vmem:[#allocation18 + $0x60] sm:$0xff]
        %v1709 = vld [vmem:[#allocation18 + $0x68] sm:$0xff]
        %v1710 = vld [vmem:[#allocation18 + $0x70] sm:$0xff]
        %v1711 = vld [vmem:[#allocation18 + $0x78] sm:$0xff]
        %v1712 = vld [vmem:[#allocation18 + $0x80] sm:$0xff]
        %v1713 = vld [vmem:[#allocation5] sm:$0xf8]
        %v1714 = vld [vmem:[#allocation5 + $0x8] sm:$0xf8]
        %v1715 = vld [vmem:[#allocation5 + $0x20] sm:$0x7]
        %v1716 = vld [vmem:[#allocation5 + $0x28] sm:$0x7]
        %s1717 = scalar_lea.vmem [#allocation18], 136
        %v1718 = vld [vmem:[%s1717] sm:$0xff]
        %v1719 = vld [vmem:[%s1717 + $0x8] sm:$0xff]
        %v1720 = vld [vmem:[%s1717 + $0x10] sm:$0xff]
        %v1721 = vld [vmem:[%s1717 + $0x18] sm:$0xff]
        %v1722 = vld [vmem:[%s1717 + $0x20] sm:$0xff]
        %v1723 = vld [vmem:[%s1717 + $0x28] sm:$0xff]
        %v1724 = vld [vmem:[%s1717 + $0x30] sm:$0xff]
        %v1725 = vld [vmem:[%s1717 + $0x38] sm:$0xff]
        %v1726 = vld [vmem:[%s1717 + $0x40] sm:$0xff]
        %v1727 = vld [vmem:[%s1717 + $0x48] sm:$0xff]
        %v1728 = vld [vmem:[%s1717 + $0x50] sm:$0xff]
        %v1729 = vld [vmem:[%s1717 + $0x58] sm:$0xff]
        %v1730 = vld [vmem:[%s1717 + $0x60] sm:$0xff]
        %v1731 = vld [vmem:[%s1717 + $0x68] sm:$0xff]
        %v1732 = vld [vmem:[%s1717 + $0x70] sm:$0xff]
        %v1733 = vld [vmem:[%s1717 + $0x78] sm:$0xff]
        %v1734 = vld [vmem:[%s1717 + $0x80] sm:$0xff]
        %vm1741 = vcmask 1044480
        %v1742 = vrot.slane %v1713, 3
        %v1743 = vrot.slane %v1694, 3
        %v1744 = vsel %vm1741, %v1742, %v1743
        %v1745 = vrot.slane %v1714, 3
        %v1746 = vrot.slane %v1695, 3
        %v1747 = vsel %vm1741, %v1745, %v1746
        %v1748 = vrot.slane %v1715, 3
        %v1749 = vsel %vm1741, %v1743, %v1748
        %v1750 = vrot.slane %v1716, 3
        %v1751 = vsel %vm1741, %v1746, %v1750
        %v1754 = vsel %vm1660, %v1747, 0
        %v1756 = vsel %vm1660, %v1751, 0
        %1758 = vmatprep.subr.mxu0 0.0
        %1759 = vmatpush1.msra.mxu0 %v1718
        %1760 = vmatprep.subr.mxu0 0.0
        %1761 = vmatpush1.msra.mxu0 %v1719
        %1762 = vmatprep.subr.mxu0 0.0
        %1763 = vmatpush1.msra.mxu0 %v1720
        %1764 = vmatprep.subr.mxu0 0.0
        %1765 = vmatpush1.msra.mxu0 %v1721
        %1766 = vmatprep.subr.mxu0 0.0
        %1767 = vmatpush1.msra.mxu0 %v1722
        %1768 = vmatprep.subr.mxu0 0.0
        %1769 = vmatpush1.msra.mxu0 %v1723
        %1770 = vmatprep.subr.mxu0 0.0
        %1771 = vmatpush1.msra.mxu0 %v1724
        %1772 = vmatprep.subr.mxu0 0.0
        %1773 = vmatpush1.msra.mxu0 %v1725
        %1774 = vmatprep.subr.mxu0 0.0
        %1775 = vmatpush1.msra.mxu0 %v1726
        %1776 = vmatprep.subr.mxu0 0.0
        %1777 = vmatpush1.msra.mxu0 %v1727
        %1778 = vmatprep.subr.mxu0 0.0
        %1779 = vmatpush1.msra.mxu0 %v1728
        %1780 = vmatprep.subr.mxu0 0.0
        %1781 = vmatpush1.msra.mxu0 %v1729
        %1782 = vmatprep.subr.mxu0 0.0
        %1783 = vmatpush1.msra.mxu0 %v1730
        %1784 = vmatprep.subr.mxu0 0.0
        %1785 = vmatpush1.msra.mxu0 %v1731
        %1786 = vmatprep.subr.mxu0 0.0
        %1787 = vmatpush1.msra.mxu0 %v1732
        %1788 = vmatprep.subr.mxu0 0.0
        %1789 = vmatpush1.msra.mxu0 %v1733
        %1790 = vmatprep.subr.mxu0 0.0
        %1791 = vmatpush1.msra.mxu0 %v1734
        %1792 = vmatprep.subr.mxu0 0.0
        %1793 = vmatpush1.msra.mxu0 0.0
        %1794 = vmatprep.subr.mxu0 0.0
        %1795 = vmatpush1.msra.mxu0 0.0
        %1796 = vmatprep.subr.mxu0 0.0
        %1797 = vmatpush1.msra.mxu0 0.0
        %1798 = vmatprep.subr.mxu0 0.0
        %1799 = vmatpush1.msra.mxu0 0.0
        %1800 = vmatprep.subr.mxu0 0.0
        %1801 = vmatpush1.msra.mxu0 0.0
        %1802 = vmatprep.subr.mxu0 0.0
        %1803 = vmatpush1.msra.mxu0 0.0
        %1804 = vmatprep.subr.mxu0 0.0
        %1805 = vmatpush1.msra.mxu0 0.0
        %1806 = vmatprep.subr.mxu0 0.0
        %1807 = vmatpush1.msra.mxu0 0.0
        %1808 = vmatprep.subr.mxu0 0.0
        %1809 = vmatpush1.msra.mxu0 0.0
        %1810 = vmatprep.subr.mxu0 0.0
        %1811 = vmatpush1.msra.mxu0 0.0
        %1812 = vmatprep.subr.mxu0 0.0
        %1813 = vmatpush1.msra.mxu0 0.0
        %1814 = vmatprep.subr.mxu0 0.0
        %1815 = vmatpush1.msra.mxu0 0.0
        %1816 = vmatprep.subr.mxu0 0.0
        %1817 = vmatpush1.msra.mxu0 0.0
        %1818 = vmatprep.subr.mxu0 0.0
        %1819 = vmatpush1.msra.mxu0 0.0
        %1820 = vmatprep.subr.mxu0 0.0
        %1821 = vmatpush1.msra.mxu0 0.0
        %1822 = vmatprep.mubr.f32.mxu0 %v1754
        %1823 = vmatmul.mubr.f32.gmra.mrb[0].mxu0 %v1744
        %v1824 = vpop.f32.mrb[0].mxu0
        %v1825 = vadd.f32 0.0, %v1824
        %v1826 = vpop.f32.mrb[0].mxu0
        %1827 = vmatprep.mubr.f32.mxu0 %v1756
        %1828 = vmatmul.mubr.f32.gmra.mrb[0].mxu0 %v1749
        %v1829 = vpop.f32.mrb[0].mxu0
        %v1830 = vadd.f32 0.0, %v1829
        %v1831 = vpop.f32.mrb[0].mxu0
        %1832 = vdwg.mxu0
        %v1834 = vsel %vm1660, %v1693, 0
        %v1836 = vsel %vm1660, %v1695, 0
        %1838 = vmatprep.subr.mxu0 0.0
        %1839 = vmatpush1.msra.mxu0 %v1696
        %1840 = vmatprep.subr.mxu0 0.0
        %1841 = vmatpush1.msra.mxu0 %v1697
        %1842 = vmatprep.subr.mxu0 0.0
        %1843 = vmatpush1.msra.mxu0 %v1698
        %1844 = vmatprep.subr.mxu0 0.0
        %1845 = vmatpush1.msra.mxu0 %v1699
        %1846 = vmatprep.subr.mxu0 0.0
        %1847 = vmatpush1.msra.mxu0 %v1700
        %1848 = vmatprep.subr.mxu0 0.0
        %1849 = vmatpush1.msra.mxu0 %v1701
        %1850 = vmatprep.subr.mxu0 0.0
        %1851 = vmatpush1.msra.mxu0 %v1702
        %1852 = vmatprep.subr.mxu0 0.0
        %1853 = vmatpush1.msra.mxu0 %v1703
        %1854 = vmatprep.subr.mxu0 0.0
        %1855 = vmatpush1.msra.mxu0 %v1704
        %1856 = vmatprep.subr.mxu0 0.0
        %1857 = vmatpush1.msra.mxu0 %v1705
        %1858 = vmatprep.subr.mxu0 0.0
        %1859 = vmatpush1.msra.mxu0 %v1706
        %1860 = vmatprep.subr.mxu0 0.0
        %1861 = vmatpush1.msra.mxu0 %v1707
        %1862 = vmatprep.subr.mxu0 0.0
        %1863 = vmatpush1.msra.mxu0 %v1708
        %1864 = vmatprep.subr.mxu0 0.0
        %1865 = vmatpush1.msra.mxu0 %v1709
        %1866 = vmatprep.subr.mxu0 0.0
        %1867 = vmatpush1.msra.mxu0 %v1710
        %1868 = vmatprep.subr.mxu0 0.0
        %1869 = vmatpush1.msra.mxu0 %v1711
        %1870 = vmatprep.subr.mxu0 0.0
        %1871 = vmatpush1.msra.mxu0 %v1712
        %1872 = vmatprep.subr.mxu0 0.0
        %1873 = vmatpush1.msra.mxu0 0.0
        %1874 = vmatprep.subr.mxu0 0.0
        %1875 = vmatpush1.msra.mxu0 0.0
        %1876 = vmatprep.subr.mxu0 0.0
        %1877 = vmatpush1.msra.mxu0 0.0
        %1878 = vmatprep.subr.mxu0 0.0
        %1879 = vmatpush1.msra.mxu0 0.0
        %1880 = vmatprep.subr.mxu0 0.0
        %1881 = vmatpush1.msra.mxu0 0.0
        %1882 = vmatprep.subr.mxu0 0.0
        %1883 = vmatpush1.msra.mxu0 0.0
        %1884 = vmatprep.subr.mxu0 0.0
        %1885 = vmatpush1.msra.mxu0 0.0
        %1886 = vmatprep.subr.mxu0 0.0
        %1887 = vmatpush1.msra.mxu0 0.0
        %1888 = vmatprep.subr.mxu0 0.0
        %1889 = vmatpush1.msra.mxu0 0.0
        %1890 = vmatprep.subr.mxu0 0.0
        %1891 = vmatpush1.msra.mxu0 0.0
        %1892 = vmatprep.subr.mxu0 0.0
        %1893 = vmatpush1.msra.mxu0 0.0
        %1894 = vmatprep.subr.mxu0 0.0
        %1895 = vmatpush1.msra.mxu0 0.0
        %1896 = vmatprep.subr.mxu0 0.0
        %1897 = vmatpush1.msra.mxu0 0.0
        %1898 = vmatprep.subr.mxu0 0.0
        %1899 = vmatpush1.msra.mxu0 0.0
        %1900 = vmatprep.subr.mxu0 0.0
        %1901 = vmatpush1.msra.mxu0 0.0
        %1902 = vmatprep.mubr.f32.mxu0 %v1834
        %1903 = vmatmul.mubr.f32.gmra.mrb[0].mxu0 %v1692
        %v1904 = vpop.f32.mrb[0].mxu0
        %v1905 = vadd.f32 %v1825, %v1904
        %v1906 = vpop.f32.mrb[0].mxu0
        %1907 = vmatprep.mubr.f32.mxu0 %v1836
        %1908 = vmatmul.mubr.f32.gmra.mrb[0].mxu0 %v1694
        %v1909 = vpop.f32.mrb[0].mxu0
        %v1910 = vadd.f32 %v1830, %v1909
        %v1911 = vpop.f32.mrb[0].mxu0
        %1912 = vdwg.mxu0
        %v1913 = vld [vmem:[#allocation5] sm:$0xc0]
        %v1914 = vld [vmem:[#allocation5 + $0x8] sm:$0xc0]
        %v1915 = vld [vmem:[#allocation5 + $0x20] sm:$0x3f]
        %v1916 = vld [vmem:[#allocation5 + $0x28] sm:$0x3f]
        %s1917 = scalar_lea.vmem [#allocation18], 272
        %v1918 = vld [vmem:[%s1917] sm:$0xff]
        %v1919 = vld [vmem:[%s1917 + $0x8] sm:$0xff]
        %v1920 = vld [vmem:[%s1917 + $0x10] sm:$0xff]
        %v1921 = vld [vmem:[%s1917 + $0x18] sm:$0xff]
        %v1922 = vld [vmem:[%s1917 + $0x20] sm:$0xff]
        %v1923 = vld [vmem:[%s1917 + $0x28] sm:$0xff]
        %v1924 = vld [vmem:[%s1917 + $0x30] sm:$0xff]
        %v1925 = vld [vmem:[%s1917 + $0x38] sm:$0xff]
        %v1926 = vld [vmem:[%s1917 + $0x40] sm:$0xff]
        %v1927 = vld [vmem:[%s1917 + $0x48] sm:$0xff]
        %v1928 = vld [vmem:[%s1917 + $0x50] sm:$0xff]
        %v1929 = vld [vmem:[%s1917 + $0x58] sm:$0xff]
        %v1930 = vld [vmem:[%s1917 + $0x60] sm:$0xff]
        %v1931 = vld [vmem:[%s1917 + $0x68] sm:$0xff]
        %v1932 = vld [vmem:[%s1917 + $0x70] sm:$0xff]
        %v1933 = vld [vmem:[%s1917 + $0x78] sm:$0xff]
        %v1934 = vld [vmem:[%s1917 + $0x80] sm:$0xff]
        %vm1939 = vcmask 1041408
        %v1940 = vrot.slane %v1913, 6
        %v1941 = vrot.slane %v1694, 6
        %v1942 = vsel %vm1939, %v1940, %v1941
        %v1943 = vrot.slane %v1914, 6
        %v1944 = vrot.slane %v1695, 6
        %v1945 = vsel %vm1939, %v1943, %v1944
        %v1946 = vrot.slane %v1915, 6
        %v1947 = vsel %vm1939, %v1941, %v1946
        %v1948 = vrot.slane %v1916, 6
        %v1949 = vsel %vm1939, %v1944, %v1948
        %v1952 = vsel %vm1660, %v1945, 0
        %v1954 = vsel %vm1660, %v1949, 0
        %1956 = vmatprep.subr.mxu0 0.0
        %1957 = vmatpush1.msra.mxu0 %v1918
        %1958 = vmatprep.subr.mxu0 0.0
        %1959 = vmatpush1.msra.mxu0 %v1919
        %1960 = vmatprep.subr.mxu0 0.0
        %1961 = vmatpush1.msra.mxu0 %v1920
        %1962 = vmatprep.subr.mxu0 0.0
        %1963 = vmatpush1.msra.mxu0 %v1921
        %1964 = vmatprep.subr.mxu0 0.0
        %1965 = vmatpush1.msra.mxu0 %v1922
        %1966 = vmatprep.subr.mxu0 0.0
        %1967 = vmatpush1.msra.mxu0 %v1923
        %1968 = vmatprep.subr.mxu0 0.0
        %1969 = vmatpush1.msra.mxu0 %v1924
        %1970 = vmatprep.subr.mxu0 0.0
        %1971 = vmatpush1.msra.mxu0 %v1925
        %1972 = vmatprep.subr.mxu0 0.0
        %1973 = vmatpush1.msra.mxu0 %v1926
        %1974 = vmatprep.subr.mxu0 0.0
        %1975 = vmatpush1.msra.mxu0 %v1927
        %1976 = vmatprep.subr.mxu0 0.0
        %1977 = vmatpush1.msra.mxu0 %v1928
        %1978 = vmatprep.subr.mxu0 0.0
        %1979 = vmatpush1.msra.mxu0 %v1929
        %1980 = vmatprep.subr.mxu0 0.0
        %1981 = vmatpush1.msra.mxu0 %v1930
        %1982 = vmatprep.subr.mxu0 0.0
        %1983 = vmatpush1.msra.mxu0 %v1931
        %1984 = vmatprep.subr.mxu0 0.0
        %1985 = vmatpush1.msra.mxu0 %v1932
        %1986 = vmatprep.subr.mxu0 0.0
        %1987 = vmatpush1.msra.mxu0 %v1933
        %1988 = vmatprep.subr.mxu0 0.0
        %1989 = vmatpush1.msra.mxu0 %v1934
        %1990 = vmatprep.subr.mxu0 0.0
        %1991 = vmatpush1.msra.mxu0 0.0
        %1992 = vmatprep.subr.mxu0 0.0
        %1993 = vmatpush1.msra.mxu0 0.0
        %1994 = vmatprep.subr.mxu0 0.0
        %1995 = vmatpush1.msra.mxu0 0.0
        %1996 = vmatprep.subr.mxu0 0.0
        %1997 = vmatpush1.msra.mxu0 0.0
        %1998 = vmatprep.subr.mxu0 0.0
        %1999 = vmatpush1.msra.mxu0 0.0
        %2000 = vmatprep.subr.mxu0 0.0
        %2001 = vmatpush1.msra.mxu0 0.0
        %2002 = vmatprep.subr.mxu0 0.0
        %2003 = vmatpush1.msra.mxu0 0.0
        %2004 = vmatprep.subr.mxu0 0.0
        %2005 = vmatpush1.msra.mxu0 0.0
        %2006 = vmatprep.subr.mxu0 0.0
        %2007 = vmatpush1.msra.mxu0 0.0
        %2008 = vmatprep.subr.mxu0 0.0
        %2009 = vmatpush1.msra.mxu0 0.0
        %2010 = vmatprep.subr.mxu0 0.0
        %2011 = vmatpush1.msra.mxu0 0.0
        %2012 = vmatprep.subr.mxu0 0.0
        %2013 = vmatpush1.msra.mxu0 0.0
        %2014 = vmatprep.subr.mxu0 0.0
        %2015 = vmatpush1.msra.mxu0 0.0
        %2016 = vmatprep.subr.mxu0 0.0
        %2017 = vmatpush1.msra.mxu0 0.0
        %2018 = vmatprep.subr.mxu0 0.0
        %2019 = vmatpush1.msra.mxu0 0.0
        %2020 = vmatprep.mubr.f32.mxu0 %v1952
        %2021 = vmatmul.mubr.f32.gmra.mrb[0].mxu0 %v1942
        %v2022 = vpop.f32.mrb[0].mxu0
        %v2023 = vadd.f32 0.0, %v2022
        %v2024 = vpop.f32.mrb[0].mxu0
        %2025 = vmatprep.mubr.f32.mxu0 %v1954
        %2026 = vmatmul.mubr.f32.gmra.mrb[0].mxu0 %v1947
        %v2027 = vpop.f32.mrb[0].mxu0
        %v2028 = vadd.f32 0.0, %v2027
        %v2029 = vpop.f32.mrb[0].mxu0
        %2030 = vdwg.mxu0
        %v2031 = vadd.f32 %v1905, %v2023
        %v2032 = vadd.f32 %v1910, %v2028
        %v2033 = vld [vmem:[#allocation5 + $0x10] sm:$0xfe]
        %v2034 = vld [vmem:[#allocation5 + $0x18] sm:$0xfe]
        %v2035 = vld [vmem:[#allocation5 + $0x20] sm:$0xff]
        %v2036 = vld [vmem:[#allocation5 + $0x28] sm:$0xff]
        %v2037 = vld [vmem:[#allocation5 + $0x30] sm:$0x1]
        %v2038 = vld [vmem:[#allocation5 + $0x38] sm:$0x1]
        %s2039 = scalar_lea.vmem [#allocation18], 408
        %v2040 = vld [vmem:[%s2039] sm:$0xff]
        %v2041 = vld [vmem:[%s2039 + $0x8] sm:$0xff]
        %v2042 = vld [vmem:[%s2039 + $0x10] sm:$0xff]
        %v2043 = vld [vmem:[%s2039 + $0x18] sm:$0xff]
        %v2044 = vld [vmem:[%s2039 + $0x20] sm:$0xff]
        %v2045 = vld [vmem:[%s2039 + $0x28] sm:$0xff]
        %v2046 = vld [vmem:[%s2039 + $0x30] sm:$0xff]
        %v2047 = vld [vmem:[%s2039 + $0x38] sm:$0xff]
        %v2048 = vld [vmem:[%s2039 + $0x40] sm:$0xff]
        %v2049 = vld [vmem:[%s2039 + $0x48] sm:$0xff]
        %v2050 = vld [vmem:[%s2039 + $0x50] sm:$0xff]
        %v2051 = vld [vmem:[%s2039 + $0x58] sm:$0xff]
        %v2052 = vld [vmem:[%s2039 + $0x60] sm:$0xff]
        %v2053 = vld [vmem:[%s2039 + $0x68] sm:$0xff]
        %v2054 = vld [vmem:[%s2039 + $0x70] sm:$0xff]
        %v2055 = vld [vmem:[%s2039 + $0x78] sm:$0xff]
        %v2056 = vld [vmem:[%s2039 + $0x80] sm:$0xff]
        %vm2063 = vcmask 1046528
        %v2064 = vrot.slane %v2033, 1
        %v2065 = vrot.slane %v2035, 1
        %v2066 = vsel %vm2063, %v2064, %v2065
        %v2067 = vrot.slane %v2034, 1
        %v2068 = vrot.slane %v2036, 1
        %v2069 = vsel %vm2063, %v2067, %v2068
        %v2070 = vrot.slane %v2037, 1
        %v2071 = vsel %vm2063, %v2065, %v2070
        %v2072 = vrot.slane %v2038, 1
        %v2073 = vsel %vm2063, %v2068, %v2072
        %v2076 = vsel %vm1660, %v2069, 0
        %v2078 = vsel %vm1660, %v2073, 0
        %2080 = vmatprep.subr.mxu0 0.0
        %2081 = vmatpush1.msra.mxu0 %v2040
        %2082 = vmatprep.subr.mxu0 0.0
        %2083 = vmatpush1.msra.mxu0 %v2041
        %2084 = vmatprep.subr.mxu0 0.0
        %2085 = vmatpush1.msra.mxu0 %v2042
        %2086 = vmatprep.subr.mxu0 0.0
        %2087 = vmatpush1.msra.mxu0 %v2043
        %2088 = vmatprep.subr.mxu0 0.0
        %2089 = vmatpush1.msra.mxu0 %v2044
        %2090 = vmatprep.subr.mxu0 0.0
        %2091 = vmatpush1.msra.mxu0 %v2045
        %2092 = vmatprep.subr.mxu0 0.0
        %2093 = vmatpush1.msra.mxu0 %v2046
        %2094 = vmatprep.subr.mxu0 0.0
        %2095 = vmatpush1.msra.mxu0 %v2047
        %2096 = vmatprep.subr.mxu0 0.0
        %2097 = vmatpush1.msra.mxu0 %v2048
        %2098 = vmatprep.subr.mxu0 0.0
        %2099 = vmatpush1.msra.mxu0 %v2049
        %2100 = vmatprep.subr.mxu0 0.0
        %2101 = vmatpush1.msra.mxu0 %v2050
        %2102 = vmatprep.subr.mxu0 0.0
        %2103 = vmatpush1.msra.mxu0 %v2051
        %2104 = vmatprep.subr.mxu0 0.0
        %2105 = vmatpush1.msra.mxu0 %v2052
        %2106 = vmatprep.subr.mxu0 0.0
        %2107 = vmatpush1.msra.mxu0 %v2053
        %2108 = vmatprep.subr.mxu0 0.0
        %2109 = vmatpush1.msra.mxu0 %v2054
        %2110 = vmatprep.subr.mxu0 0.0
        %2111 = vmatpush1.msra.mxu0 %v2055
        %2112 = vmatprep.subr.mxu0 0.0
        %2113 = vmatpush1.msra.mxu0 %v2056
        %2114 = vmatprep.subr.mxu0 0.0
        %2115 = vmatpush1.msra.mxu0 0.0
        %2116 = vmatprep.subr.mxu0 0.0
        %2117 = vmatpush1.msra.mxu0 0.0
        %2118 = vmatprep.subr.mxu0 0.0
        %2119 = vmatpush1.msra.mxu0 0.0
        %2120 = vmatprep.subr.mxu0 0.0
        %2121 = vmatpush1.msra.mxu0 0.0
        %2122 = vmatprep.subr.mxu0 0.0
        %2123 = vmatpush1.msra.mxu0 0.0
        %2124 = vmatprep.subr.mxu0 0.0
        %2125 = vmatpush1.msra.mxu0 0.0
        %2126 = vmatprep.subr.mxu0 0.0
        %2127 = vmatpush1.msra.mxu0 0.0
        %2128 = vmatprep.subr.mxu0 0.0
        %2129 = vmatpush1.msra.mxu0 0.0
        %2130 = vmatprep.subr.mxu0 0.0
        %2131 = vmatpush1.msra.mxu0 0.0
        %2132 = vmatprep.subr.mxu0 0.0
        %2133 = vmatpush1.msra.mxu0 0.0
        %2134 = vmatprep.subr.mxu0 0.0
        %2135 = vmatpush1.msra.mxu0 0.0
        %2136 = vmatprep.subr.mxu0 0.0
        %2137 = vmatpush1.msra.mxu0 0.0
        %2138 = vmatprep.subr.mxu0 0.0
        %2139 = vmatpush1.msra.mxu0 0.0
        %2140 = vmatprep.subr.mxu0 0.0
        %2141 = vmatpush1.msra.mxu0 0.0
        %2142 = vmatprep.subr.mxu0 0.0
        %2143 = vmatpush1.msra.mxu0 0.0
        %2144 = vmatprep.mubr.f32.mxu0 %v2076
        %2145 = vmatmul.mubr.f32.gmra.mrb[0].mxu0 %v2066
        %v2146 = vpop.f32.mrb[0].mxu0
        %v2147 = vadd.f32 0.0, %v2146
        %v2148 = vpop.f32.mrb[0].mxu0
        %2149 = vmatprep.mubr.f32.mxu0 %v2078
        %2150 = vmatmul.mubr.f32.gmra.mrb[0].mxu0 %v2071
        %v2151 = vpop.f32.mrb[0].mxu0
        %v2152 = vadd.f32 0.0, %v2151
        %v2153 = vpop.f32.mrb[0].mxu0
        %2154 = vdwg.mxu0
        %v2155 = vadd.f32 %v2031, %v2147
        %v2156 = vadd.f32 %v2032, %v2152
        %v2157 = vld [vmem:[#allocation5 + $0x10] sm:$0xf0]
        %v2158 = vld [vmem:[#allocation5 + $0x18] sm:$0xf0]
        %v2159 = vld [vmem:[#allocation5 + $0x30] sm:$0xf]
        %v2160 = vld [vmem:[#allocation5 + $0x38] sm:$0xf]
        %s2161 = scalar_lea.vmem [#allocation18], 544
        %v2162 = vld [vmem:[%s2161] sm:$0xff]
        %v2163 = vld [vmem:[%s2161 + $0x8] sm:$0xff]
        %v2164 = vld [vmem:[%s2161 + $0x10] sm:$0xff]
        %v2165 = vld [vmem:[%s2161 + $0x18] sm:$0xff]
        %v2166 = vld [vmem:[%s2161 + $0x20] sm:$0xff]
        %v2167 = vld [vmem:[%s2161 + $0x28] sm:$0xff]
        %v2168 = vld [vmem:[%s2161 + $0x30] sm:$0xff]
        %v2169 = vld [vmem:[%s2161 + $0x38] sm:$0xff]
        %v2170 = vld [vmem:[%s2161 + $0x40] sm:$0xff]
        %v2171 = vld [vmem:[%s2161 + $0x48] sm:$0xff]
        %v2172 = vld [vmem:[%s2161 + $0x50] sm:$0xff]
        %v2173 = vld [vmem:[%s2161 + $0x58] sm:$0xff]
        %v2174 = vld [vmem:[%s2161 + $0x60] sm:$0xff]
        %v2175 = vld [vmem:[%s2161 + $0x68] sm:$0xff]
        %v2176 = vld [vmem:[%s2161 + $0x70] sm:$0xff]
        %v2177 = vld [vmem:[%s2161 + $0x78] sm:$0xff]
        %v2178 = vld [vmem:[%s2161 + $0x80] sm:$0xff]
        %vm2183 = vcmask 1043456
        %v2184 = vrot.slane %v2157, 4
        %v2185 = vrot.slane %v2035, 4
        %v2186 = vsel %vm2183, %v2184, %v2185
        %v2187 = vrot.slane %v2158, 4
        %v2188 = vrot.slane %v2036, 4
        %v2189 = vsel %vm2183, %v2187, %v2188
        %v2190 = vrot.slane %v2159, 4
        %v2191 = vsel %vm2183, %v2185, %v2190
        %v2192 = vrot.slane %v2160, 4
        %v2193 = vsel %vm2183, %v2188, %v2192
        %v2196 = vsel %vm1660, %v2189, 0
        %v2198 = vsel %vm1660, %v2193, 0
        %2200 = vmatprep.subr.mxu0 0.0
        %2201 = vmatpush1.msra.mxu0 %v2162
        %2202 = vmatprep.subr.mxu0 0.0
        %2203 = vmatpush1.msra.mxu0 %v2163
        %2204 = vmatprep.subr.mxu0 0.0
        %2205 = vmatpush1.msra.mxu0 %v2164
        %2206 = vmatprep.subr.mxu0 0.0
        %2207 = vmatpush1.msra.mxu0 %v2165
        %2208 = vmatprep.subr.mxu0 0.0
        %2209 = vmatpush1.msra.mxu0 %v2166
        %2210 = vmatprep.subr.mxu0 0.0
        %2211 = vmatpush1.msra.mxu0 %v2167
        %2212 = vmatprep.subr.mxu0 0.0
        %2213 = vmatpush1.msra.mxu0 %v2168
        %2214 = vmatprep.subr.mxu0 0.0
        %2215 = vmatpush1.msra.mxu0 %v2169
        %2216 = vmatprep.subr.mxu0 0.0
        %2217 = vmatpush1.msra.mxu0 %v2170
        %2218 = vmatprep.subr.mxu0 0.0
        %2219 = vmatpush1.msra.mxu0 %v2171
        %2220 = vmatprep.subr.mxu0 0.0
        %2221 = vmatpush1.msra.mxu0 %v2172
        %2222 = vmatprep.subr.mxu0 0.0
        %2223 = vmatpush1.msra.mxu0 %v2173
        %2224 = vmatprep.subr.mxu0 0.0
        %2225 = vmatpush1.msra.mxu0 %v2174
        %2226 = vmatprep.subr.mxu0 0.0
        %2227 = vmatpush1.msra.mxu0 %v2175
        %2228 = vmatprep.subr.mxu0 0.0
        %2229 = vmatpush1.msra.mxu0 %v2176
        %2230 = vmatprep.subr.mxu0 0.0
        %2231 = vmatpush1.msra.mxu0 %v2177
        %2232 = vmatprep.subr.mxu0 0.0
        %2233 = vmatpush1.msra.mxu0 %v2178
        %2234 = vmatprep.subr.mxu0 0.0
        %2235 = vmatpush1.msra.mxu0 0.0
        %2236 = vmatprep.subr.mxu0 0.0
        %2237 = vmatpush1.msra.mxu0 0.0
        %2238 = vmatprep.subr.mxu0 0.0
        %2239 = vmatpush1.msra.mxu0 0.0
        %2240 = vmatprep.subr.mxu0 0.0
        %2241 = vmatpush1.msra.mxu0 0.0
        %2242 = vmatprep.subr.mxu0 0.0
        %2243 = vmatpush1.msra.mxu0 0.0
        %2244 = vmatprep.subr.mxu0 0.0
        %2245 = vmatpush1.msra.mxu0 0.0
        %2246 = vmatprep.subr.mxu0 0.0
        %2247 = vmatpush1.msra.mxu0 0.0
        %2248 = vmatprep.subr.mxu0 0.0
        %2249 = vmatpush1.msra.mxu0 0.0
        %2250 = vmatprep.subr.mxu0 0.0
        %2251 = vmatpush1.msra.mxu0 0.0
        %2252 = vmatprep.subr.mxu0 0.0
        %2253 = vmatpush1.msra.mxu0 0.0
        %2254 = vmatprep.subr.mxu0 0.0
        %2255 = vmatpush1.msra.mxu0 0.0
        %2256 = vmatprep.subr.mxu0 0.0
        %2257 = vmatpush1.msra.mxu0 0.0
        %2258 = vmatprep.subr.mxu0 0.0
        %2259 = vmatpush1.msra.mxu0 0.0
        %2260 = vmatprep.subr.mxu0 0.0
        %2261 = vmatpush1.msra.mxu0 0.0
        %2262 = vmatprep.subr.mxu0 0.0
        %2263 = vmatpush1.msra.mxu0 0.0
        %2264 = vmatprep.mubr.f32.mxu0 %v2196
        %2265 = vmatmul.mubr.f32.gmra.mrb[0].mxu0 %v2186
        %v2266 = vpop.f32.mrb[0].mxu0
        %v2267 = vadd.f32 0.0, %v2266
        %v2268 = vpop.f32.mrb[0].mxu0
        %2269 = vmatprep.mubr.f32.mxu0 %v2198
        %2270 = vmatmul.mubr.f32.gmra.mrb[0].mxu0 %v2191
        %v2271 = vpop.f32.mrb[0].mxu0
        %v2272 = vadd.f32 0.0, %v2271
        %v2273 = vpop.f32.mrb[0].mxu0
        %2274 = vdwg.mxu0
        %v2275 = vadd.f32 %v2155, %v2267
        %v2276 = vadd.f32 %v2156, %v2272
        %v2277 = vld [vmem:[#allocation5 + $0x10] sm:$0x80]
        %v2278 = vld [vmem:[#allocation5 + $0x18] sm:$0x80]
        %v2279 = vld [vmem:[#allocation5 + $0x30] sm:$0x7f]
        %v2280 = vld [vmem:[#allocation5 + $0x38] sm:$0x7f]
        %s2281 = scalar_lea.vmem [#allocation18], 680
        %v2282 = vld [vmem:[%s2281] sm:$0xff]
        %v2283 = vld [vmem:[%s2281 + $0x8] sm:$0xff]
        %v2284 = vld [vmem:[%s2281 + $0x10] sm:$0xff]
        %v2285 = vld [vmem:[%s2281 + $0x18] sm:$0xff]
        %v2286 = vld [vmem:[%s2281 + $0x20] sm:$0xff]
        %v2287 = vld [vmem:[%s2281 + $0x28] sm:$0xff]
        %v2288 = vld [vmem:[%s2281 + $0x30] sm:$0xff]
        %v2289 = vld [vmem:[%s2281 + $0x38] sm:$0xff]
        %v2290 = vld [vmem:[%s2281 + $0x40] sm:$0xff]
        %v2291 = vld [vmem:[%s2281 + $0x48] sm:$0xff]
        %v2292 = vld [vmem:[%s2281 + $0x50] sm:$0xff]
        %v2293 = vld [vmem:[%s2281 + $0x58] sm:$0xff]
        %v2294 = vld [vmem:[%s2281 + $0x60] sm:$0xff]
        %v2295 = vld [vmem:[%s2281 + $0x68] sm:$0xff]
        %v2296 = vld [vmem:[%s2281 + $0x70] sm:$0xff]
        %v2297 = vld [vmem:[%s2281 + $0x78] sm:$0xff]
        %v2298 = vld [vmem:[%s2281 + $0x80] sm:$0xff]
        %v2303 = vrot.slane %v2277, 7
        %v2304 = vrot.slane %v2035, 7
        %v2305 = vsel %vm1673, %v2303, %v2304
        %v2306 = vrot.slane %v2278, 7
        %v2307 = vrot.slane %v2036, 7
        %v2308 = vsel %vm1673, %v2306, %v2307
        %v2309 = vrot.slane %v2279, 7
        %v2310 = vsel %vm1673, %v2304, %v2309
        %v2311 = vrot.slane %v2280, 7
        %v2312 = vsel %vm1673, %v2307, %v2311
        %v2315 = vsel %vm1660, %v2308, 0
        %v2317 = vsel %vm1660, %v2312, 0
        %2319 = vmatprep.subr.mxu0 0.0
        %2320 = vmatpush1.msra.mxu0 %v2282
        %2321 = vmatprep.subr.mxu0 0.0
        %2322 = vmatpush1.msra.mxu0 %v2283
        %2323 = vmatprep.subr.mxu0 0.0
        %2324 = vmatpush1.msra.mxu0 %v2284
        %2325 = vmatprep.subr.mxu0 0.0
        %2326 = vmatpush1.msra.mxu0 %v2285
        %2327 = vmatprep.subr.mxu0 0.0
        %2328 = vmatpush1.msra.mxu0 %v2286
        %2329 = vmatprep.subr.mxu0 0.0
        %2330 = vmatpush1.msra.mxu0 %v2287
        %2331 = vmatprep.subr.mxu0 0.0
        %2332 = vmatpush1.msra.mxu0 %v2288
        %2333 = vmatprep.subr.mxu0 0.0
        %2334 = vmatpush1.msra.mxu0 %v2289
        %2335 = vmatprep.subr.mxu0 0.0
        %2336 = vmatpush1.msra.mxu0 %v2290
        %2337 = vmatprep.subr.mxu0 0.0
        %2338 = vmatpush1.msra.mxu0 %v2291
        %2339 = vmatprep.subr.mxu0 0.0
        %2340 = vmatpush1.msra.mxu0 %v2292
        %2341 = vmatprep.subr.mxu0 0.0
        %2342 = vmatpush1.msra.mxu0 %v2293
        %2343 = vmatprep.subr.mxu0 0.0
        %2344 = vmatpush1.msra.mxu0 %v2294
        %2345 = vmatprep.subr.mxu0 0.0
        %2346 = vmatpush1.msra.mxu0 %v2295
        %2347 = vmatprep.subr.mxu0 0.0
        %2348 = vmatpush1.msra.mxu0 %v2296
        %2349 = vmatprep.subr.mxu0 0.0
        %2350 = vmatpush1.msra.mxu0 %v2297
        %2351 = vmatprep.subr.mxu0 0.0
        %2352 = vmatpush1.msra.mxu0 %v2298
        %2353 = vmatprep.subr.mxu0 0.0
        %2354 = vmatpush1.msra.mxu0 0.0
        %2355 = vmatprep.subr.mxu0 0.0
        %2356 = vmatpush1.msra.mxu0 0.0
        %2357 = vmatprep.subr.mxu0 0.0
        %2358 = vmatpush1.msra.mxu0 0.0
        %2359 = vmatprep.subr.mxu0 0.0
        %2360 = vmatpush1.msra.mxu0 0.0
        %2361 = vmatprep.subr.mxu0 0.0
        %2362 = vmatpush1.msra.mxu0 0.0
        %2363 = vmatprep.subr.mxu0 0.0
        %2364 = vmatpush1.msra.mxu0 0.0
        %2365 = vmatprep.subr.mxu0 0.0
        %2366 = vmatpush1.msra.mxu0 0.0
        %2367 = vmatprep.subr.mxu0 0.0
        %2368 = vmatpush1.msra.mxu0 0.0
        %2369 = vmatprep.subr.mxu0 0.0
        %2370 = vmatpush1.msra.mxu0 0.0
        %2371 = vmatprep.subr.mxu0 0.0
        %2372 = vmatpush1.msra.mxu0 0.0
        %2373 = vmatprep.subr.mxu0 0.0
        %2374 = vmatpush1.msra.mxu0 0.0
        %2375 = vmatprep.subr.mxu0 0.0
        %2376 = vmatpush1.msra.mxu0 0.0
        %2377 = vmatprep.subr.mxu0 0.0
        %2378 = vmatpush1.msra.mxu0 0.0
        %2379 = vmatprep.subr.mxu0 0.0
        %2380 = vmatpush1.msra.mxu0 0.0
        %2381 = vmatprep.subr.mxu0 0.0
        %2382 = vmatpush1.msra.mxu0 0.0
        %2383 = vmatprep.mubr.f32.mxu0 %v2315
        %2384 = vmatmul.mubr.f32.gmra.mrb[0].mxu0 %v2305
        %v2385 = vpop.f32.mrb[0].mxu0
        %v2386 = vadd.f32 0.0, %v2385
        %v2387 = vpop.f32.mrb[0].mxu0
        %2388 = vmatprep.mubr.f32.mxu0 %v2317
        %2389 = vmatmul.mubr.f32.gmra.mrb[0].mxu0 %v2310
        %v2390 = vpop.f32.mrb[0].mxu0
        %v2391 = vadd.f32 0.0, %v2390
        %v2392 = vpop.f32.mrb[0].mxu0
        %2393 = vdwg.mxu0
        %v2394 = vadd.f32 %v2275, %v2386
        %v2395 = vadd.f32 %v2276, %v2391
        %v2396 = vld [vmem:[#allocation5 + $0x20] sm:$0xfc]
        %v2397 = vld [vmem:[#allocation5 + $0x28] sm:$0xfc]
        %v2398 = vld [vmem:[#allocation5 + $0x30] sm:$0xff]
        %v2399 = vld [vmem:[#allocation5 + $0x38] sm:$0xff]
        %v2400 = vld [vmem:[#allocation5 + $0x40] sm:$0x3]
        %v2401 = vld [vmem:[#allocation5 + $0x48] sm:$0x3]
        %s2402 = scalar_lea.vmem [#allocation18], 816
        %v2403 = vld [vmem:[%s2402] sm:$0xff]
        %v2404 = vld [vmem:[%s2402 + $0x8] sm:$0xff]
        %v2405 = vld [vmem:[%s2402 + $0x10] sm:$0xff]
        %v2406 = vld [vmem:[%s2402 + $0x18] sm:$0xff]
        %v2407 = vld [vmem:[%s2402 + $0x20] sm:$0xff]
        %v2408 = vld [vmem:[%s2402 + $0x28] sm:$0xff]
        %v2409 = vld [vmem:[%s2402 + $0x30] sm:$0xff]
        %v2410 = vld [vmem:[%s2402 + $0x38] sm:$0xff]
        %v2411 = vld [vmem:[%s2402 + $0x40] sm:$0xff]
        %v2412 = vld [vmem:[%s2402 + $0x48] sm:$0xff]
        %v2413 = vld [vmem:[%s2402 + $0x50] sm:$0xff]
        %v2414 = vld [vmem:[%s2402 + $0x58] sm:$0xff]
        %v2415 = vld [vmem:[%s2402 + $0x60] sm:$0xff]
        %v2416 = vld [vmem:[%s2402 + $0x68] sm:$0xff]
        %v2417 = vld [vmem:[%s2402 + $0x70] sm:$0xff]
        %v2418 = vld [vmem:[%s2402 + $0x78] sm:$0xff]
        %v2419 = vld [vmem:[%s2402 + $0x80] sm:$0xff]
        %vm2426 = vcmask 1045504
        %v2427 = vrot.slane %v2396, 2
        %v2428 = vrot.slane %v2398, 2
        %v2429 = vsel %vm2426, %v2427, %v2428
        %v2430 = vrot.slane %v2397, 2
        %v2431 = vrot.slane %v2399, 2
        %v2432 = vsel %vm2426, %v2430, %v2431
        %v2433 = vrot.slane %v2400, 2
        %v2434 = vsel %vm2426, %v2428, %v2433
        %v2435 = vrot.slane %v2401, 2
        %v2436 = vsel %vm2426, %v2431, %v2435
        %v2439 = vsel %vm1660, %v2432, 0
        %v2441 = vsel %vm1660, %v2436, 0
        %2443 = vmatprep.subr.mxu0 0.0
        %2444 = vmatpush1.msra.mxu0 %v2403
        %2445 = vmatprep.subr.mxu0 0.0
        %2446 = vmatpush1.msra.mxu0 %v2404
        %2447 = vmatprep.subr.mxu0 0.0
        %2448 = vmatpush1.msra.mxu0 %v2405
        %2449 = vmatprep.subr.mxu0 0.0
        %2450 = vmatpush1.msra.mxu0 %v2406
        %2451 = vmatprep.subr.mxu0 0.0
        %2452 = vmatpush1.msra.mxu0 %v2407
        %2453 = vmatprep.subr.mxu0 0.0
        %2454 = vmatpush1.msra.mxu0 %v2408
        %2455 = vmatprep.subr.mxu0 0.0
        %2456 = vmatpush1.msra.mxu0 %v2409
        %2457 = vmatprep.subr.mxu0 0.0
        %2458 = vmatpush1.msra.mxu0 %v2410
        %2459 = vmatprep.subr.mxu0 0.0
        %2460 = vmatpush1.msra.mxu0 %v2411
        %2461 = vmatprep.subr.mxu0 0.0
        %2462 = vmatpush1.msra.mxu0 %v2412
        %2463 = vmatprep.subr.mxu0 0.0
        %2464 = vmatpush1.msra.mxu0 %v2413
        %2465 = vmatprep.subr.mxu0 0.0
        %2466 = vmatpush1.msra.mxu0 %v2414
        %2467 = vmatprep.subr.mxu0 0.0
        %2468 = vmatpush1.msra.mxu0 %v2415
        %2469 = vmatprep.subr.mxu0 0.0
        %2470 = vmatpush1.msra.mxu0 %v2416
        %2471 = vmatprep.subr.mxu0 0.0
        %2472 = vmatpush1.msra.mxu0 %v2417
        %2473 = vmatprep.subr.mxu0 0.0
        %2474 = vmatpush1.msra.mxu0 %v2418
        %2475 = vmatprep.subr.mxu0 0.0
        %2476 = vmatpush1.msra.mxu0 %v2419
        %2477 = vmatprep.subr.mxu0 0.0
        %2478 = vmatpush1.msra.mxu0 0.0
        %2479 = vmatprep.subr.mxu0 0.0
        %2480 = vmatpush1.msra.mxu0 0.0
        %2481 = vmatprep.subr.mxu0 0.0
        %2482 = vmatpush1.msra.mxu0 0.0
        %2483 = vmatprep.subr.mxu0 0.0
        %2484 = vmatpush1.msra.mxu0 0.0
        %2485 = vmatprep.subr.mxu0 0.0
        %2486 = vmatpush1.msra.mxu0 0.0
        %2487 = vmatprep.subr.mxu0 0.0
        %2488 = vmatpush1.msra.mxu0 0.0
        %2489 = vmatprep.subr.mxu0 0.0
        %2490 = vmatpush1.msra.mxu0 0.0
        %2491 = vmatprep.subr.mxu0 0.0
        %2492 = vmatpush1.msra.mxu0 0.0
        %2493 = vmatprep.subr.mxu0 0.0
        %2494 = vmatpush1.msra.mxu0 0.0
        %2495 = vmatprep.subr.mxu0 0.0
        %2496 = vmatpush1.msra.mxu0 0.0
        %2497 = vmatprep.subr.mxu0 0.0
        %2498 = vmatpush1.msra.mxu0 0.0
        %2499 = vmatprep.subr.mxu0 0.0
        %2500 = vmatpush1.msra.mxu0 0.0
        %2501 = vmatprep.subr.mxu0 0.0
        %2502 = vmatpush1.msra.mxu0 0.0
        %2503 = vmatprep.subr.mxu0 0.0
        %2504 = vmatpush1.msra.mxu0 0.0
        %2505 = vmatprep.subr.mxu0 0.0
        %2506 = vmatpush1.msra.mxu0 0.0
        %2507 = vmatprep.mubr.f32.mxu0 %v2439
        %2508 = vmatmul.mubr.f32.gmra.mrb[0].mxu0 %v2429
        %v2509 = vpop.f32.mrb[0].mxu0
        %v2510 = vadd.f32 0.0, %v2509
        %v2511 = vpop.f32.mrb[0].mxu0
        %2512 = vmatprep.mubr.f32.mxu0 %v2441
        %2513 = vmatmul.mubr.f32.gmra.mrb[0].mxu0 %v2434
        %v2514 = vpop.f32.mrb[0].mxu0
        %v2515 = vadd.f32 0.0, %v2514
        %v2516 = vpop.f32.mrb[0].mxu0
        %2517 = vdwg.mxu0
        %v2518 = vadd.f32 %v2394, %v2510
        %v2519 = vadd.f32 %v2395, %v2515
        %v2520 = vld [vmem:[#allocation20] sm:$0x1]
        %v2522 = vlaneseq
        %v2523 = vshrl.u32 %v2522, 7
        %v2524 = vsub.s32 0, %v2523
        %v2525 = vrot.slane %v2520, %v2524
        %v2527 = vadd.f32 %v2518, %v2525
        %v2528 = vadd.f32 %v2519, %v2525
        %v2529 = vld [vmem:[#allocation21] sm:$0xff]
        %v2530 = vld [vmem:[#allocation21 + $0x8] sm:$0xff]
        %v2531 = vld [vmem:[#allocation21 + $0x10] sm:$0xff]
        %v2532 = vld [vmem:[#allocation21 + $0x18] sm:$0xff]
        %v2533 = vld [vmem:[#allocation21 + $0x20] sm:$0xff]
        %v2534 = vld [vmem:[#allocation21 + $0x28] sm:$0xff]
        %v2535 = vld [vmem:[#allocation21 + $0x30] sm:$0xff]
        %v2536 = vld [vmem:[#allocation21 + $0x38] sm:$0xff]
        %v2537 = vld [vmem:[#allocation23] sm:$0x1]
        %v2539 = vlaneseq
        %v2540 = vshrl.u32 %v2539, 7
        %v2541 = vsub.s32 0, %v2540
        %v2542 = vrot.slane %v2537, %v2541
        %vm2544 = vcmask 523264
        %v2546 = vsel %vm2544, %v2527, 0
        %v2549 = vsel %vm2544, %v2528, 0
        %2551 = vmatprep.subr.mxu0 0.0
        %2552 = vmatpush1.msra.mxu0 %v2529
        %2553 = vmatprep.subr.mxu0 0.0
        %2554 = vmatpush1.msra.mxu0 %v2530
        %2555 = vmatprep.subr.mxu0 0.0
        %2556 = vmatpush1.msra.mxu0 %v2531
        %2557 = vmatprep.subr.mxu0 0.0
        %2558 = vmatpush1.msra.mxu0 %v2532
        %2559 = vmatprep.subr.mxu0 0.0
        %2560 = vmatpush1.msra.mxu0 %v2533
        %2561 = vmatprep.subr.mxu0 0.0
        %2562 = vmatpush1.msra.mxu0 %v2534
        %2563 = vmatprep.subr.mxu0 0.0
        %2564 = vmatpush1.msra.mxu0 %v2535
        %2565 = vmatprep.subr.mxu0 0.0
        %2566 = vmatpush1.msra.mxu0 %v2536
        %2567 = vmatprep.subr.mxu0 0.0
        %2568 = vmatpush1.msra.mxu0 0.0
        %2569 = vmatprep.subr.mxu0 0.0
        %2570 = vmatpush1.msra.mxu0 0.0
        %2571 = vmatprep.subr.mxu0 0.0
        %2572 = vmatpush1.msra.mxu0 0.0
        %2573 = vmatprep.subr.mxu0 0.0
        %2574 = vmatpush1.msra.mxu0 0.0
        %2575 = vmatprep.subr.mxu0 0.0
        %2576 = vmatpush1.msra.mxu0 0.0
        %2577 = vmatprep.subr.mxu0 0.0
        %2578 = vmatpush1.msra.mxu0 0.0
        %2579 = vmatprep.subr.mxu0 0.0
        %2580 = vmatpush1.msra.mxu0 0.0
        %2581 = vmatprep.subr.mxu0 0.0
        %2582 = vmatpush1.msra.mxu0 0.0
        %2583 = vmatprep.subr.mxu0 0.0
        %2584 = vmatpush1.msra.mxu0 0.0
        %2585 = vmatprep.subr.mxu0 0.0
        %2586 = vmatpush1.msra.mxu0 0.0
        %2587 = vmatprep.subr.mxu0 0.0
        %2588 = vmatpush1.msra.mxu0 0.0
        %2589 = vmatprep.subr.mxu0 0.0
        %2590 = vmatpush1.msra.mxu0 0.0
        %2591 = vmatprep.subr.mxu0 0.0
        %2592 = vmatpush1.msra.mxu0 0.0
        %2593 = vmatprep.subr.mxu0 0.0
        %2594 = vmatpush1.msra.mxu0 0.0
        %2595 = vmatprep.subr.mxu0 0.0
        %2596 = vmatpush1.msra.mxu0 0.0
        %2597 = vmatprep.subr.mxu0 0.0
        %2598 = vmatpush1.msra.mxu0 0.0
        %2599 = vmatprep.subr.mxu0 0.0
        %2600 = vmatpush1.msra.mxu0 0.0
        %2601 = vmatprep.subr.mxu0 0.0
        %2602 = vmatpush1.msra.mxu0 0.0
        %2603 = vmatprep.subr.mxu0 0.0
        %2604 = vmatpush1.msra.mxu0 0.0
        %2605 = vmatprep.subr.mxu0 0.0
        %2606 = vmatpush1.msra.mxu0 0.0
        %2607 = vmatprep.subr.mxu0 0.0
        %2608 = vmatpush1.msra.mxu0 0.0
        %2609 = vmatprep.subr.mxu0 0.0
        %2610 = vmatpush1.msra.mxu0 0.0
        %2611 = vmatprep.subr.mxu0 0.0
        %2612 = vmatpush1.msra.mxu0 0.0
        %2613 = vmatprep.subr.mxu0 0.0
        %2614 = vmatpush1.msra.mxu0 0.0
        %2615 = vmatprep.mubr.f32.mxu0 0.0
        %2616 = vmatmul.mubr.f32.gmra.mrb[0].mxu0 %v2546
        %v2617 = vpop.f32.mrb[0].mxu0
        %v2618 = vadd.f32 %v2542, %v2617
        %v2619 = vpop.f32.mrb[0].mxu0
        %2620 = vmatprep.mubr.f32.mxu0 0.0
        %2621 = vmatmul.mubr.f32.gmra.mrb[0].mxu0 %v2549
        %v2622 = vpop.f32.mrb[0].mxu0
        %v2623 = vadd.f32 %v2542, %v2622
        %v2624 = vpop.f32.mrb[0].mxu0
        %2625 = vdwg.mxu0
        %v2626 = vxor.u32 %v2618, 2147483648
        %v2627 = vxor.u32 %v2623, 2147483648
        %v2628 = vmul.f32 %v2626, 1.442695
        %v2629 = vpow.pop %v2628
        %v2630 = vmul.f32 %v2627, 1.442695
        %v2631 = vpow.pop %v2630
        %v2632 = vadd.f32 %v2629, 1.0
        %v2633 = vadd.f32 %v2631, 1.0
        %v2634 = vrcp.pop %v2632
        %v2635 = vmul.f32 1.0, %v2634
        %v2636 = vrcp.pop %v2633
        %v2637 = vmul.f32 1.0, %v2636
        %v2638 = vmul.f32 %v2635, %v1157
        %v2639 = vmul.f32 %v2637, %v1158
        %v2640 = vadd.f32 %v2638, %v540
        %v2641 = vadd.f32 %v2639, %v541
        %2642 = vst.msk [vmem:[%s539] sm:$0xff] %vm2544, %v2640
        %2643 = vst.msk [vmem:[%s539 + $0x8] sm:$0xff] %vm2544, %v2641
        %s2644 = sand.u32 %s277, 1
        %s2645 = scalar_lea.sflag [#allocation8], %s2644
        %s2646 = sand.u32 %s277, 1
        %s2647 = smul.addr %s2646, 16
        %s2648 = scalar_lea.vmem [#allocation24], %s2647
        // Predicated region
        $region109: #{tpu_custom_call.1} parent=63 // pred_check
          %p2649 = pneg %p287
        $region110: #{tpu_custom_call.1} parent=63 // pred_check_branch
          %2651 = sbr.rel (%p2649) target = $region112
        $region111: #{tpu_custom_call.1} parent=63 // pred_region
          %s2653 = ssub.s32 256, 256
          %2654 = vsyncadd %s2645, %s2653
          %s2655 = smul.addr %s33, 2
          %s2656 = smul.addr %s2655, 128
          %s2657 = scalar_lea.hbm %s11, %s2656
          %s2658 = sshll.u32 %s2648, 4
          %s2659 = int_to_ptr.vmem [resolvable:$true] %s2658
          %2664 = dma.vmem_to_hbm [thread:$0]  %s2659, 256, %s2657, %s2645, 128, 128, 8
        $region112: #{tpu_custom_call.1} parent=63 // pred_fallthru
          _
      $region64: #{tpu_custom_call.1} parent=5 // pred_fallthru
        _
      %p2665 = scmp.le.s32.totalorder 2, %s28
      // Predicated region
      $region113: #{tpu_custom_call.1} parent=5 // pred_check
        %p2666 = pneg %p2665
      $region114: #{tpu_custom_call.1} parent=5 // pred_check_branch
        %2668 = sbr.rel (%p2666) target = $region116
      $region115: #{tpu_custom_call.1} parent=5 // pred_region
        %s2669 = ssub.s32 %s28, 2
        // Predicated region
        $region117: #{tpu_custom_call.1} parent=115 // pred_check
          %p2670 = pneg %p293
        $region118: #{tpu_custom_call.1} parent=115 // pred_check_branch
          %2672 = sbr.rel (%p2670) target = $region120
        $region119: #{tpu_custom_call.1} parent=115 // pred_region
          %s2673 = sand.u32 %s278, 1
          %s2674 = scalar_lea.sflag [#allocation8], %s2673
          %s2675 = sand.u32 %s278, 1
          %s2676 = smul.addr %s2675, 16
          %s2677 = scalar_lea.vmem [#allocation24], %s2676
          %2678 = dma.done %s2674, 256
        $region120: #{tpu_custom_call.1} parent=115 // pred_fallthru
          _
      $region116: #{tpu_custom_call.1} parent=5 // pred_fallthru
        _
    $region6: #{tpu_custom_call.1} parent=1 // loop_footer
      %s32 = sadd.s32 1, %s28
    $region7: #{tpu_custom_call.1} parent=1 // loop_footer_branch
      %27 = sbr.rel target = $region3
    $region8: #{tpu_custom_call.1} parent=1 // loop_exit
      _
    %2679 = vsyncpa [#allocation7], 1
    %s2680 = scalar_lea.sflag [#allocation7], 1
    %2681 = vsyncpa %s2680, 1
    %2682 = vsyncpa [#allocation10], 1
    %2683 = vsyncpa [#allocation13], 1
    %2684 = vsyncpa [#allocation16], 1
    %2685 = vsyncpa [#allocation19], 1
    %2686 = vsyncpa [#allocation22], 1
    %2687 = vsyncpa [#allocation8], 1
    %s2688 = scalar_lea.sflag [#allocation8], 1
    %2689 = vsyncpa %s2688, 1

</llo_original>
